<compile_context>
chip_gen: v5e
topology: v5e:2x2
jax: 0.10.0
libtpu: 0.0.40
codegen_flags: <defaults>
</compile_context>

<pallas_src>
import functools

import jax
import jax.numpy as jnp
from jax.experimental import pallas as pl
from jax.experimental.pallas import tpu as pltpu


def dqn_kernel(x_ref,
               w1_ref, b1_ref,
               w2q_ref, w2s_ref, b2_ref,
               w3_ref, b3_ref,
               w4_ref, b4_ref,
               out_ref):
    """Fused 4-layer MLP: bf16/int8 weight streaming, f32 accumulate/bias/ReLU."""
    x = x_ref[...].astype(jnp.bfloat16)

    h = jnp.dot(x, w1_ref[...], preferred_element_type=jnp.float32) + b1_ref[...]
    h = jnp.maximum(h, 0.0).astype(jnp.bfloat16)

    # Dequantize the dominant weight (int8, per-output-channel scale) to bf16.
    # Pure VPU work; hides under the W2 DMA on every generation.
    w2 = w2q_ref[...].astype(jnp.bfloat16) * w2s_ref[...]
    h = jnp.dot(h, w2, preferred_element_type=jnp.float32) + b2_ref[...]
    h = jnp.maximum(h, 0.0).astype(jnp.bfloat16)

    h = jnp.dot(h, w3_ref[...], preferred_element_type=jnp.float32) + b3_ref[...]
    h = jnp.maximum(h, 0.0).astype(jnp.bfloat16)

    # head (no activation) -- x.view(x.size(0), -1) is a no-op for 2-D input
    y = jnp.dot(h, w4_ref[...], preferred_element_type=jnp.float32) + b4_ref[...]
    out_ref[...] = y.astype(out_ref.dtype)


def prepare_params(params, *, lane=128):
    """One-time weight preparation (run OUTSIDE the per-step hot path).

    - pads D_in (W1 rows) and D_out (W4/b4 cols) to multiples of `lane`
    - casts W1/W3/W4 to bf16
    - quantizes W2 to int8 with per-output-channel scales (dequantized to bf16
      inside the kernel)
    Biases stay f32. Returns an arrays-only dict (jit-friendly pytree).
    """
    (w1, b1), (w2, b2), (w3, b3), (w4, b4) = params
    d_in = w1.shape[0]
    d_out = w4.shape[1]

    d_in_pad = ((d_in + lane - 1) // lane) * lane
    d_out_pad = ((d_out + lane - 1) // lane) * lane
    if d_in_pad != d_in:
        w1 = jnp.pad(w1, ((0, d_in_pad - d_in), (0, 0)))
    if d_out_pad != d_out:
        w4 = jnp.pad(w4, ((0, 0), (0, d_out_pad - d_out)))
        b4 = jnp.pad(b4, ((0, 0), (0, d_out_pad - d_out)))

    # int8 per-output-channel symmetric quantization of W2 (1024 x 512).
    absmax = jnp.max(jnp.abs(w2), axis=0, keepdims=True)          # (1, 512)
    scale = jnp.maximum(absmax, 1e-12) / 127.0
    w2_q = jnp.clip(jnp.round(w2 / scale), -127, 127).astype(jnp.int8)

    return {
        "w1": w1.astype(jnp.bfloat16), "b1": b1,
        "w2_q": w2_q, "w2_scale": scale.astype(jnp.bfloat16), "b2": b2,
        "w3": w3.astype(jnp.bfloat16), "b3": b3,
        "w4": w4.astype(jnp.bfloat16), "b4": b4,
    }


@functools.partial(jax.jit, static_argnames=("d_out", "batch_tile", "out_dtype"))
def dqn_forward(x, prep, d_out, *, batch_tile=256, out_dtype=jnp.float32):
    """Runs the fused MLP on pre-prepared (pre-cast / pre-padded) params."""
    w1, b1 = prep["w1"], prep["b1"]
    w2_q, w2_s, b2 = prep["w2_q"], prep["w2_scale"], prep["b2"]
    w3, b3 = prep["w3"], prep["b3"]
    w4, b4 = prep["w4"], prep["b4"]

    B, d_in = x.shape
    d_in_pad = w1.shape[0]
    d_out_pad = w4.shape[1]

    # Lane-pad input features (tiny per-call copy; weights already padded).
    if d_in_pad != d_in:
        x = jnp.pad(x, ((0, 0), (0, d_in_pad - d_in)))

    # Batch tile: multiple of 16 (bf16 packs 16 rows per vreg sublane group).
    bt = max(16, ((batch_tile + 15) // 16) * 16)
    tb = min(bt, max(16, ((B + 15) // 16) * 16))
    b_pad = ((B + tb - 1) // tb) * tb
    if b_pad != B:
        x = jnp.pad(x, ((0, b_pad - B), (0, 0)))
    grid = (b_pad // tb,)

    def x_map(i):
        return (i, 0)

    def const_map(i):
        # Same block every grid step -> weights stay VMEM-resident (no re-DMA).
        return (0, 0)

    vmem_limit = (32 << 20) if tb > 256 else (16 << 20)

    out = pl.pallas_call(
        dqn_kernel,
        out_shape=jax.ShapeDtypeStruct((b_pad, d_out_pad), out_dtype),
        grid=grid,
        in_specs=[
            pl.BlockSpec((tb, d_in_pad), x_map),
            pl.BlockSpec(w1.shape, const_map),
            pl.BlockSpec(b1.shape, const_map),
            pl.BlockSpec(w2_q.shape, const_map),
            pl.BlockSpec(w2_s.shape, const_map),
            pl.BlockSpec(b2.shape, const_map),
            pl.BlockSpec(w3.shape, const_map),
            pl.BlockSpec(b3.shape, const_map),
            pl.BlockSpec(w4.shape, const_map),
            pl.BlockSpec(b4.shape, const_map),
        ],
        out_specs=pl.BlockSpec((tb, d_out_pad), x_map),
        compiler_params=pltpu.CompilerParams(
            dimension_semantics=("parallel",),   # shards batch tiles across TCs
            vmem_limit_bytes=vmem_limit,
        ),
    )(x, w1, b1, w2_q, w2_s, b2, w3, b3, w4, b4)

    return out[:B, :d_out]


def init_linear(key, fan_in, fan_out):
    """Deterministic init mimicking PyTorch nn.Linear default:
    uniform(-1/sqrt(fan_in), 1/sqrt(fan_in)). Stored as (in, out)."""
    kw, kb = jax.random.split(key)
    bound = 1.0 / jnp.sqrt(fan_in)
    w = jax.random.uniform(kw, (fan_in, fan_out), jnp.float32, -bound, bound)
    b = jax.random.uniform(kb, (1, fan_out), jnp.float32, -bound, bound)
    return w, b


def reference_forward(x, params):
    (w1, b1), (w2, b2), (w3, b3), (w4, b4) = params
    h = jnp.maximum(x @ w1 + b1, 0.0)
    h = jnp.maximum(h @ w2 + b2, 0.0)
    h = jnp.maximum(h @ w3 + b3, 0.0)
    return h @ w4 + b4


if __name__ == "__main__":
    # Small shapes consistent with the module: linear_input_size (state-space
    # feature count) and output_size (flat abstract-action count) are
    # environment-dependent; hidden sizes 1024/512/128 are fixed by __init__.
    batch = 8
    d_in = 32       # len(model.state_space.dim_sizes)  (synthetic)
    d_out = 64      # model.action_space.flat_size()    (synthetic)

    key = jax.random.PRNGKey(0)
    kx, k1, k2, k3, k4 = jax.random.split(key, 5)

    x = jax.random.normal(kx, (batch, d_in), jnp.float32)
    params = (
        init_linear(k1, d_in, 1024),
        init_linear(k2, 1024, 512),
        init_linear(k3, 512, 128),
        init_linear(k4, 128, d_out),
    )

    # One-time weight preparation (cast / quantize / pad) outside the hot loop.
    prep = jax.tree_util.tree_map(jax.block_until_ready, prepare_params(params))

    out = dqn_forward(x, prep, d_out)
    out = jax.block_until_ready(out)

    ref = reference_forward(x, params)
    assert out.shape == (batch, d_out)
    # bf16 activation/weight streaming + int8 W2 with f32 accumulation:
    # ~1e-2 relative error vs the f32 reference.
    assert jnp.allclose(out, ref, atol=5e-2, rtol=5e-2), "mismatch vs reference"

    print("KERNEL_OK")
</pallas_src>

<mosaic_0001>
module attributes {stable_mosaic.version = 11 : i64} {
  func.func @dqn_kernel(%arg0: i32, %arg1: memref<16x128xf32, #tpu.memory_space<vmem>>, %arg2: memref<128x1024xbf16, #tpu.memory_space<vmem>>, %arg3: memref<1x1024xf32, #tpu.memory_space<vmem>>, %arg4: memref<1024x512xi8, #tpu.memory_space<vmem>>, %arg5: memref<1x512xbf16, #tpu.memory_space<vmem>>, %arg6: memref<1x512xf32, #tpu.memory_space<vmem>>, %arg7: memref<512x128xbf16, #tpu.memory_space<vmem>>, %arg8: memref<1x128xf32, #tpu.memory_space<vmem>>, %arg9: memref<128x128xbf16, #tpu.memory_space<vmem>>, %arg10: memref<1x128xf32, #tpu.memory_space<vmem>>, %arg11: memref<16x128xf32, #tpu.memory_space<vmem>>) attributes {dimension_semantics = [#tpu.dimension_semantics<parallel>], iteration_bounds = array<i64: 1>, scalar_prefetch = 0 : i64, scratch_operands = 0 : i64, tpu.core_type = #tpu.core_type<tc>, window_params = [{transform_indices = @transform_0, window_bounds = array<i64: 16, 128>}, {pipeline_mode = #tpu.pipeline_mode<synchronous>, transform_indices = @transform_1, window_bounds = array<i64: 128, 1024>}, {pipeline_mode = #tpu.pipeline_mode<synchronous>, transform_indices = @transform_2, window_bounds = array<i64: 1, 1024>}, {pipeline_mode = #tpu.pipeline_mode<synchronous>, transform_indices = @transform_3, window_bounds = array<i64: 1024, 512>}, {pipeline_mode = #tpu.pipeline_mode<synchronous>, transform_indices = @transform_4, window_bounds = array<i64: 1, 512>}, {pipeline_mode = #tpu.pipeline_mode<synchronous>, transform_indices = @transform_5, window_bounds = array<i64: 1, 512>}, {pipeline_mode = #tpu.pipeline_mode<synchronous>, transform_indices = @transform_6, window_bounds = array<i64: 512, 128>}, {pipeline_mode = #tpu.pipeline_mode<synchronous>, transform_indices = @transform_7, window_bounds = array<i64: 1, 128>}, {pipeline_mode = #tpu.pipeline_mode<synchronous>, transform_indices = @transform_8, window_bounds = array<i64: 128, 128>}, {pipeline_mode = #tpu.pipeline_mode<synchronous>, transform_indices = @transform_9, window_bounds = array<i64: 1, 128>}, {transform_indices = @transform_10, window_bounds = array<i64: 16, 128>}]} {
    %c0 = arith.constant 0 : index
    %c0_0 = arith.constant 0 : index
    %0 = vector.load %arg1[%c0, %c0_0] : memref<16x128xf32, #tpu.memory_space<vmem>>, vector<16x128xf32>
    %1 = arith.truncf %0 : vector<16x128xf32> to vector<16x128xbf16>
    %c0_1 = arith.constant 0 : index
    %c0_2 = arith.constant 0 : index
    %2 = vector.load %arg2[%c0_1, %c0_2] : memref<128x1024xbf16, #tpu.memory_space<vmem>>, vector<128x1024xbf16>
    %cst = arith.constant dense<0.000000e+00> : vector<16x1024xf32>
    %3 = tpu.matmul %1, %2, %cst {dimension_numbers = #tpu.dot_dimension_numbers<[1], [0], [0], [1], [0, 0, 1, 1], [], []>} : vector<16x128xbf16>, vector<128x1024xbf16>, vector<16x1024xf32> -> vector<16x1024xf32>
    %c0_3 = arith.constant 0 : index
    %c0_4 = arith.constant 0 : index
    %4 = vector.load %arg3[%c0_3, %c0_4] : memref<1x1024xf32, #tpu.memory_space<vmem>>, vector<1x1024xf32>
    %5 = vector.broadcast %4 : vector<1x1024xf32> to vector<16x1024xf32>
    %6 = arith.addf %3, %5 : vector<16x1024xf32>
    %cst_5 = arith.constant 0.000000e+00 : f32
    %7 = vector.broadcast %cst_5 : f32 to vector<16x1024xf32>
    %8 = arith.maximumf %6, %7 : vector<16x1024xf32>
    %9 = arith.truncf %8 : vector<16x1024xf32> to vector<16x1024xbf16>
    %c0_6 = arith.constant 0 : index
    %c0_7 = arith.constant 0 : index
    %10 = vector.load %arg4[%c0_6, %c0_7] : memref<1024x512xi8, #tpu.memory_space<vmem>>, vector<1024x512xi8>
    %11 = arith.sitofp %10 : vector<1024x512xi8> to vector<1024x512xbf16>
    %c0_8 = arith.constant 0 : index
    %c0_9 = arith.constant 0 : index
    %12 = vector.load %arg5[%c0_8, %c0_9] : memref<1x512xbf16, #tpu.memory_space<vmem>>, vector<1x512xbf16>
    %13 = vector.broadcast %12 : vector<1x512xbf16> to vector<1024x512xbf16>
    %14 = arith.mulf %11, %13 : vector<1024x512xbf16>
    %cst_10 = arith.constant dense<0.000000e+00> : vector<16x512xf32>
    %15 = tpu.matmul %9, %14, %cst_10 {dimension_numbers = #tpu.dot_dimension_numbers<[1], [0], [0], [1], [0, 0, 1, 1], [], []>} : vector<16x1024xbf16>, vector<1024x512xbf16>, vector<16x512xf32> -> vector<16x512xf32>
    %c0_11 = arith.constant 0 : index
    %c0_12 = arith.constant 0 : index
    %16 = vector.load %arg6[%c0_11, %c0_12] : memref<1x512xf32, #tpu.memory_space<vmem>>, vector<1x512xf32>
    %17 = vector.broadcast %16 : vector<1x512xf32> to vector<16x512xf32>
    %18 = arith.addf %15, %17 : vector<16x512xf32>
    %cst_13 = arith.constant 0.000000e+00 : f32
    %19 = vector.broadcast %cst_13 : f32 to vector<16x512xf32>
    %20 = arith.maximumf %18, %19 : vector<16x512xf32>
    %21 = arith.truncf %20 : vector<16x512xf32> to vector<16x512xbf16>
    %c0_14 = arith.constant 0 : index
    %c0_15 = arith.constant 0 : index
    %22 = vector.load %arg7[%c0_14, %c0_15] : memref<512x128xbf16, #tpu.memory_space<vmem>>, vector<512x128xbf16>
    %cst_16 = arith.constant dense<0.000000e+00> : vector<16x128xf32>
    %23 = tpu.matmul %21, %22, %cst_16 {dimension_numbers = #tpu.dot_dimension_numbers<[1], [0], [0], [1], [0, 0, 1, 1], [], []>} : vector<16x512xbf16>, vector<512x128xbf16>, vector<16x128xf32> -> vector<16x128xf32>
    %c0_17 = arith.constant 0 : index
    %c0_18 = arith.constant 0 : index
    %24 = vector.load %arg8[%c0_17, %c0_18] : memref<1x128xf32, #tpu.memory_space<vmem>>, vector<1x128xf32>
    %25 = vector.broadcast %24 : vector<1x128xf32> to vector<16x128xf32>
    %26 = arith.addf %23, %25 : vector<16x128xf32>
    %cst_19 = arith.constant 0.000000e+00 : f32
    %27 = vector.broadcast %cst_19 : f32 to vector<16x128xf32>
    %28 = arith.maximumf %26, %27 : vector<16x128xf32>
    %29 = arith.truncf %28 : vector<16x128xf32> to vector<16x128xbf16>
    %c0_20 = arith.constant 0 : index
    %c0_21 = arith.constant 0 : index
    %30 = vector.load %arg9[%c0_20, %c0_21] : memref<128x128xbf16, #tpu.memory_space<vmem>>, vector<128x128xbf16>
    %cst_22 = arith.constant dense<0.000000e+00> : vector<16x128xf32>
    %31 = tpu.matmul %29, %30, %cst_22 {dimension_numbers = #tpu.dot_dimension_numbers<[1], [0], [0], [1], [0, 0, 1, 1], [], []>} : vector<16x128xbf16>, vector<128x128xbf16>, vector<16x128xf32> -> vector<16x128xf32>
    %c0_23 = arith.constant 0 : index
    %c0_24 = arith.constant 0 : index
    %32 = vector.load %arg10[%c0_23, %c0_24] : memref<1x128xf32, #tpu.memory_space<vmem>>, vector<1x128xf32>
    %33 = vector.broadcast %32 : vector<1x128xf32> to vector<16x128xf32>
    %34 = arith.addf %31, %33 : vector<16x128xf32>
    %c0_25 = arith.constant 0 : index
    %c0_26 = arith.constant 0 : index
    %35 = vector.load %arg11[%c0_25, %c0_26] : memref<16x128xf32, #tpu.memory_space<vmem>>, vector<16x128xf32>
    tpu.vector_store %arg11[%c0_25, %c0_26], %34 {strides = array<i32>} : memref<16x128xf32, #tpu.memory_space<vmem>>, vector<16x128xf32>,
    return
  }
  func.func @transform_0(%arg0: i32) -> (i32, i32) {
    %c0_i32 = arith.constant 0 : i32
    %c0_i32_0 = arith.constant 0 : i32
    return %arg0, %c0_i32 : i32, i32
  }
  func.func @transform_1(%arg0: i32) -> (i32, i32) {
    %c0_i32 = arith.constant 0 : i32
    %c0_i32_0 = arith.constant 0 : i32
    %c0_i32_1 = arith.constant 0 : i32
    return %c0_i32, %c0_i32_0 : i32, i32
  }
  func.func @transform_2(%arg0: i32) -> (i32, i32) {
    %c0_i32 = arith.constant 0 : i32
    %c0_i32_0 = arith.constant 0 : i32
    %c0_i32_1 = arith.constant 0 : i32
    return %c0_i32, %c0_i32_0 : i32, i32
  }
  func.func @transform_3(%arg0: i32) -> (i32, i32) {
    %c0_i32 = arith.constant 0 : i32
    %c0_i32_0 = arith.constant 0 : i32
    %c0_i32_1 = arith.constant 0 : i32
    return %c0_i32, %c0_i32_0 : i32, i32
  }
  func.func @transform_4(%arg0: i32) -> (i32, i32) {
    %c0_i32 = arith.constant 0 : i32
    %c0_i32_0 = arith.constant 0 : i32
    %c0_i32_1 = arith.constant 0 : i32
    return %c0_i32, %c0_i32_0 : i32, i32
  }
  func.func @transform_5(%arg0: i32) -> (i32, i32) {
    %c0_i32 = arith.constant 0 : i32
    %c0_i32_0 = arith.constant 0 : i32
    %c0_i32_1 = arith.constant 0 : i32
    return %c0_i32, %c0_i32_0 : i32, i32
  }
  func.func @transform_6(%arg0: i32) -> (i32, i32) {
    %c0_i32 = arith.constant 0 : i32
    %c0_i32_0 = arith.constant 0 : i32
    %c0_i32_1 = arith.constant 0 : i32
    return %c0_i32, %c0_i32_0 : i32, i32
  }
  func.func @transform_7(%arg0: i32) -> (i32, i32) {
    %c0_i32 = arith.constant 0 : i32
    %c0_i32_0 = arith.constant 0 : i32
    %c0_i32_1 = arith.constant 0 : i32
    return %c0_i32, %c0_i32_0 : i32, i32
  }
  func.func @transform_8(%arg0: i32) -> (i32, i32) {
    %c0_i32 = arith.constant 0 : i32
    %c0_i32_0 = arith.constant 0 : i32
    %c0_i32_1 = arith.constant 0 : i32
    return %c0_i32, %c0_i32_0 : i32, i32
  }
  func.func @transform_9(%arg0: i32) -> (i32, i32) {
    %c0_i32 = arith.constant 0 : i32
    %c0_i32_0 = arith.constant 0 : i32
    %c0_i32_1 = arith.constant 0 : i32
    return %c0_i32, %c0_i32_0 : i32, i32
  }
  func.func @transform_10(%arg0: i32) -> (i32, i32) {
    %c0_i32 = arith.constant 0 : i32
    %c0_i32_0 = arith.constant 0 : i32
    return %arg0, %c0_i32 : i32, i32
  }
}

</mosaic_0001>

<llo_original>
// kernel: dqn_forward.1
$region0: #{dqn_forward.1}
  #allocation0 [shape = 'u32[]', space=smem, size = 0x4, offset = 0x4, fixed_abs, tag = 'smem constant byte address 0x4 - core index']
  #allocation1 [shape = 'u32[72,128]{1,0:T(1,128)}', space=vmem, size = 0x9000, scoped, tag = 'internal scratch']
  %s0 = inlined_call_operand.vmem [shape: f32[16,128], index: 0, kind: input, shape index: {}]
  %s1 = inlined_call_operand.hbm [shape: bf16[128,1024], index: 1, kind: input, shape index: {}]
  %s2 = inlined_call_operand.vmem [shape: f32[1,1024], index: 2, kind: input, shape index: {}]
  %s3 = inlined_call_operand.hbm [shape: s8[1024,512], index: 3, kind: input, shape index: {}]
  %s4 = inlined_call_operand.vmem [shape: bf16[1,512], index: 4, kind: input, shape index: {}]
  %s5 = inlined_call_operand.vmem [shape: f32[1,512], index: 5, kind: input, shape index: {}]
  %s6 = inlined_call_operand.hbm [shape: bf16[512,128], index: 6, kind: input, shape index: {}]
  %s7 = inlined_call_operand.vmem [shape: f32[1,128], index: 7, kind: input, shape index: {}]
  %s8 = inlined_call_operand.hbm [shape: bf16[128,128], index: 8, kind: input, shape index: {}]
  %s9 = inlined_call_operand.vmem [shape: f32[1,128], index: 9, kind: input, shape index: {}]
  %s10 = inlined_call_operand.vmem [shape: f32[16,128], index: 10, kind: output, shape index: {}]
  %s11 = sld [smem:[#allocation0]]
  $region66: #{dqn_forward.1} parent=0
    _
  %s13 = ssub.s32 1, %s11
  %s14 = scalar_select 0, %s13, %s11
  $region1: #{dqn_forward.1} parent=0
    #allocation2 [shape = 'u8[262144]{0}', space=vmem, size = 0x40000, scoped, tag = 'input window, operand 1, single buffered']
    #allocation3 [shape = 's32[1]{0}', space=sflag, size = 0x4, scoped, tag = 'scoped memory for dqn_forward.1']
    #allocation4 [shape = 'u8[524288]{0}', space=vmem, size = 0x80000, scoped, tag = 'input window, operand 3, single buffered']
    #allocation5 [shape = 's32[1]{0}', space=sflag, size = 0x4, scoped, tag = 'scoped memory for dqn_forward.1']
    #allocation6 [shape = 'u8[131072]{0}', space=vmem, size = 0x20000, scoped, tag = 'input window, operand 6, single buffered']
    #allocation7 [shape = 'u8[32768]{0}', space=vmem, size = 0x8000, scoped, tag = 'input window, operand 8, single buffered']
    #allocation8 [shape = 's32[1]{0}', space=sflag, size = 0x4, scoped, tag = 'scoped memory for dqn_forward.1']
    %15 = vsyncpa [#allocation3], 0
    %16 = vsyncpa [#allocation5], 0
    %17 = vsyncpa [#allocation8], 0
    // Predicated region
    $region2: #{dqn_forward.1} parent=1 // pred_check
      _
    $region3: #{dqn_forward.1} parent=1 // pred_check_branch
      %19 = sbr.rel (0) target = $region5
    $region4: #{dqn_forward.1} parent=1 // pred_region
      _
    $region5: #{dqn_forward.1} parent=1 // pred_fallthru
      _
    // Predicated region
    $region6: #{dqn_forward.1} parent=1 // pred_check
      _
    $region7: #{dqn_forward.1} parent=1 // pred_check_branch
      %21 = sbr.rel (0) target = $region9
    $region8: #{dqn_forward.1} parent=1 // pred_region
      %23 = vsyncadd [#allocation3], 0
      %s24 = sshll.u32 %s1, 4
      %s25 = int_to_ptr.hbm [resolvable:$true] %s24
      %s26 = sshll.u32 [#allocation2], 4
      %s27 = int_to_ptr.vmem [resolvable:$true] %s26
      %32 = dma.hbm_to_vmem [thread:$0]  %s25, 8192, %s27, [#allocation3], 512, 512, 32
    $region9: #{dqn_forward.1} parent=1 // pred_fallthru
      _
    // Predicated region
    $region10: #{dqn_forward.1} parent=1 // pred_check
      _
    $region11: #{dqn_forward.1} parent=1 // pred_check_branch
      %34 = sbr.rel (0) target = $region13
    $region12: #{dqn_forward.1} parent=1 // pred_region
      _
    $region13: #{dqn_forward.1} parent=1 // pred_fallthru
      _
    // Predicated region
    $region14: #{dqn_forward.1} parent=1 // pred_check
      _
    $region15: #{dqn_forward.1} parent=1 // pred_check_branch
      %36 = sbr.rel (0) target = $region17
    $region16: #{dqn_forward.1} parent=1 // pred_region
      %38 = vsyncadd [#allocation5], 0
      %s39 = sshll.u32 %s3, 4
      %s40 = int_to_ptr.hbm [resolvable:$true] %s39
      %s41 = sshll.u32 [#allocation4], 4
      %s42 = int_to_ptr.vmem [resolvable:$true] %s41
      %47 = dma.hbm_to_vmem [thread:$0]  %s40, 16384, %s42, [#allocation5], 512, 512, 32
    $region17: #{dqn_forward.1} parent=1 // pred_fallthru
      _
    // Predicated region
    $region18: #{dqn_forward.1} parent=1 // pred_check
      _
    $region19: #{dqn_forward.1} parent=1 // pred_check_branch
      %49 = sbr.rel (0) target = $region21
    $region20: #{dqn_forward.1} parent=1 // pred_region
      _
    $region21: #{dqn_forward.1} parent=1 // pred_fallthru
      _
    // Predicated region
    $region22: #{dqn_forward.1} parent=1 // pred_check
      _
    $region23: #{dqn_forward.1} parent=1 // pred_check_branch
      %51 = sbr.rel (0) target = $region25
    $region24: #{dqn_forward.1} parent=1 // pred_region
      _
    $region25: #{dqn_forward.1} parent=1 // pred_fallthru
      _
    // Predicated region
    $region26: #{dqn_forward.1} parent=1 // pred_check
      _
    $region27: #{dqn_forward.1} parent=1 // pred_check_branch
      %53 = sbr.rel (0) target = $region29
    $region28: #{dqn_forward.1} parent=1 // pred_region
      %55 = vsyncadd [#allocation5], 0
      %s56 = sshll.u32 %s6, 4
      %s57 = int_to_ptr.hbm [resolvable:$true] %s56
      %s58 = sshll.u32 [#allocation6], 4
      %s59 = int_to_ptr.vmem [resolvable:$true] %s58
      %64 = dma.hbm_to_vmem [thread:$0]  %s57, 4096, %s59, [#allocation5], 64, 64, 4
    $region29: #{dqn_forward.1} parent=1 // pred_fallthru
      _
    // Predicated region
    $region30: #{dqn_forward.1} parent=1 // pred_check
      _
    $region31: #{dqn_forward.1} parent=1 // pred_check_branch
      %66 = sbr.rel (0) target = $region33
    $region32: #{dqn_forward.1} parent=1 // pred_region
      _
    $region33: #{dqn_forward.1} parent=1 // pred_fallthru
      _
    // Predicated region
    $region34: #{dqn_forward.1} parent=1 // pred_check
      _
    $region35: #{dqn_forward.1} parent=1 // pred_check_branch
      %68 = sbr.rel (0) target = $region37
    $region36: #{dqn_forward.1} parent=1 // pred_region
      %70 = vsyncadd [#allocation8], 0
      %s71 = sshll.u32 %s8, 4
      %s72 = int_to_ptr.hbm [resolvable:$true] %s71
      %s73 = sshll.u32 [#allocation7], 4
      %s74 = int_to_ptr.vmem [resolvable:$true] %s73
      %79 = dma.hbm_to_vmem [thread:$0]  %s72, 1024, %s74, [#allocation8], 64, 64, 4
    $region37: #{dqn_forward.1} parent=1 // pred_fallthru
      _
    // Predicated region
    $region38: #{dqn_forward.1} parent=1 // pred_check
      _
    $region39: #{dqn_forward.1} parent=1 // pred_check_branch
      %81 = sbr.rel (0) target = $region41
    $region40: #{dqn_forward.1} parent=1 // pred_region
      _
    $region41: #{dqn_forward.1} parent=1 // pred_fallthru
      _
    // Predicated region
    $region42: #{dqn_forward.1} parent=1 // pred_check
      _
    $region43: #{dqn_forward.1} parent=1 // pred_check_branch
      %83 = sbr.rel (0) target = $region45
    $region44: #{dqn_forward.1} parent=1 // pred_region
      %85 = dma.done [#allocation3], 8192
    $region45: #{dqn_forward.1} parent=1 // pred_fallthru
      _
    // Predicated region
    $region46: #{dqn_forward.1} parent=1 // pred_check
      _
    $region47: #{dqn_forward.1} parent=1 // pred_check_branch
      %87 = sbr.rel (0) target = $region49
    $region48: #{dqn_forward.1} parent=1 // pred_region
      %89 = dma.done [#allocation5], 16384
    $region49: #{dqn_forward.1} parent=1 // pred_fallthru
      _
    // Predicated region
    $region50: #{dqn_forward.1} parent=1 // pred_check
      _
    $region51: #{dqn_forward.1} parent=1 // pred_check_branch
      %91 = sbr.rel (0) target = $region53
    $region52: #{dqn_forward.1} parent=1 // pred_region
      %93 = dma.done [#allocation5], 4096
    $region53: #{dqn_forward.1} parent=1 // pred_fallthru
      _
    // Predicated region
    $region54: #{dqn_forward.1} parent=1 // pred_check
      _
    $region55: #{dqn_forward.1} parent=1 // pred_check_branch
      %95 = sbr.rel (0) target = $region57
    $region56: #{dqn_forward.1} parent=1 // pred_region
      %97 = dma.done [#allocation8], 1024
    $region57: #{dqn_forward.1} parent=1 // pred_fallthru
      _
    %v98 = vld [vmem:[%s0] sm:$0xff]
    %v99 = vld [vmem:[%s0 + $0x8] sm:$0xff]
    %v100 = vpack.c.bf16 %v99, %v98
    %v101 = vld [vmem:[#allocation2] sm:$0xff]
    %v102 = vld [vmem:[#allocation2 + $0x8] sm:$0xff]
    %v103 = vld [vmem:[#allocation2 + $0x10] sm:$0xff]
    %v104 = vld [vmem:[#allocation2 + $0x18] sm:$0xff]
    %v105 = vld [vmem:[#allocation2 + $0x20] sm:$0xff]
    %v106 = vld [vmem:[#allocation2 + $0x28] sm:$0xff]
    %v107 = vld [vmem:[#allocation2 + $0x30] sm:$0xff]
    %v108 = vld [vmem:[#allocation2 + $0x38] sm:$0xff]
    %v109 = vld [vmem:[#allocation2 + $0x40] sm:$0xff]
    %v110 = vld [vmem:[#allocation2 + $0x48] sm:$0xff]
    %v111 = vld [vmem:[#allocation2 + $0x50] sm:$0xff]
    %v112 = vld [vmem:[#allocation2 + $0x58] sm:$0xff]
    %v113 = vld [vmem:[#allocation2 + $0x60] sm:$0xff]
    %v114 = vld [vmem:[#allocation2 + $0x68] sm:$0xff]
    %v115 = vld [vmem:[#allocation2 + $0x70] sm:$0xff]
    %v116 = vld [vmem:[#allocation2 + $0x78] sm:$0xff]
    %v117 = vld [vmem:[#allocation2 + $0x80] sm:$0xff]
    %v118 = vld [vmem:[#allocation2 + $0x88] sm:$0xff]
    %v119 = vld [vmem:[#allocation2 + $0x90] sm:$0xff]
    %v120 = vld [vmem:[#allocation2 + $0x98] sm:$0xff]
    %v121 = vld [vmem:[#allocation2 + $0xa0] sm:$0xff]
    %v122 = vld [vmem:[#allocation2 + $0xa8] sm:$0xff]
    %v123 = vld [vmem:[#allocation2 + $0xb0] sm:$0xff]
    %v124 = vld [vmem:[#allocation2 + $0xb8] sm:$0xff]
    %v125 = vld [vmem:[#allocation2 + $0xc0] sm:$0xff]
    %v126 = vld [vmem:[#allocation2 + $0xc8] sm:$0xff]
    %v127 = vld [vmem:[#allocation2 + $0xd0] sm:$0xff]
    %v128 = vld [vmem:[#allocation2 + $0xd8] sm:$0xff]
    %v129 = vld [vmem:[#allocation2 + $0xe0] sm:$0xff]
    %v130 = vld [vmem:[#allocation2 + $0xe8] sm:$0xff]
    %v131 = vld [vmem:[#allocation2 + $0xf0] sm:$0xff]
    %v132 = vld [vmem:[#allocation2 + $0xf8] sm:$0xff]
    %v133 = vld [vmem:[#allocation2 + $0x100] sm:$0xff]
    %v134 = vld [vmem:[#allocation2 + $0x108] sm:$0xff]
    %v135 = vld [vmem:[#allocation2 + $0x110] sm:$0xff]
    %v136 = vld [vmem:[#allocation2 + $0x118] sm:$0xff]
    %v137 = vld [vmem:[#allocation2 + $0x120] sm:$0xff]
    %v138 = vld [vmem:[#allocation2 + $0x128] sm:$0xff]
    %v139 = vld [vmem:[#allocation2 + $0x130] sm:$0xff]
    %v140 = vld [vmem:[#allocation2 + $0x138] sm:$0xff]
    %v141 = vld [vmem:[#allocation2 + $0x140] sm:$0xff]
    %v142 = vld [vmem:[#allocation2 + $0x148] sm:$0xff]
    %v143 = vld [vmem:[#allocation2 + $0x150] sm:$0xff]
    %v144 = vld [vmem:[#allocation2 + $0x158] sm:$0xff]
    %v145 = vld [vmem:[#allocation2 + $0x160] sm:$0xff]
    %v146 = vld [vmem:[#allocation2 + $0x168] sm:$0xff]
    %v147 = vld [vmem:[#allocation2 + $0x170] sm:$0xff]
    %v148 = vld [vmem:[#allocation2 + $0x178] sm:$0xff]
    %v149 = vld [vmem:[#allocation2 + $0x180] sm:$0xff]
    %v150 = vld [vmem:[#allocation2 + $0x188] sm:$0xff]
    %v151 = vld [vmem:[#allocation2 + $0x190] sm:$0xff]
    %v152 = vld [vmem:[#allocation2 + $0x198] sm:$0xff]
    %v153 = vld [vmem:[#allocation2 + $0x1a0] sm:$0xff]
    %v154 = vld [vmem:[#allocation2 + $0x1a8] sm:$0xff]
    %v155 = vld [vmem:[#allocation2 + $0x1b0] sm:$0xff]
    %v156 = vld [vmem:[#allocation2 + $0x1b8] sm:$0xff]
    %v157 = vld [vmem:[#allocation2 + $0x1c0] sm:$0xff]
    %v158 = vld [vmem:[#allocation2 + $0x1c8] sm:$0xff]
    %v159 = vld [vmem:[#allocation2 + $0x1d0] sm:$0xff]
    %v160 = vld [vmem:[#allocation2 + $0x1d8] sm:$0xff]
    %v161 = vld [vmem:[#allocation2 + $0x1e0] sm:$0xff]
    %v162 = vld [vmem:[#allocation2 + $0x1e8] sm:$0xff]
    %v163 = vld [vmem:[#allocation2 + $0x1f0] sm:$0xff]
    %v164 = vld [vmem:[#allocation2 + $0x1f8] sm:$0xff]
    %v165 = vld [vmem:[%s2] sm:$0xff]
    %v167 = vperm.slane %v165, 0
    %v168 = vperm.slane %v165, 1
    %v169 = vperm.slane %v165, 2
    %v170 = vperm.slane %v165, 3
    %v171 = vperm.slane %v165, 4
    %v172 = vperm.slane %v165, 5
    %v173 = vperm.slane %v165, 6
    %v174 = vperm.slane %v165, 7
    %v247 = vunpack.c.l.b16 %v101
    %v248 = vunpack.c.h.b16 %v101
    %v249 = vunpack.c.l.b16 %v102
    %v250 = vunpack.c.h.b16 %v102
    %v251 = vunpack.c.l.b16 %v103
    %v252 = vunpack.c.h.b16 %v103
    %v253 = vunpack.c.l.b16 %v104
    %v254 = vunpack.c.h.b16 %v104
    %v255 = vunpack.c.l.b16 %v105
    %v256 = vunpack.c.h.b16 %v105
    %v257 = vunpack.c.l.b16 %v106
    %v258 = vunpack.c.h.b16 %v106
    %v259 = vunpack.c.l.b16 %v107
    %v260 = vunpack.c.h.b16 %v107
    %v261 = vunpack.c.l.b16 %v108
    %v262 = vunpack.c.h.b16 %v108
    %v263 = vunpack.c.l.b16 %v109
    %v264 = vunpack.c.h.b16 %v109
    %v265 = vunpack.c.l.b16 %v110
    %v266 = vunpack.c.h.b16 %v110
    %v267 = vunpack.c.l.b16 %v111
    %v268 = vunpack.c.h.b16 %v111
    %v269 = vunpack.c.l.b16 %v112
    %v270 = vunpack.c.h.b16 %v112
    %v271 = vunpack.c.l.b16 %v113
    %v272 = vunpack.c.h.b16 %v113
    %v273 = vunpack.c.l.b16 %v114
    %v274 = vunpack.c.h.b16 %v114
    %v275 = vunpack.c.l.b16 %v115
    %v276 = vunpack.c.h.b16 %v115
    %v277 = vunpack.c.l.b16 %v116
    %v278 = vunpack.c.h.b16 %v116
    %v279 = vunpack.c.l.b16 %v117
    %v280 = vunpack.c.h.b16 %v117
    %v281 = vunpack.c.l.b16 %v118
    %v282 = vunpack.c.h.b16 %v118
    %v283 = vunpack.c.l.b16 %v119
    %v284 = vunpack.c.h.b16 %v119
    %v285 = vunpack.c.l.b16 %v120
    %v286 = vunpack.c.h.b16 %v120
    %v287 = vunpack.c.l.b16 %v121
    %v288 = vunpack.c.h.b16 %v121
    %v289 = vunpack.c.l.b16 %v122
    %v290 = vunpack.c.h.b16 %v122
    %v291 = vunpack.c.l.b16 %v123
    %v292 = vunpack.c.h.b16 %v123
    %v293 = vunpack.c.l.b16 %v124
    %v294 = vunpack.c.h.b16 %v124
    %v295 = vunpack.c.l.b16 %v125
    %v296 = vunpack.c.h.b16 %v125
    %v297 = vunpack.c.l.b16 %v126
    %v298 = vunpack.c.h.b16 %v126
    %v299 = vunpack.c.l.b16 %v127
    %v300 = vunpack.c.h.b16 %v127
    %v301 = vunpack.c.l.b16 %v128
    %v302 = vunpack.c.h.b16 %v128
    %v303 = vunpack.c.l.b16 %v129
    %v304 = vunpack.c.h.b16 %v129
    %v305 = vunpack.c.l.b16 %v130
    %v306 = vunpack.c.h.b16 %v130
    %v307 = vunpack.c.l.b16 %v131
    %v308 = vunpack.c.h.b16 %v131
    %v309 = vunpack.c.l.b16 %v132
    %v310 = vunpack.c.h.b16 %v132
    %v311 = vunpack.c.l.b16 %v133
    %v312 = vunpack.c.h.b16 %v133
    %v313 = vunpack.c.l.b16 %v134
    %v314 = vunpack.c.h.b16 %v134
    %v315 = vunpack.c.l.b16 %v135
    %v316 = vunpack.c.h.b16 %v135
    %v317 = vunpack.c.l.b16 %v136
    %v318 = vunpack.c.h.b16 %v136
    %v319 = vunpack.c.l.b16 %v137
    %v320 = vunpack.c.h.b16 %v137
    %v321 = vunpack.c.l.b16 %v138
    %v322 = vunpack.c.h.b16 %v138
    %v323 = vunpack.c.l.b16 %v139
    %v324 = vunpack.c.h.b16 %v139
    %v325 = vunpack.c.l.b16 %v140
    %v326 = vunpack.c.h.b16 %v140
    %v327 = vunpack.c.l.b16 %v141
    %v328 = vunpack.c.h.b16 %v141
    %v329 = vunpack.c.l.b16 %v142
    %v330 = vunpack.c.h.b16 %v142
    %v331 = vunpack.c.l.b16 %v143
    %v332 = vunpack.c.h.b16 %v143
    %v333 = vunpack.c.l.b16 %v144
    %v334 = vunpack.c.h.b16 %v144
    %v335 = vunpack.c.l.b16 %v145
    %v336 = vunpack.c.h.b16 %v145
    %v337 = vunpack.c.l.b16 %v146
    %v338 = vunpack.c.h.b16 %v146
    %v339 = vunpack.c.l.b16 %v147
    %v340 = vunpack.c.h.b16 %v147
    %v341 = vunpack.c.l.b16 %v148
    %v342 = vunpack.c.h.b16 %v148
    %v343 = vunpack.c.l.b16 %v149
    %v344 = vunpack.c.h.b16 %v149
    %v345 = vunpack.c.l.b16 %v150
    %v346 = vunpack.c.h.b16 %v150
    %v347 = vunpack.c.l.b16 %v151
    %v348 = vunpack.c.h.b16 %v151
    %v349 = vunpack.c.l.b16 %v152
    %v350 = vunpack.c.h.b16 %v152
    %v351 = vunpack.c.l.b16 %v153
    %v352 = vunpack.c.h.b16 %v153
    %v353 = vunpack.c.l.b16 %v154
    %v354 = vunpack.c.h.b16 %v154
    %v355 = vunpack.c.l.b16 %v155
    %v356 = vunpack.c.h.b16 %v155
    %v357 = vunpack.c.l.b16 %v156
    %v358 = vunpack.c.h.b16 %v156
    %v359 = vunpack.c.l.b16 %v157
    %v360 = vunpack.c.h.b16 %v157
    %v361 = vunpack.c.l.b16 %v158
    %v362 = vunpack.c.h.b16 %v158
    %v363 = vunpack.c.l.b16 %v159
    %v364 = vunpack.c.h.b16 %v159
    %v365 = vunpack.c.l.b16 %v160
    %v366 = vunpack.c.h.b16 %v160
    %v367 = vunpack.c.l.b16 %v161
    %v368 = vunpack.c.h.b16 %v161
    %v369 = vunpack.c.l.b16 %v162
    %v370 = vunpack.c.h.b16 %v162
    %v371 = vunpack.c.l.b16 %v163
    %v372 = vunpack.c.h.b16 %v163
    %v373 = vunpack.c.l.b16 %v164
    %v374 = vunpack.c.h.b16 %v164
    %v375 = vpack.c.b16 %v255, %v247
    %v376 = vpack.c.b16 %v256, %v248
    %v377 = vpack.c.b16 %v257, %v249
    %v378 = vpack.c.b16 %v258, %v250
    %v379 = vpack.c.b16 %v259, %v251
    %v380 = vpack.c.b16 %v260, %v252
    %v381 = vpack.c.b16 %v261, %v253
    %v382 = vpack.c.b16 %v262, %v254
    %v383 = vpack.c.b16 %v271, %v263
    %v384 = vpack.c.b16 %v272, %v264
    %v385 = vpack.c.b16 %v273, %v265
    %v386 = vpack.c.b16 %v274, %v266
    %v387 = vpack.c.b16 %v275, %v267
    %v388 = vpack.c.b16 %v276, %v268
    %v389 = vpack.c.b16 %v277, %v269
    %v390 = vpack.c.b16 %v278, %v270
    %v391 = vpack.c.b16 %v287, %v279
    %v392 = vpack.c.b16 %v288, %v280
    %v393 = vpack.c.b16 %v289, %v281
    %v394 = vpack.c.b16 %v290, %v282
    %v395 = vpack.c.b16 %v291, %v283
    %v396 = vpack.c.b16 %v292, %v284
    %v397 = vpack.c.b16 %v293, %v285
    %v398 = vpack.c.b16 %v294, %v286
    %v399 = vpack.c.b16 %v303, %v295
    %v400 = vpack.c.b16 %v304, %v296
    %v401 = vpack.c.b16 %v305, %v297
    %v402 = vpack.c.b16 %v306, %v298
    %v403 = vpack.c.b16 %v307, %v299
    %v404 = vpack.c.b16 %v308, %v300
    %v405 = vpack.c.b16 %v309, %v301
    %v406 = vpack.c.b16 %v310, %v302
    %v407 = vpack.c.b16 %v319, %v311
    %v408 = vpack.c.b16 %v320, %v312
    %v409 = vpack.c.b16 %v321, %v313
    %v410 = vpack.c.b16 %v322, %v314
    %v411 = vpack.c.b16 %v323, %v315
    %v412 = vpack.c.b16 %v324, %v316
    %v413 = vpack.c.b16 %v325, %v317
    %v414 = vpack.c.b16 %v326, %v318
    %v415 = vpack.c.b16 %v335, %v327
    %v416 = vpack.c.b16 %v336, %v328
    %v417 = vpack.c.b16 %v337, %v329
    %v418 = vpack.c.b16 %v338, %v330
    %v419 = vpack.c.b16 %v339, %v331
    %v420 = vpack.c.b16 %v340, %v332
    %v421 = vpack.c.b16 %v341, %v333
    %v422 = vpack.c.b16 %v342, %v334
    %v423 = vpack.c.b16 %v351, %v343
    %v424 = vpack.c.b16 %v352, %v344
    %v425 = vpack.c.b16 %v353, %v345
    %v426 = vpack.c.b16 %v354, %v346
    %v427 = vpack.c.b16 %v355, %v347
    %v428 = vpack.c.b16 %v356, %v348
    %v429 = vpack.c.b16 %v357, %v349
    %v430 = vpack.c.b16 %v358, %v350
    %v431 = vpack.c.b16 %v367, %v359
    %v432 = vpack.c.b16 %v368, %v360
    %v433 = vpack.c.b16 %v369, %v361
    %v434 = vpack.c.b16 %v370, %v362
    %v435 = vpack.c.b16 %v371, %v363
    %v436 = vpack.c.b16 %v372, %v364
    %v437 = vpack.c.b16 %v373, %v365
    %v438 = vpack.c.b16 %v374, %v366
    %503 = vmatpush.bf16.msra.mxu0 %v431
    %504 = vmatpush.bf16.msra.mxu0 %v423
    %505 = vmatpush.bf16.msra.mxu0 %v415
    %506 = vmatpush.bf16.msra.mxu0 %v407
    %507 = vmatpush.bf16.msra.mxu0 %v399
    %508 = vmatpush.bf16.msra.mxu0 %v391
    %509 = vmatpush.bf16.msra.mxu0 %v383
    %510 = vmatpush.bf16.msra.mxu0 %v375
    %511 = vmatmul.bf16.gmra.mxu0 %v100
    %v512 = vpop.f32.mrf.mxu0
    %v513 = vadd.f32 %v167, %v512
    %v514 = vpop.f32.mrf.mxu0
    %v515 = vadd.f32 %v167, %v514
    %516 = vdwg.mxu0
    %517 = vmatpush.bf16.msra.mxu0 %v432
    %518 = vmatpush.bf16.msra.mxu0 %v424
    %519 = vmatpush.bf16.msra.mxu0 %v416
    %520 = vmatpush.bf16.msra.mxu0 %v408
    %521 = vmatpush.bf16.msra.mxu0 %v400
    %522 = vmatpush.bf16.msra.mxu0 %v392
    %523 = vmatpush.bf16.msra.mxu0 %v384
    %524 = vmatpush.bf16.msra.mxu0 %v376
    %525 = vmatmul.bf16.gmra.mxu0 %v100
    %v526 = vpop.f32.mrf.mxu0
    %v527 = vadd.f32 %v168, %v526
    %v528 = vpop.f32.mrf.mxu0
    %v529 = vadd.f32 %v168, %v528
    %530 = vdwg.mxu0
    %531 = vmatpush.bf16.msra.mxu0 %v433
    %532 = vmatpush.bf16.msra.mxu0 %v425
    %533 = vmatpush.bf16.msra.mxu0 %v417
    %534 = vmatpush.bf16.msra.mxu0 %v409
    %535 = vmatpush.bf16.msra.mxu0 %v401
    %536 = vmatpush.bf16.msra.mxu0 %v393
    %537 = vmatpush.bf16.msra.mxu0 %v385
    %538 = vmatpush.bf16.msra.mxu0 %v377
    %539 = vmatmul.bf16.gmra.mxu0 %v100
    %v540 = vpop.f32.mrf.mxu0
    %v541 = vadd.f32 %v169, %v540
    %v542 = vpop.f32.mrf.mxu0
    %v543 = vadd.f32 %v169, %v542
    %544 = vdwg.mxu0
    %545 = vmatpush.bf16.msra.mxu0 %v434
    %546 = vmatpush.bf16.msra.mxu0 %v426
    %547 = vmatpush.bf16.msra.mxu0 %v418
    %548 = vmatpush.bf16.msra.mxu0 %v410
    %549 = vmatpush.bf16.msra.mxu0 %v402
    %550 = vmatpush.bf16.msra.mxu0 %v394
    %551 = vmatpush.bf16.msra.mxu0 %v386
    %552 = vmatpush.bf16.msra.mxu0 %v378
    %553 = vmatmul.bf16.gmra.mxu0 %v100
    %v554 = vpop.f32.mrf.mxu0
    %v555 = vadd.f32 %v170, %v554
    %v556 = vpop.f32.mrf.mxu0
    %v557 = vadd.f32 %v170, %v556
    %558 = vdwg.mxu0
    %559 = vmatpush.bf16.msra.mxu0 %v435
    %560 = vmatpush.bf16.msra.mxu0 %v427
    %561 = vmatpush.bf16.msra.mxu0 %v419
    %562 = vmatpush.bf16.msra.mxu0 %v411
    %563 = vmatpush.bf16.msra.mxu0 %v403
    %564 = vmatpush.bf16.msra.mxu0 %v395
    %565 = vmatpush.bf16.msra.mxu0 %v387
    %566 = vmatpush.bf16.msra.mxu0 %v379
    %567 = vmatmul.bf16.gmra.mxu0 %v100
    %v568 = vpop.f32.mrf.mxu0
    %v569 = vadd.f32 %v171, %v568
    %v570 = vpop.f32.mrf.mxu0
    %v571 = vadd.f32 %v171, %v570
    %572 = vdwg.mxu0
    %573 = vmatpush.bf16.msra.mxu0 %v436
    %574 = vmatpush.bf16.msra.mxu0 %v428
    %575 = vmatpush.bf16.msra.mxu0 %v420
    %576 = vmatpush.bf16.msra.mxu0 %v412
    %577 = vmatpush.bf16.msra.mxu0 %v404
    %578 = vmatpush.bf16.msra.mxu0 %v396
    %579 = vmatpush.bf16.msra.mxu0 %v388
    %580 = vmatpush.bf16.msra.mxu0 %v380
    %581 = vmatmul.bf16.gmra.mxu0 %v100
    %v582 = vpop.f32.mrf.mxu0
    %v583 = vadd.f32 %v172, %v582
    %v584 = vpop.f32.mrf.mxu0
    %v585 = vadd.f32 %v172, %v584
    %586 = vdwg.mxu0
    %587 = vmatpush.bf16.msra.mxu0 %v437
    %588 = vmatpush.bf16.msra.mxu0 %v429
    %589 = vmatpush.bf16.msra.mxu0 %v421
    %590 = vmatpush.bf16.msra.mxu0 %v413
    %591 = vmatpush.bf16.msra.mxu0 %v405
    %592 = vmatpush.bf16.msra.mxu0 %v397
    %593 = vmatpush.bf16.msra.mxu0 %v389
    %594 = vmatpush.bf16.msra.mxu0 %v381
    %595 = vmatmul.bf16.gmra.mxu0 %v100
    %v596 = vpop.f32.mrf.mxu0
    %v597 = vadd.f32 %v173, %v596
    %v598 = vpop.f32.mrf.mxu0
    %v599 = vadd.f32 %v173, %v598
    %600 = vdwg.mxu0
    %601 = vmatpush.bf16.msra.mxu0 %v438
    %602 = vmatpush.bf16.msra.mxu0 %v430
    %603 = vmatpush.bf16.msra.mxu0 %v422
    %604 = vmatpush.bf16.msra.mxu0 %v414
    %605 = vmatpush.bf16.msra.mxu0 %v406
    %606 = vmatpush.bf16.msra.mxu0 %v398
    %607 = vmatpush.bf16.msra.mxu0 %v390
    %608 = vmatpush.bf16.msra.mxu0 %v382
    %609 = vmatmul.bf16.gmra.mxu0 %v100
    %v610 = vpop.f32.mrf.mxu0
    %v611 = vadd.f32 %v174, %v610
    %v612 = vpop.f32.mrf.mxu0
    %v613 = vadd.f32 %v174, %v612
    %614 = vdwg.mxu0
    %v615 = vmax.f32 %v513, 0.0
    %v616 = vmax.f32 %v527, 0.0
    %v617 = vmax.f32 %v541, 0.0
    %v618 = vmax.f32 %v555, 0.0
    %v619 = vmax.f32 %v569, 0.0
    %v620 = vmax.f32 %v583, 0.0
    %v621 = vmax.f32 %v597, 0.0
    %v622 = vmax.f32 %v611, 0.0
    %v623 = vmax.f32 %v515, 0.0
    %v624 = vmax.f32 %v529, 0.0
    %v625 = vmax.f32 %v543, 0.0
    %v626 = vmax.f32 %v557, 0.0
    %v627 = vmax.f32 %v571, 0.0
    %v628 = vmax.f32 %v585, 0.0
    %v629 = vmax.f32 %v599, 0.0
    %v630 = vmax.f32 %v613, 0.0
    %v631 = vpack.c.bf16 %v623, %v615
    %v632 = vpack.c.bf16 %v624, %v616
    %v633 = vpack.c.bf16 %v625, %v617
    %v634 = vpack.c.bf16 %v626, %v618
    %v635 = vpack.c.bf16 %v627, %v619
    %v636 = vpack.c.bf16 %v628, %v620
    %v637 = vpack.c.bf16 %v629, %v621
    %v638 = vpack.c.bf16 %v630, %v622
    %v639 = vld [vmem:[#allocation4] sm:$0xff]
    %v640 = vld [vmem:[#allocation4 + $0x8] sm:$0xff]
    %v641 = vld [vmem:[#allocation4 + $0x10] sm:$0xff]
    %v642 = vld [vmem:[#allocation4 + $0x18] sm:$0xff]
    %v643 = vld [vmem:[#allocation4 + $0x20] sm:$0xff]
    %v644 = vld [vmem:[#allocation4 + $0x28] sm:$0xff]
    %v645 = vld [vmem:[#allocation4 + $0x30] sm:$0xff]
    %v646 = vld [vmem:[#allocation4 + $0x38] sm:$0xff]
    %v647 = vld [vmem:[#allocation4 + $0x40] sm:$0xff]
    %v648 = vld [vmem:[#allocation4 + $0x48] sm:$0xff]
    %v649 = vld [vmem:[#allocation4 + $0x50] sm:$0xff]
    %v650 = vld [vmem:[#allocation4 + $0x58] sm:$0xff]
    %v651 = vld [vmem:[#allocation4 + $0x60] sm:$0xff]
    %v652 = vld [vmem:[#allocation4 + $0x68] sm:$0xff]
    %v653 = vld [vmem:[#allocation4 + $0x70] sm:$0xff]
    %v654 = vld [vmem:[#allocation4 + $0x78] sm:$0xff]
    %v655 = vld [vmem:[#allocation4 + $0x80] sm:$0xff]
    %v656 = vld [vmem:[#allocation4 + $0x88] sm:$0xff]
    %v657 = vld [vmem:[#allocation4 + $0x90] sm:$0xff]
    %v658 = vld [vmem:[#allocation4 + $0x98] sm:$0xff]
    %v659 = vld [vmem:[#allocation4 + $0xa0] sm:$0xff]
    %v660 = vld [vmem:[#allocation4 + $0xa8] sm:$0xff]
    %v661 = vld [vmem:[#allocation4 + $0xb0] sm:$0xff]
    %v662 = vld [vmem:[#allocation4 + $0xb8] sm:$0xff]
    %v663 = vld [vmem:[#allocation4 + $0xc0] sm:$0xff]
    %v664 = vld [vmem:[#allocation4 + $0xc8] sm:$0xff]
    %v665 = vld [vmem:[#allocation4 + $0xd0] sm:$0xff]
    %v666 = vld [vmem:[#allocation4 + $0xd8] sm:$0xff]
    %v667 = vld [vmem:[#allocation4 + $0xe0] sm:$0xff]
    %v668 = vld [vmem:[#allocation4 + $0xe8] sm:$0xff]
    %v669 = vld [vmem:[#allocation4 + $0xf0] sm:$0xff]
    %v670 = vld [vmem:[#allocation4 + $0xf8] sm:$0xff]
    %v671 = vld [vmem:[#allocation4 + $0x100] sm:$0xff]
    %v672 = vld [vmem:[#allocation4 + $0x108] sm:$0xff]
    %v673 = vld [vmem:[#allocation4 + $0x110] sm:$0xff]
    %v674 = vld [vmem:[#allocation4 + $0x118] sm:$0xff]
    %v675 = vld [vmem:[#allocation4 + $0x120] sm:$0xff]
    %v676 = vld [vmem:[#allocation4 + $0x128] sm:$0xff]
    %v677 = vld [vmem:[#allocation4 + $0x130] sm:$0xff]
    %v678 = vld [vmem:[#allocation4 + $0x138] sm:$0xff]
    %v679 = vld [vmem:[#allocation4 + $0x140] sm:$0xff]
    %v680 = vld [vmem:[#allocation4 + $0x148] sm:$0xff]
    %v681 = vld [vmem:[#allocation4 + $0x150] sm:$0xff]
    %v682 = vld [vmem:[#allocation4 + $0x158] sm:$0xff]
    %v683 = vld [vmem:[#allocation4 + $0x160] sm:$0xff]
    %v684 = vld [vmem:[#allocation4 + $0x168] sm:$0xff]
    %v685 = vld [vmem:[#allocation4 + $0x170] sm:$0xff]
    %v686 = vld [vmem:[#allocation4 + $0x178] sm:$0xff]
    %v687 = vld [vmem:[#allocation4 + $0x180] sm:$0xff]
    %v688 = vld [vmem:[#allocation4 + $0x188] sm:$0xff]
    %v689 = vld [vmem:[#allocation4 + $0x190] sm:$0xff]
    %v690 = vld [vmem:[#allocation4 + $0x198] sm:$0xff]
    %v691 = vld [vmem:[#allocation4 + $0x1a0] sm:$0xff]
    %v692 = vld [vmem:[#allocation4 + $0x1a8] sm:$0xff]
    %v693 = vld [vmem:[#allocation4 + $0x1b0] sm:$0xff]
    %v694 = vld [vmem:[#allocation4 + $0x1b8] sm:$0xff]
    %v695 = vld [vmem:[#allocation4 + $0x1c0] sm:$0xff]
    %v696 = vld [vmem:[#allocation4 + $0x1c8] sm:$0xff]
    %v697 = vld [vmem:[#allocation4 + $0x1d0] sm:$0xff]
    %v698 = vld [vmem:[#allocation4 + $0x1d8] sm:$0xff]
    %v699 = vld [vmem:[#allocation4 + $0x1e0] sm:$0xff]
    %v700 = vld [vmem:[#allocation4 + $0x1e8] sm:$0xff]
    %v701 = vld [vmem:[#allocation4 + $0x1f0] sm:$0xff]
    %v702 = vld [vmem:[#allocation4 + $0x1f8] sm:$0xff]
    %v703 = vld [vmem:[#allocation4 + $0x200] sm:$0xff]
    %v704 = vld [vmem:[#allocation4 + $0x208] sm:$0xff]
    %v705 = vld [vmem:[#allocation4 + $0x210] sm:$0xff]
    %v706 = vld [vmem:[#allocation4 + $0x218] sm:$0xff]
    %v707 = vld [vmem:[#allocation4 + $0x220] sm:$0xff]
    %v708 = vld [vmem:[#allocation4 + $0x228] sm:$0xff]
    %v709 = vld [vmem:[#allocation4 + $0x230] sm:$0xff]
    %v710 = vld [vmem:[#allocation4 + $0x238] sm:$0xff]
    %v711 = vld [vmem:[#allocation4 + $0x240] sm:$0xff]
    %v712 = vld [vmem:[#allocation4 + $0x248] sm:$0xff]
    %v713 = vld [vmem:[#allocation4 + $0x250] sm:$0xff]
    %v714 = vld [vmem:[#allocation4 + $0x258] sm:$0xff]
    %v715 = vld [vmem:[#allocation4 + $0x260] sm:$0xff]
    %v716 = vld [vmem:[#allocation4 + $0x268] sm:$0xff]
    %v717 = vld [vmem:[#allocation4 + $0x270] sm:$0xff]
    %v718 = vld [vmem:[#allocation4 + $0x278] sm:$0xff]
    %v719 = vld [vmem:[#allocation4 + $0x280] sm:$0xff]
    %v720 = vld [vmem:[#allocation4 + $0x288] sm:$0xff]
    %v721 = vld [vmem:[#allocation4 + $0x290] sm:$0xff]
    %v722 = vld [vmem:[#allocation4 + $0x298] sm:$0xff]
    %v723 = vld [vmem:[#allocation4 + $0x2a0] sm:$0xff]
    %v724 = vld [vmem:[#allocation4 + $0x2a8] sm:$0xff]
    %v725 = vld [vmem:[#allocation4 + $0x2b0] sm:$0xff]
    %v726 = vld [vmem:[#allocation4 + $0x2b8] sm:$0xff]
    %v727 = vld [vmem:[#allocation4 + $0x2c0] sm:$0xff]
    %v728 = vld [vmem:[#allocation4 + $0x2c8] sm:$0xff]
    %v729 = vld [vmem:[#allocation4 + $0x2d0] sm:$0xff]
    %v730 = vld [vmem:[#allocation4 + $0x2d8] sm:$0xff]
    %v731 = vld [vmem:[#allocation4 + $0x2e0] sm:$0xff]
    %v732 = vld [vmem:[#allocation4 + $0x2e8] sm:$0xff]
    %v733 = vld [vmem:[#allocation4 + $0x2f0] sm:$0xff]
    %v734 = vld [vmem:[#allocation4 + $0x2f8] sm:$0xff]
    %v735 = vld [vmem:[#allocation4 + $0x300] sm:$0xff]
    %v736 = vld [vmem:[#allocation4 + $0x308] sm:$0xff]
    %v737 = vld [vmem:[#allocation4 + $0x310] sm:$0xff]
    %v738 = vld [vmem:[#allocation4 + $0x318] sm:$0xff]
    %v739 = vld [vmem:[#allocation4 + $0x320] sm:$0xff]
    %v740 = vld [vmem:[#allocation4 + $0x328] sm:$0xff]
    %v741 = vld [vmem:[#allocation4 + $0x330] sm:$0xff]
    %v742 = vld [vmem:[#allocation4 + $0x338] sm:$0xff]
    %v743 = vld [vmem:[#allocation4 + $0x340] sm:$0xff]
    %v744 = vld [vmem:[#allocation4 + $0x348] sm:$0xff]
    %v745 = vld [vmem:[#allocation4 + $0x350] sm:$0xff]
    %v746 = vld [vmem:[#allocation4 + $0x358] sm:$0xff]
    %v747 = vld [vmem:[#allocation4 + $0x360] sm:$0xff]
    %v748 = vld [vmem:[#allocation4 + $0x368] sm:$0xff]
    %v749 = vld [vmem:[#allocation4 + $0x370] sm:$0xff]
    %v750 = vld [vmem:[#allocation4 + $0x378] sm:$0xff]
    %v751 = vld [vmem:[#allocation4 + $0x380] sm:$0xff]
    %v752 = vld [vmem:[#allocation4 + $0x388] sm:$0xff]
    %v753 = vld [vmem:[#allocation4 + $0x390] sm:$0xff]
    %v754 = vld [vmem:[#allocation4 + $0x398] sm:$0xff]
    %v755 = vld [vmem:[#allocation4 + $0x3a0] sm:$0xff]
    %v756 = vld [vmem:[#allocation4 + $0x3a8] sm:$0xff]
    %v757 = vld [vmem:[#allocation4 + $0x3b0] sm:$0xff]
    %v758 = vld [vmem:[#allocation4 + $0x3b8] sm:$0xff]
    %v759 = vld [vmem:[#allocation4 + $0x3c0] sm:$0xff]
    %v760 = vld [vmem:[#allocation4 + $0x3c8] sm:$0xff]
    %v761 = vld [vmem:[#allocation4 + $0x3d0] sm:$0xff]
    %v762 = vld [vmem:[#allocation4 + $0x3d8] sm:$0xff]
    %v763 = vld [vmem:[#allocation4 + $0x3e0] sm:$0xff]
    %v764 = vld [vmem:[#allocation4 + $0x3e8] sm:$0xff]
    %v765 = vld [vmem:[#allocation4 + $0x3f0] sm:$0xff]
    %v766 = vld [vmem:[#allocation4 + $0x3f8] sm:$0xff]
    %v767 = vunpack.c.0.s8 %v639
    %v768 = vunpack.c.0.s8 %v640
    %v769 = vunpack.c.0.s8 %v641
    %v770 = vunpack.c.0.s8 %v642
    %v771 = vunpack.c.1.s8 %v639
    %v772 = vunpack.c.1.s8 %v640
    %v773 = vunpack.c.1.s8 %v641
    %v774 = vunpack.c.1.s8 %v642
    %v775 = vunpack.c.2.s8 %v639
    %v776 = vunpack.c.2.s8 %v640
    %v777 = vunpack.c.2.s8 %v641
    %v778 = vunpack.c.2.s8 %v642
    %v779 = vunpack.c.3.s8 %v639
    %v780 = vunpack.c.3.s8 %v640
    %v781 = vunpack.c.3.s8 %v641
    %v782 = vunpack.c.3.s8 %v642
    %v783 = vunpack.c.0.s8 %v643
    %v784 = vunpack.c.0.s8 %v644
    %v785 = vunpack.c.0.s8 %v645
    %v786 = vunpack.c.0.s8 %v646
    %v787 = vunpack.c.1.s8 %v643
    %v788 = vunpack.c.1.s8 %v644
    %v789 = vunpack.c.1.s8 %v645
    %v790 = vunpack.c.1.s8 %v646
    %v791 = vunpack.c.2.s8 %v643
    %v792 = vunpack.c.2.s8 %v644
    %v793 = vunpack.c.2.s8 %v645
    %v794 = vunpack.c.2.s8 %v646
    %v795 = vunpack.c.3.s8 %v643
    %v796 = vunpack.c.3.s8 %v644
    %v797 = vunpack.c.3.s8 %v645
    %v798 = vunpack.c.3.s8 %v646
    %v799 = vunpack.c.0.s8 %v647
    %v800 = vunpack.c.0.s8 %v648
    %v801 = vunpack.c.0.s8 %v649
    %v802 = vunpack.c.0.s8 %v650
    %v803 = vunpack.c.1.s8 %v647
    %v804 = vunpack.c.1.s8 %v648
    %v805 = vunpack.c.1.s8 %v649
    %v806 = vunpack.c.1.s8 %v650
    %v807 = vunpack.c.2.s8 %v647
    %v808 = vunpack.c.2.s8 %v648
    %v809 = vunpack.c.2.s8 %v649
    %v810 = vunpack.c.2.s8 %v650
    %v811 = vunpack.c.3.s8 %v647
    %v812 = vunpack.c.3.s8 %v648
    %v813 = vunpack.c.3.s8 %v649
    %v814 = vunpack.c.3.s8 %v650
    %v815 = vunpack.c.0.s8 %v651
    %v816 = vunpack.c.0.s8 %v652
    %v817 = vunpack.c.0.s8 %v653
    %v818 = vunpack.c.0.s8 %v654
    %v819 = vunpack.c.1.s8 %v651
    %v820 = vunpack.c.1.s8 %v652
    %v821 = vunpack.c.1.s8 %v653
    %v822 = vunpack.c.1.s8 %v654
    %v823 = vunpack.c.2.s8 %v651
    %v824 = vunpack.c.2.s8 %v652
    %v825 = vunpack.c.2.s8 %v653
    %v826 = vunpack.c.2.s8 %v654
    %v827 = vunpack.c.3.s8 %v651
    %v828 = vunpack.c.3.s8 %v652
    %v829 = vunpack.c.3.s8 %v653
    %v830 = vunpack.c.3.s8 %v654
    %v831 = vunpack.c.0.s8 %v655
    %v832 = vunpack.c.0.s8 %v656
    %v833 = vunpack.c.0.s8 %v657
    %v834 = vunpack.c.0.s8 %v658
    %v835 = vunpack.c.1.s8 %v655
    %v836 = vunpack.c.1.s8 %v656
    %v837 = vunpack.c.1.s8 %v657
    %v838 = vunpack.c.1.s8 %v658
    %v839 = vunpack.c.2.s8 %v655
    %v840 = vunpack.c.2.s8 %v656
    %v841 = vunpack.c.2.s8 %v657
    %v842 = vunpack.c.2.s8 %v658
    %v843 = vunpack.c.3.s8 %v655
    %v844 = vunpack.c.3.s8 %v656
    %v845 = vunpack.c.3.s8 %v657
    %v846 = vunpack.c.3.s8 %v658
    %v847 = vunpack.c.0.s8 %v659
    %v848 = vunpack.c.0.s8 %v660
    %v849 = vunpack.c.0.s8 %v661
    %v850 = vunpack.c.0.s8 %v662
    %v851 = vunpack.c.1.s8 %v659
    %v852 = vunpack.c.1.s8 %v660
    %v853 = vunpack.c.1.s8 %v661
    %v854 = vunpack.c.1.s8 %v662
    %v855 = vunpack.c.2.s8 %v659
    %v856 = vunpack.c.2.s8 %v660
    %v857 = vunpack.c.2.s8 %v661
    %v858 = vunpack.c.2.s8 %v662
    %v859 = vunpack.c.3.s8 %v659
    %v860 = vunpack.c.3.s8 %v660
    %v861 = vunpack.c.3.s8 %v661
    %v862 = vunpack.c.3.s8 %v662
    %v863 = vunpack.c.0.s8 %v663
    %v864 = vunpack.c.0.s8 %v664
    %v865 = vunpack.c.0.s8 %v665
    %v866 = vunpack.c.0.s8 %v666
    %v867 = vunpack.c.1.s8 %v663
    %v868 = vunpack.c.1.s8 %v664
    %v869 = vunpack.c.1.s8 %v665
    %v870 = vunpack.c.1.s8 %v666
    %v871 = vunpack.c.2.s8 %v663
    %v872 = vunpack.c.2.s8 %v664
    %v873 = vunpack.c.2.s8 %v665
    %v874 = vunpack.c.2.s8 %v666
    %v875 = vunpack.c.3.s8 %v663
    %v876 = vunpack.c.3.s8 %v664
    %v877 = vunpack.c.3.s8 %v665
    %v878 = vunpack.c.3.s8 %v666
    %v879 = vunpack.c.0.s8 %v667
    %v880 = vunpack.c.0.s8 %v668
    %v881 = vunpack.c.0.s8 %v669
    %v882 = vunpack.c.0.s8 %v670
    %v883 = vunpack.c.1.s8 %v667
    %v884 = vunpack.c.1.s8 %v668
    %v885 = vunpack.c.1.s8 %v669
    %v886 = vunpack.c.1.s8 %v670
    %v887 = vunpack.c.2.s8 %v667
    %v888 = vunpack.c.2.s8 %v668
    %v889 = vunpack.c.2.s8 %v669
    %v890 = vunpack.c.2.s8 %v670
    %v891 = vunpack.c.3.s8 %v667
    %v892 = vunpack.c.3.s8 %v668
    %v893 = vunpack.c.3.s8 %v669
    %v894 = vunpack.c.3.s8 %v670
    %v895 = vunpack.c.0.s8 %v671
    %v896 = vunpack.c.0.s8 %v672
    %v897 = vunpack.c.0.s8 %v673
    %v898 = vunpack.c.0.s8 %v674
    %v899 = vunpack.c.1.s8 %v671
    %v900 = vunpack.c.1.s8 %v672
    %v901 = vunpack.c.1.s8 %v673
    %v902 = vunpack.c.1.s8 %v674
    %v903 = vunpack.c.2.s8 %v671
    %v904 = vunpack.c.2.s8 %v672
    %v905 = vunpack.c.2.s8 %v673
    %v906 = vunpack.c.2.s8 %v674
    %v907 = vunpack.c.3.s8 %v671
    %v908 = vunpack.c.3.s8 %v672
    %v909 = vunpack.c.3.s8 %v673
    %v910 = vunpack.c.3.s8 %v674
    %v911 = vunpack.c.0.s8 %v675
    %v912 = vunpack.c.0.s8 %v676
    %v913 = vunpack.c.0.s8 %v677
    %v914 = vunpack.c.0.s8 %v678
    %v915 = vunpack.c.1.s8 %v675
    %v916 = vunpack.c.1.s8 %v676
    %v917 = vunpack.c.1.s8 %v677
    %v918 = vunpack.c.1.s8 %v678
    %v919 = vunpack.c.2.s8 %v675
    %v920 = vunpack.c.2.s8 %v676
    %v921 = vunpack.c.2.s8 %v677
    %v922 = vunpack.c.2.s8 %v678
    %v923 = vunpack.c.3.s8 %v675
    %v924 = vunpack.c.3.s8 %v676
    %v925 = vunpack.c.3.s8 %v677
    %v926 = vunpack.c.3.s8 %v678
    %v927 = vunpack.c.0.s8 %v679
    %v928 = vunpack.c.0.s8 %v680
    %v929 = vunpack.c.0.s8 %v681
    %v930 = vunpack.c.0.s8 %v682
    %v931 = vunpack.c.1.s8 %v679
    %v932 = vunpack.c.1.s8 %v680
    %v933 = vunpack.c.1.s8 %v681
    %v934 = vunpack.c.1.s8 %v682
    %v935 = vunpack.c.2.s8 %v679
    %v936 = vunpack.c.2.s8 %v680
    %v937 = vunpack.c.2.s8 %v681
    %v938 = vunpack.c.2.s8 %v682
    %v939 = vunpack.c.3.s8 %v679
    %v940 = vunpack.c.3.s8 %v680
    %v941 = vunpack.c.3.s8 %v681
    %v942 = vunpack.c.3.s8 %v682
    %v943 = vunpack.c.0.s8 %v683
    %v944 = vunpack.c.0.s8 %v684
    %v945 = vunpack.c.0.s8 %v685
    %v946 = vunpack.c.0.s8 %v686
    %v947 = vunpack.c.1.s8 %v683
    %v948 = vunpack.c.1.s8 %v684
    %v949 = vunpack.c.1.s8 %v685
    %v950 = vunpack.c.1.s8 %v686
    %v951 = vunpack.c.2.s8 %v683
    %v952 = vunpack.c.2.s8 %v684
    %v953 = vunpack.c.2.s8 %v685
    %v954 = vunpack.c.2.s8 %v686
    %v955 = vunpack.c.3.s8 %v683
    %v956 = vunpack.c.3.s8 %v684
    %v957 = vunpack.c.3.s8 %v685
    %v958 = vunpack.c.3.s8 %v686
    %v959 = vunpack.c.0.s8 %v687
    %v960 = vunpack.c.0.s8 %v688
    %v961 = vunpack.c.0.s8 %v689
    %v962 = vunpack.c.0.s8 %v690
    %v963 = vunpack.c.1.s8 %v687
    %v964 = vunpack.c.1.s8 %v688
    %v965 = vunpack.c.1.s8 %v689
    %v966 = vunpack.c.1.s8 %v690
    %v967 = vunpack.c.2.s8 %v687
    %v968 = vunpack.c.2.s8 %v688
    %v969 = vunpack.c.2.s8 %v689
    %v970 = vunpack.c.2.s8 %v690
    %v971 = vunpack.c.3.s8 %v687
    %v972 = vunpack.c.3.s8 %v688
    %v973 = vunpack.c.3.s8 %v689
    %v974 = vunpack.c.3.s8 %v690
    %v975 = vunpack.c.0.s8 %v691
    %v976 = vunpack.c.0.s8 %v692
    %v977 = vunpack.c.0.s8 %v693
    %v978 = vunpack.c.0.s8 %v694
    %v979 = vunpack.c.1.s8 %v691
    %v980 = vunpack.c.1.s8 %v692
    %v981 = vunpack.c.1.s8 %v693
    %v982 = vunpack.c.1.s8 %v694
    %v983 = vunpack.c.2.s8 %v691
    %v984 = vunpack.c.2.s8 %v692
    %v985 = vunpack.c.2.s8 %v693
    %v986 = vunpack.c.2.s8 %v694
    %v987 = vunpack.c.3.s8 %v691
    %v988 = vunpack.c.3.s8 %v692
    %v989 = vunpack.c.3.s8 %v693
    %v990 = vunpack.c.3.s8 %v694
    %v991 = vunpack.c.0.s8 %v695
    %v992 = vunpack.c.0.s8 %v696
    %v993 = vunpack.c.0.s8 %v697
    %v994 = vunpack.c.0.s8 %v698
    %v995 = vunpack.c.1.s8 %v695
    %v996 = vunpack.c.1.s8 %v696
    %v997 = vunpack.c.1.s8 %v697
    %v998 = vunpack.c.1.s8 %v698
    %v999 = vunpack.c.2.s8 %v695
    %v1000 = vunpack.c.2.s8 %v696
    %v1001 = vunpack.c.2.s8 %v697
    %v1002 = vunpack.c.2.s8 %v698
    %v1003 = vunpack.c.3.s8 %v695
    %v1004 = vunpack.c.3.s8 %v696
    %v1005 = vunpack.c.3.s8 %v697
    %v1006 = vunpack.c.3.s8 %v698
    %v1007 = vunpack.c.0.s8 %v699
    %v1008 = vunpack.c.0.s8 %v700
    %v1009 = vunpack.c.0.s8 %v701
    %v1010 = vunpack.c.0.s8 %v702
    %v1011 = vunpack.c.1.s8 %v699
    %v1012 = vunpack.c.1.s8 %v700
    %v1013 = vunpack.c.1.s8 %v701
    %v1014 = vunpack.c.1.s8 %v702
    %v1015 = vunpack.c.2.s8 %v699
    %v1016 = vunpack.c.2.s8 %v700
    %v1017 = vunpack.c.2.s8 %v701
    %v1018 = vunpack.c.2.s8 %v702
    %v1019 = vunpack.c.3.s8 %v699
    %v1020 = vunpack.c.3.s8 %v700
    %v1021 = vunpack.c.3.s8 %v701
    %v1022 = vunpack.c.3.s8 %v702
    %v1023 = vunpack.c.0.s8 %v703
    %v1024 = vunpack.c.0.s8 %v704
    %v1025 = vunpack.c.0.s8 %v705
    %v1026 = vunpack.c.0.s8 %v706
    %v1027 = vunpack.c.1.s8 %v703
    %v1028 = vunpack.c.1.s8 %v704
    %v1029 = vunpack.c.1.s8 %v705
    %v1030 = vunpack.c.1.s8 %v706
    %v1031 = vunpack.c.2.s8 %v703
    %v1032 = vunpack.c.2.s8 %v704
    %v1033 = vunpack.c.2.s8 %v705
    %v1034 = vunpack.c.2.s8 %v706
    %v1035 = vunpack.c.3.s8 %v703
    %v1036 = vunpack.c.3.s8 %v704
    %v1037 = vunpack.c.3.s8 %v705
    %v1038 = vunpack.c.3.s8 %v706
    %v1039 = vunpack.c.0.s8 %v707
    %v1040 = vunpack.c.0.s8 %v708
    %v1041 = vunpack.c.0.s8 %v709
    %v1042 = vunpack.c.0.s8 %v710
    %v1043 = vunpack.c.1.s8 %v707
    %v1044 = vunpack.c.1.s8 %v708
    %v1045 = vunpack.c.1.s8 %v709
    %v1046 = vunpack.c.1.s8 %v710
    %v1047 = vunpack.c.2.s8 %v707
    %v1048 = vunpack.c.2.s8 %v708
    %v1049 = vunpack.c.2.s8 %v709
    %v1050 = vunpack.c.2.s8 %v710
    %v1051 = vunpack.c.3.s8 %v707
    %v1052 = vunpack.c.3.s8 %v708
    %v1053 = vunpack.c.3.s8 %v709
    %v1054 = vunpack.c.3.s8 %v710
    %v1055 = vunpack.c.0.s8 %v711
    %v1056 = vunpack.c.0.s8 %v712
    %v1057 = vunpack.c.0.s8 %v713
    %v1058 = vunpack.c.0.s8 %v714
    %v1059 = vunpack.c.1.s8 %v711
    %v1060 = vunpack.c.1.s8 %v712
    %v1061 = vunpack.c.1.s8 %v713
    %v1062 = vunpack.c.1.s8 %v714
    %v1063 = vunpack.c.2.s8 %v711
    %v1064 = vunpack.c.2.s8 %v712
    %v1065 = vunpack.c.2.s8 %v713
    %v1066 = vunpack.c.2.s8 %v714
    %v1067 = vunpack.c.3.s8 %v711
    %v1068 = vunpack.c.3.s8 %v712
    %v1069 = vunpack.c.3.s8 %v713
    %v1070 = vunpack.c.3.s8 %v714
    %v1071 = vunpack.c.0.s8 %v715
    %v1072 = vunpack.c.0.s8 %v716
    %v1073 = vunpack.c.0.s8 %v717
    %v1074 = vunpack.c.0.s8 %v718
    %v1075 = vunpack.c.1.s8 %v715
    %v1076 = vunpack.c.1.s8 %v716
    %v1077 = vunpack.c.1.s8 %v717
    %v1078 = vunpack.c.1.s8 %v718
    %v1079 = vunpack.c.2.s8 %v715
    %v1080 = vunpack.c.2.s8 %v716
    %v1081 = vunpack.c.2.s8 %v717
    %v1082 = vunpack.c.2.s8 %v718
    %v1083 = vunpack.c.3.s8 %v715
    %v1084 = vunpack.c.3.s8 %v716
    %v1085 = vunpack.c.3.s8 %v717
    %v1086 = vunpack.c.3.s8 %v718
    %v1087 = vunpack.c.0.s8 %v719
    %v1088 = vunpack.c.0.s8 %v720
    %v1089 = vunpack.c.0.s8 %v721
    %v1090 = vunpack.c.0.s8 %v722
    %v1091 = vunpack.c.1.s8 %v719
    %v1092 = vunpack.c.1.s8 %v720
    %v1093 = vunpack.c.1.s8 %v721
    %v1094 = vunpack.c.1.s8 %v722
    %v1095 = vunpack.c.2.s8 %v719
    %v1096 = vunpack.c.2.s8 %v720
    %v1097 = vunpack.c.2.s8 %v721
    %v1098 = vunpack.c.2.s8 %v722
    %v1099 = vunpack.c.3.s8 %v719
    %v1100 = vunpack.c.3.s8 %v720
    %v1101 = vunpack.c.3.s8 %v721
    %v1102 = vunpack.c.3.s8 %v722
    %v1103 = vunpack.c.0.s8 %v723
    %v1104 = vunpack.c.0.s8 %v724
    %v1105 = vunpack.c.0.s8 %v725
    %v1106 = vunpack.c.0.s8 %v726
    %v1107 = vunpack.c.1.s8 %v723
    %v1108 = vunpack.c.1.s8 %v724
    %v1109 = vunpack.c.1.s8 %v725
    %v1110 = vunpack.c.1.s8 %v726
    %v1111 = vunpack.c.2.s8 %v723
    %v1112 = vunpack.c.2.s8 %v724
    %v1113 = vunpack.c.2.s8 %v725
    %v1114 = vunpack.c.2.s8 %v726
    %v1115 = vunpack.c.3.s8 %v723
    %v1116 = vunpack.c.3.s8 %v724
    %v1117 = vunpack.c.3.s8 %v725
    %v1118 = vunpack.c.3.s8 %v726
    %v1119 = vunpack.c.0.s8 %v727
    %v1120 = vunpack.c.0.s8 %v728
    %v1121 = vunpack.c.0.s8 %v729
    %v1122 = vunpack.c.0.s8 %v730
    %v1123 = vunpack.c.1.s8 %v727
    %v1124 = vunpack.c.1.s8 %v728
    %v1125 = vunpack.c.1.s8 %v729
    %v1126 = vunpack.c.1.s8 %v730
    %v1127 = vunpack.c.2.s8 %v727
    %v1128 = vunpack.c.2.s8 %v728
    %v1129 = vunpack.c.2.s8 %v729
    %v1130 = vunpack.c.2.s8 %v730
    %v1131 = vunpack.c.3.s8 %v727
    %v1132 = vunpack.c.3.s8 %v728
    %v1133 = vunpack.c.3.s8 %v729
    %v1134 = vunpack.c.3.s8 %v730
    %v1135 = vunpack.c.0.s8 %v731
    %v1136 = vunpack.c.0.s8 %v732
    %v1137 = vunpack.c.0.s8 %v733
    %v1138 = vunpack.c.0.s8 %v734
    %v1139 = vunpack.c.1.s8 %v731
    %v1140 = vunpack.c.1.s8 %v732
    %v1141 = vunpack.c.1.s8 %v733
    %v1142 = vunpack.c.1.s8 %v734
    %v1143 = vunpack.c.2.s8 %v731
    %v1144 = vunpack.c.2.s8 %v732
    %v1145 = vunpack.c.2.s8 %v733
    %v1146 = vunpack.c.2.s8 %v734
    %v1147 = vunpack.c.3.s8 %v731
    %v1148 = vunpack.c.3.s8 %v732
    %v1149 = vunpack.c.3.s8 %v733
    %v1150 = vunpack.c.3.s8 %v734
    %v1151 = vunpack.c.0.s8 %v735
    %v1152 = vunpack.c.0.s8 %v736
    %v1153 = vunpack.c.0.s8 %v737
    %v1154 = vunpack.c.0.s8 %v738
    %v1155 = vunpack.c.1.s8 %v735
    %v1156 = vunpack.c.1.s8 %v736
    %v1157 = vunpack.c.1.s8 %v737
    %v1158 = vunpack.c.1.s8 %v738
    %v1159 = vunpack.c.2.s8 %v735
    %v1160 = vunpack.c.2.s8 %v736
    %v1161 = vunpack.c.2.s8 %v737
    %v1162 = vunpack.c.2.s8 %v738
    %v1163 = vunpack.c.3.s8 %v735
    %v1164 = vunpack.c.3.s8 %v736
    %v1165 = vunpack.c.3.s8 %v737
    %v1166 = vunpack.c.3.s8 %v738
    %v1167 = vunpack.c.0.s8 %v739
    %v1168 = vunpack.c.0.s8 %v740
    %v1169 = vunpack.c.0.s8 %v741
    %v1170 = vunpack.c.0.s8 %v742
    %v1171 = vunpack.c.1.s8 %v739
    %v1172 = vunpack.c.1.s8 %v740
    %v1173 = vunpack.c.1.s8 %v741
    %v1174 = vunpack.c.1.s8 %v742
    %v1175 = vunpack.c.2.s8 %v739
    %v1176 = vunpack.c.2.s8 %v740
    %v1177 = vunpack.c.2.s8 %v741
    %v1178 = vunpack.c.2.s8 %v742
    %v1179 = vunpack.c.3.s8 %v739
    %v1180 = vunpack.c.3.s8 %v740
    %v1181 = vunpack.c.3.s8 %v741
    %v1182 = vunpack.c.3.s8 %v742
    %v1183 = vunpack.c.0.s8 %v743
    %v1184 = vunpack.c.0.s8 %v744
    %v1185 = vunpack.c.0.s8 %v745
    %v1186 = vunpack.c.0.s8 %v746
    %v1187 = vunpack.c.1.s8 %v743
    %v1188 = vunpack.c.1.s8 %v744
    %v1189 = vunpack.c.1.s8 %v745
    %v1190 = vunpack.c.1.s8 %v746
    %v1191 = vunpack.c.2.s8 %v743
    %v1192 = vunpack.c.2.s8 %v744
    %v1193 = vunpack.c.2.s8 %v745
    %v1194 = vunpack.c.2.s8 %v746
    %v1195 = vunpack.c.3.s8 %v743
    %v1196 = vunpack.c.3.s8 %v744
    %v1197 = vunpack.c.3.s8 %v745
    %v1198 = vunpack.c.3.s8 %v746
    %v1199 = vunpack.c.0.s8 %v747
    %v1200 = vunpack.c.0.s8 %v748
    %v1201 = vunpack.c.0.s8 %v749
    %v1202 = vunpack.c.0.s8 %v750
    %v1203 = vunpack.c.1.s8 %v747
    %v1204 = vunpack.c.1.s8 %v748
    %v1205 = vunpack.c.1.s8 %v749
    %v1206 = vunpack.c.1.s8 %v750
    %v1207 = vunpack.c.2.s8 %v747
    %v1208 = vunpack.c.2.s8 %v748
    %v1209 = vunpack.c.2.s8 %v749
    %v1210 = vunpack.c.2.s8 %v750
    %v1211 = vunpack.c.3.s8 %v747
    %v1212 = vunpack.c.3.s8 %v748
    %v1213 = vunpack.c.3.s8 %v749
    %v1214 = vunpack.c.3.s8 %v750
    %v1215 = vunpack.c.0.s8 %v751
    %v1216 = vunpack.c.0.s8 %v752
    %v1217 = vunpack.c.0.s8 %v753
    %v1218 = vunpack.c.0.s8 %v754
    %v1219 = vunpack.c.1.s8 %v751
    %v1220 = vunpack.c.1.s8 %v752
    %v1221 = vunpack.c.1.s8 %v753
    %v1222 = vunpack.c.1.s8 %v754
    %v1223 = vunpack.c.2.s8 %v751
    %v1224 = vunpack.c.2.s8 %v752
    %v1225 = vunpack.c.2.s8 %v753
    %v1226 = vunpack.c.2.s8 %v754
    %v1227 = vunpack.c.3.s8 %v751
    %v1228 = vunpack.c.3.s8 %v752
    %v1229 = vunpack.c.3.s8 %v753
    %v1230 = vunpack.c.3.s8 %v754
    %v1231 = vunpack.c.0.s8 %v755
    %v1232 = vunpack.c.0.s8 %v756
    %v1233 = vunpack.c.0.s8 %v757
    %v1234 = vunpack.c.0.s8 %v758
    %v1235 = vunpack.c.1.s8 %v755
    %v1236 = vunpack.c.1.s8 %v756
    %v1237 = vunpack.c.1.s8 %v757
    %v1238 = vunpack.c.1.s8 %v758
    %v1239 = vunpack.c.2.s8 %v755
    %v1240 = vunpack.c.2.s8 %v756
    %v1241 = vunpack.c.2.s8 %v757
    %v1242 = vunpack.c.2.s8 %v758
    %v1243 = vunpack.c.3.s8 %v755
    %v1244 = vunpack.c.3.s8 %v756
    %v1245 = vunpack.c.3.s8 %v757
    %v1246 = vunpack.c.3.s8 %v758
    %v1247 = vunpack.c.0.s8 %v759
    %v1248 = vunpack.c.0.s8 %v760
    %v1249 = vunpack.c.0.s8 %v761
    %v1250 = vunpack.c.0.s8 %v762
    %v1251 = vunpack.c.1.s8 %v759
    %v1252 = vunpack.c.1.s8 %v760
    %v1253 = vunpack.c.1.s8 %v761
    %v1254 = vunpack.c.1.s8 %v762
    %v1255 = vunpack.c.2.s8 %v759
    %v1256 = vunpack.c.2.s8 %v760
    %v1257 = vunpack.c.2.s8 %v761
    %v1258 = vunpack.c.2.s8 %v762
    %v1259 = vunpack.c.3.s8 %v759
    %v1260 = vunpack.c.3.s8 %v760
    %v1261 = vunpack.c.3.s8 %v761
    %v1262 = vunpack.c.3.s8 %v762
    %v1263 = vunpack.c.0.s8 %v763
    %v1264 = vunpack.c.0.s8 %v764
    %v1265 = vunpack.c.0.s8 %v765
    %v1266 = vunpack.c.0.s8 %v766
    %v1267 = vunpack.c.1.s8 %v763
    %v1268 = vunpack.c.1.s8 %v764
    %v1269 = vunpack.c.1.s8 %v765
    %v1270 = vunpack.c.1.s8 %v766
    %v1271 = vunpack.c.2.s8 %v763
    %v1272 = vunpack.c.2.s8 %v764
    %v1273 = vunpack.c.2.s8 %v765
    %v1274 = vunpack.c.2.s8 %v766
    %v1275 = vunpack.c.3.s8 %v763
    %v1276 = vunpack.c.3.s8 %v764
    %v1277 = vunpack.c.3.s8 %v765
    %v1278 = vunpack.c.3.s8 %v766
    %v1279 = vcvt.s32.f32 %v767
    %v1280 = vcvt.s32.f32 %v768
    %v1281 = vcvt.s32.f32 %v769
    %v1282 = vcvt.s32.f32 %v770
    %v1283 = vcvt.s32.f32 %v771
    %v1284 = vcvt.s32.f32 %v772
    %v1285 = vcvt.s32.f32 %v773
    %v1286 = vcvt.s32.f32 %v774
    %v1287 = vcvt.s32.f32 %v775
    %v1288 = vcvt.s32.f32 %v776
    %v1289 = vcvt.s32.f32 %v777
    %v1290 = vcvt.s32.f32 %v778
    %v1291 = vcvt.s32.f32 %v779
    %v1292 = vcvt.s32.f32 %v780
    %v1293 = vcvt.s32.f32 %v781
    %v1294 = vcvt.s32.f32 %v782
    %v1295 = vcvt.s32.f32 %v783
    %v1296 = vcvt.s32.f32 %v784
    %v1297 = vcvt.s32.f32 %v785
    %v1298 = vcvt.s32.f32 %v786
    %v1299 = vcvt.s32.f32 %v787
    %v1300 = vcvt.s32.f32 %v788
    %v1301 = vcvt.s32.f32 %v789
    %v1302 = vcvt.s32.f32 %v790
    %v1303 = vcvt.s32.f32 %v791
    %v1304 = vcvt.s32.f32 %v792
    %v1305 = vcvt.s32.f32 %v793
    %v1306 = vcvt.s32.f32 %v794
    %v1307 = vcvt.s32.f32 %v795
    %v1308 = vcvt.s32.f32 %v796
    %v1309 = vcvt.s32.f32 %v797
    %v1310 = vcvt.s32.f32 %v798
    %v1311 = vcvt.s32.f32 %v799
    %v1312 = vcvt.s32.f32 %v800
    %v1313 = vcvt.s32.f32 %v801
    %v1314 = vcvt.s32.f32 %v802
    %v1315 = vcvt.s32.f32 %v803
    %v1316 = vcvt.s32.f32 %v804
    %v1317 = vcvt.s32.f32 %v805
    %v1318 = vcvt.s32.f32 %v806
    %v1319 = vcvt.s32.f32 %v807
    %v1320 = vcvt.s32.f32 %v808
    %v1321 = vcvt.s32.f32 %v809
    %v1322 = vcvt.s32.f32 %v810
    %v1323 = vcvt.s32.f32 %v811
    %v1324 = vcvt.s32.f32 %v812
    %v1325 = vcvt.s32.f32 %v813
    %v1326 = vcvt.s32.f32 %v814
    %v1327 = vcvt.s32.f32 %v815
    %v1328 = vcvt.s32.f32 %v816
    %v1329 = vcvt.s32.f32 %v817
    %v1330 = vcvt.s32.f32 %v818
    %v1331 = vcvt.s32.f32 %v819
    %v1332 = vcvt.s32.f32 %v820
    %v1333 = vcvt.s32.f32 %v821
    %v1334 = vcvt.s32.f32 %v822
    %v1335 = vcvt.s32.f32 %v823
    %v1336 = vcvt.s32.f32 %v824
    %v1337 = vcvt.s32.f32 %v825
    %v1338 = vcvt.s32.f32 %v826
    %v1339 = vcvt.s32.f32 %v827
    %v1340 = vcvt.s32.f32 %v828
    %v1341 = vcvt.s32.f32 %v829
    %v1342 = vcvt.s32.f32 %v830
    %v1343 = vcvt.s32.f32 %v831
    %v1344 = vcvt.s32.f32 %v832
    %v1345 = vcvt.s32.f32 %v833
    %v1346 = vcvt.s32.f32 %v834
    %v1347 = vcvt.s32.f32 %v835
    %v1348 = vcvt.s32.f32 %v836
    %v1349 = vcvt.s32.f32 %v837
    %v1350 = vcvt.s32.f32 %v838
    %v1351 = vcvt.s32.f32 %v839
    %v1352 = vcvt.s32.f32 %v840
    %v1353 = vcvt.s32.f32 %v841
    %v1354 = vcvt.s32.f32 %v842
    %v1355 = vcvt.s32.f32 %v843
    %v1356 = vcvt.s32.f32 %v844
    %v1357 = vcvt.s32.f32 %v845
    %v1358 = vcvt.s32.f32 %v846
    %v1359 = vcvt.s32.f32 %v847
    %v1360 = vcvt.s32.f32 %v848
    %v1361 = vcvt.s32.f32 %v849
    %v1362 = vcvt.s32.f32 %v850
    %v1363 = vcvt.s32.f32 %v851
    %v1364 = vcvt.s32.f32 %v852
    %v1365 = vcvt.s32.f32 %v853
    %v1366 = vcvt.s32.f32 %v854
    %v1367 = vcvt.s32.f32 %v855
    %v1368 = vcvt.s32.f32 %v856
    %v1369 = vcvt.s32.f32 %v857
    %v1370 = vcvt.s32.f32 %v858
    %v1371 = vcvt.s32.f32 %v859
    %v1372 = vcvt.s32.f32 %v860
    %v1373 = vcvt.s32.f32 %v861
    %v1374 = vcvt.s32.f32 %v862
    %v1375 = vcvt.s32.f32 %v863
    %v1376 = vcvt.s32.f32 %v864
    %v1377 = vcvt.s32.f32 %v865
    %v1378 = vcvt.s32.f32 %v866
    %v1379 = vcvt.s32.f32 %v867
    %v1380 = vcvt.s32.f32 %v868
    %v1381 = vcvt.s32.f32 %v869
    %v1382 = vcvt.s32.f32 %v870
    %v1383 = vcvt.s32.f32 %v871
    %v1384 = vcvt.s32.f32 %v872
    %v1385 = vcvt.s32.f32 %v873
    %v1386 = vcvt.s32.f32 %v874
    %v1387 = vcvt.s32.f32 %v875
    %v1388 = vcvt.s32.f32 %v876
    %v1389 = vcvt.s32.f32 %v877
    %v1390 = vcvt.s32.f32 %v878
    %v1391 = vcvt.s32.f32 %v879
    %v1392 = vcvt.s32.f32 %v880
    %v1393 = vcvt.s32.f32 %v881
    %v1394 = vcvt.s32.f32 %v882
    %v1395 = vcvt.s32.f32 %v883
    %v1396 = vcvt.s32.f32 %v884
    %v1397 = vcvt.s32.f32 %v885
    %v1398 = vcvt.s32.f32 %v886
    %v1399 = vcvt.s32.f32 %v887
    %v1400 = vcvt.s32.f32 %v888
    %v1401 = vcvt.s32.f32 %v889
    %v1402 = vcvt.s32.f32 %v890
    %v1403 = vcvt.s32.f32 %v891
    %v1404 = vcvt.s32.f32 %v892
    %v1405 = vcvt.s32.f32 %v893
    %v1406 = vcvt.s32.f32 %v894
    %v1407 = vcvt.s32.f32 %v895
    %v1408 = vcvt.s32.f32 %v896
    %v1409 = vcvt.s32.f32 %v897
    %v1410 = vcvt.s32.f32 %v898
    %v1411 = vcvt.s32.f32 %v899
    %v1412 = vcvt.s32.f32 %v900
    %v1413 = vcvt.s32.f32 %v901
    %v1414 = vcvt.s32.f32 %v902
    %v1415 = vcvt.s32.f32 %v903
    %v1416 = vcvt.s32.f32 %v904
    %v1417 = vcvt.s32.f32 %v905
    %v1418 = vcvt.s32.f32 %v906
    %v1419 = vcvt.s32.f32 %v907
    %v1420 = vcvt.s32.f32 %v908
    %v1421 = vcvt.s32.f32 %v909
    %v1422 = vcvt.s32.f32 %v910
    %v1423 = vcvt.s32.f32 %v911
    %v1424 = vcvt.s32.f32 %v912
    %v1425 = vcvt.s32.f32 %v913
    %v1426 = vcvt.s32.f32 %v914
    %v1427 = vcvt.s32.f32 %v915
    %v1428 = vcvt.s32.f32 %v916
    %v1429 = vcvt.s32.f32 %v917
    %v1430 = vcvt.s32.f32 %v918
    %v1431 = vcvt.s32.f32 %v919
    %v1432 = vcvt.s32.f32 %v920
    %v1433 = vcvt.s32.f32 %v921
    %v1434 = vcvt.s32.f32 %v922
    %v1435 = vcvt.s32.f32 %v923
    %v1436 = vcvt.s32.f32 %v924
    %v1437 = vcvt.s32.f32 %v925
    %v1438 = vcvt.s32.f32 %v926
    %v1439 = vcvt.s32.f32 %v927
    %v1440 = vcvt.s32.f32 %v928
    %v1441 = vcvt.s32.f32 %v929
    %v1442 = vcvt.s32.f32 %v930
    %v1443 = vcvt.s32.f32 %v931
    %v1444 = vcvt.s32.f32 %v932
    %v1445 = vcvt.s32.f32 %v933
    %v1446 = vcvt.s32.f32 %v934
    %v1447 = vcvt.s32.f32 %v935
    %v1448 = vcvt.s32.f32 %v936
    %v1449 = vcvt.s32.f32 %v937
    %v1450 = vcvt.s32.f32 %v938
    %v1451 = vcvt.s32.f32 %v939
    %v1452 = vcvt.s32.f32 %v940
    %v1453 = vcvt.s32.f32 %v941
    %v1454 = vcvt.s32.f32 %v942
    %v1455 = vcvt.s32.f32 %v943
    %v1456 = vcvt.s32.f32 %v944
    %v1457 = vcvt.s32.f32 %v945
    %v1458 = vcvt.s32.f32 %v946
    %v1459 = vcvt.s32.f32 %v947
    %v1460 = vcvt.s32.f32 %v948
    %v1461 = vcvt.s32.f32 %v949
    %v1462 = vcvt.s32.f32 %v950
    %v1463 = vcvt.s32.f32 %v951
    %v1464 = vcvt.s32.f32 %v952
    %v1465 = vcvt.s32.f32 %v953
    %v1466 = vcvt.s32.f32 %v954
    %v1467 = vcvt.s32.f32 %v955
    %v1468 = vcvt.s32.f32 %v956
    %v1469 = vcvt.s32.f32 %v957
    %v1470 = vcvt.s32.f32 %v958
    %v1471 = vcvt.s32.f32 %v959
    %v1472 = vcvt.s32.f32 %v960
    %v1473 = vcvt.s32.f32 %v961
    %v1474 = vcvt.s32.f32 %v962
    %v1475 = vcvt.s32.f32 %v963
    %v1476 = vcvt.s32.f32 %v964
    %v1477 = vcvt.s32.f32 %v965
    %v1478 = vcvt.s32.f32 %v966
    %v1479 = vcvt.s32.f32 %v967
    %v1480 = vcvt.s32.f32 %v968
    %v1481 = vcvt.s32.f32 %v969
    %v1482 = vcvt.s32.f32 %v970
    %v1483 = vcvt.s32.f32 %v971
    %v1484 = vcvt.s32.f32 %v972
    %v1485 = vcvt.s32.f32 %v973
    %v1486 = vcvt.s32.f32 %v974
    %v1487 = vcvt.s32.f32 %v975
    %v1488 = vcvt.s32.f32 %v976
    %v1489 = vcvt.s32.f32 %v977
    %v1490 = vcvt.s32.f32 %v978
    %v1491 = vcvt.s32.f32 %v979
    %v1492 = vcvt.s32.f32 %v980
    %v1493 = vcvt.s32.f32 %v981
    %v1494 = vcvt.s32.f32 %v982
    %v1495 = vcvt.s32.f32 %v983
    %v1496 = vcvt.s32.f32 %v984
    %v1497 = vcvt.s32.f32 %v985
    %v1498 = vcvt.s32.f32 %v986
    %v1499 = vcvt.s32.f32 %v987
    %v1500 = vcvt.s32.f32 %v988
    %v1501 = vcvt.s32.f32 %v989
    %v1502 = vcvt.s32.f32 %v990
    %v1503 = vcvt.s32.f32 %v991
    %v1504 = vcvt.s32.f32 %v992
    %v1505 = vcvt.s32.f32 %v993
    %v1506 = vcvt.s32.f32 %v994
    %v1507 = vcvt.s32.f32 %v995
    %v1508 = vcvt.s32.f32 %v996
    %v1509 = vcvt.s32.f32 %v997
    %v1510 = vcvt.s32.f32 %v998
    %v1511 = vcvt.s32.f32 %v999
    %v1512 = vcvt.s32.f32 %v1000
    %v1513 = vcvt.s32.f32 %v1001
    %v1514 = vcvt.s32.f32 %v1002
    %v1515 = vcvt.s32.f32 %v1003
    %v1516 = vcvt.s32.f32 %v1004
    %v1517 = vcvt.s32.f32 %v1005
    %v1518 = vcvt.s32.f32 %v1006
    %v1519 = vcvt.s32.f32 %v1007
    %v1520 = vcvt.s32.f32 %v1008
    %v1521 = vcvt.s32.f32 %v1009
    %v1522 = vcvt.s32.f32 %v1010
    %v1523 = vcvt.s32.f32 %v1011
    %v1524 = vcvt.s32.f32 %v1012
    %v1525 = vcvt.s32.f32 %v1013
    %v1526 = vcvt.s32.f32 %v1014
    %v1527 = vcvt.s32.f32 %v1015
    %v1528 = vcvt.s32.f32 %v1016
    %v1529 = vcvt.s32.f32 %v1017
    %v1530 = vcvt.s32.f32 %v1018
    %v1531 = vcvt.s32.f32 %v1019
    %v1532 = vcvt.s32.f32 %v1020
    %v1533 = vcvt.s32.f32 %v1021
    %v1534 = vcvt.s32.f32 %v1022
    %v1535 = vcvt.s32.f32 %v1023
    %v1536 = vcvt.s32.f32 %v1024
    %v1537 = vcvt.s32.f32 %v1025
    %v1538 = vcvt.s32.f32 %v1026
    %v1539 = vcvt.s32.f32 %v1027
    %v1540 = vcvt.s32.f32 %v1028
    %v1541 = vcvt.s32.f32 %v1029
    %v1542 = vcvt.s32.f32 %v1030
    %v1543 = vcvt.s32.f32 %v1031
    %v1544 = vcvt.s32.f32 %v1032
    %v1545 = vcvt.s32.f32 %v1033
    %v1546 = vcvt.s32.f32 %v1034
    %v1547 = vcvt.s32.f32 %v1035
    %v1548 = vcvt.s32.f32 %v1036
    %v1549 = vcvt.s32.f32 %v1037
    %v1550 = vcvt.s32.f32 %v1038
    %v1551 = vcvt.s32.f32 %v1039
    %v1552 = vcvt.s32.f32 %v1040
    %v1553 = vcvt.s32.f32 %v1041
    %v1554 = vcvt.s32.f32 %v1042
    %v1555 = vcvt.s32.f32 %v1043
    %v1556 = vcvt.s32.f32 %v1044
    %v1557 = vcvt.s32.f32 %v1045
    %v1558 = vcvt.s32.f32 %v1046
    %v1559 = vcvt.s32.f32 %v1047
    %v1560 = vcvt.s32.f32 %v1048
    %v1561 = vcvt.s32.f32 %v1049
    %v1562 = vcvt.s32.f32 %v1050
    %v1563 = vcvt.s32.f32 %v1051
    %v1564 = vcvt.s32.f32 %v1052
    %v1565 = vcvt.s32.f32 %v1053
    %v1566 = vcvt.s32.f32 %v1054
    %v1567 = vcvt.s32.f32 %v1055
    %v1568 = vcvt.s32.f32 %v1056
    %v1569 = vcvt.s32.f32 %v1057
    %v1570 = vcvt.s32.f32 %v1058
    %v1571 = vcvt.s32.f32 %v1059
    %v1572 = vcvt.s32.f32 %v1060
    %v1573 = vcvt.s32.f32 %v1061
    %v1574 = vcvt.s32.f32 %v1062
    %v1575 = vcvt.s32.f32 %v1063
    %v1576 = vcvt.s32.f32 %v1064
    %v1577 = vcvt.s32.f32 %v1065
    %v1578 = vcvt.s32.f32 %v1066
    %v1579 = vcvt.s32.f32 %v1067
    %v1580 = vcvt.s32.f32 %v1068
    %v1581 = vcvt.s32.f32 %v1069
    %v1582 = vcvt.s32.f32 %v1070
    %v1583 = vcvt.s32.f32 %v1071
    %v1584 = vcvt.s32.f32 %v1072
    %v1585 = vcvt.s32.f32 %v1073
    %v1586 = vcvt.s32.f32 %v1074
    %v1587 = vcvt.s32.f32 %v1075
    %v1588 = vcvt.s32.f32 %v1076
    %v1589 = vcvt.s32.f32 %v1077
    %v1590 = vcvt.s32.f32 %v1078
    %v1591 = vcvt.s32.f32 %v1079
    %v1592 = vcvt.s32.f32 %v1080
    %v1593 = vcvt.s32.f32 %v1081
    %v1594 = vcvt.s32.f32 %v1082
    %v1595 = vcvt.s32.f32 %v1083
    %v1596 = vcvt.s32.f32 %v1084
    %v1597 = vcvt.s32.f32 %v1085
    %v1598 = vcvt.s32.f32 %v1086
    %v1599 = vcvt.s32.f32 %v1087
    %v1600 = vcvt.s32.f32 %v1088
    %v1601 = vcvt.s32.f32 %v1089
    %v1602 = vcvt.s32.f32 %v1090
    %v1603 = vcvt.s32.f32 %v1091
    %v1604 = vcvt.s32.f32 %v1092
    %v1605 = vcvt.s32.f32 %v1093
    %v1606 = vcvt.s32.f32 %v1094
    %v1607 = vcvt.s32.f32 %v1095
    %v1608 = vcvt.s32.f32 %v1096
    %v1609 = vcvt.s32.f32 %v1097
    %v1610 = vcvt.s32.f32 %v1098
    %v1611 = vcvt.s32.f32 %v1099
    %v1612 = vcvt.s32.f32 %v1100
    %v1613 = vcvt.s32.f32 %v1101
    %v1614 = vcvt.s32.f32 %v1102
    %v1615 = vcvt.s32.f32 %v1103
    %v1616 = vcvt.s32.f32 %v1104
    %v1617 = vcvt.s32.f32 %v1105
    %v1618 = vcvt.s32.f32 %v1106
    %v1619 = vcvt.s32.f32 %v1107
    %v1620 = vcvt.s32.f32 %v1108
    %v1621 = vcvt.s32.f32 %v1109
    %v1622 = vcvt.s32.f32 %v1110
    %v1623 = vcvt.s32.f32 %v1111
    %v1624 = vcvt.s32.f32 %v1112
    %v1625 = vcvt.s32.f32 %v1113
    %v1626 = vcvt.s32.f32 %v1114
    %v1627 = vcvt.s32.f32 %v1115
    %v1628 = vcvt.s32.f32 %v1116
    %v1629 = vcvt.s32.f32 %v1117
    %v1630 = vcvt.s32.f32 %v1118
    %v1631 = vcvt.s32.f32 %v1119
    %v1632 = vcvt.s32.f32 %v1120
    %v1633 = vcvt.s32.f32 %v1121
    %v1634 = vcvt.s32.f32 %v1122
    %v1635 = vcvt.s32.f32 %v1123
    %v1636 = vcvt.s32.f32 %v1124
    %v1637 = vcvt.s32.f32 %v1125
    %v1638 = vcvt.s32.f32 %v1126
    %v1639 = vcvt.s32.f32 %v1127
    %v1640 = vcvt.s32.f32 %v1128
    %v1641 = vcvt.s32.f32 %v1129
    %v1642 = vcvt.s32.f32 %v1130
    %v1643 = vcvt.s32.f32 %v1131
    %v1644 = vcvt.s32.f32 %v1132
    %v1645 = vcvt.s32.f32 %v1133
    %v1646 = vcvt.s32.f32 %v1134
    %v1647 = vcvt.s32.f32 %v1135
    %v1648 = vcvt.s32.f32 %v1136
    %v1649 = vcvt.s32.f32 %v1137
    %v1650 = vcvt.s32.f32 %v1138
    %v1651 = vcvt.s32.f32 %v1139
    %v1652 = vcvt.s32.f32 %v1140
    %v1653 = vcvt.s32.f32 %v1141
    %v1654 = vcvt.s32.f32 %v1142
    %v1655 = vcvt.s32.f32 %v1143
    %v1656 = vcvt.s32.f32 %v1144
    %v1657 = vcvt.s32.f32 %v1145
    %v1658 = vcvt.s32.f32 %v1146
    %v1659 = vcvt.s32.f32 %v1147
    %v1660 = vcvt.s32.f32 %v1148
    %v1661 = vcvt.s32.f32 %v1149
    %v1662 = vcvt.s32.f32 %v1150
    %v1663 = vcvt.s32.f32 %v1151
    %v1664 = vcvt.s32.f32 %v1152
    %v1665 = vcvt.s32.f32 %v1153
    %v1666 = vcvt.s32.f32 %v1154
    %v1667 = vcvt.s32.f32 %v1155
    %v1668 = vcvt.s32.f32 %v1156
    %v1669 = vcvt.s32.f32 %v1157
    %v1670 = vcvt.s32.f32 %v1158
    %v1671 = vcvt.s32.f32 %v1159
    %v1672 = vcvt.s32.f32 %v1160
    %v1673 = vcvt.s32.f32 %v1161
    %v1674 = vcvt.s32.f32 %v1162
    %v1675 = vcvt.s32.f32 %v1163
    %v1676 = vcvt.s32.f32 %v1164
    %v1677 = vcvt.s32.f32 %v1165
    %v1678 = vcvt.s32.f32 %v1166
    %v1679 = vcvt.s32.f32 %v1167
    %v1680 = vcvt.s32.f32 %v1168
    %v1681 = vcvt.s32.f32 %v1169
    %v1682 = vcvt.s32.f32 %v1170
    %v1683 = vcvt.s32.f32 %v1171
    %v1684 = vcvt.s32.f32 %v1172
    %v1685 = vcvt.s32.f32 %v1173
    %v1686 = vcvt.s32.f32 %v1174
    %v1687 = vcvt.s32.f32 %v1175
    %v1688 = vcvt.s32.f32 %v1176
    %v1689 = vcvt.s32.f32 %v1177
    %v1690 = vcvt.s32.f32 %v1178
    %v1691 = vcvt.s32.f32 %v1179
    %v1692 = vcvt.s32.f32 %v1180
    %v1693 = vcvt.s32.f32 %v1181
    %v1694 = vcvt.s32.f32 %v1182
    %v1695 = vcvt.s32.f32 %v1183
    %v1696 = vcvt.s32.f32 %v1184
    %v1697 = vcvt.s32.f32 %v1185
    %v1698 = vcvt.s32.f32 %v1186
    %v1699 = vcvt.s32.f32 %v1187
    %v1700 = vcvt.s32.f32 %v1188
    %v1701 = vcvt.s32.f32 %v1189
    %v1702 = vcvt.s32.f32 %v1190
    %v1703 = vcvt.s32.f32 %v1191
    %v1704 = vcvt.s32.f32 %v1192
    %v1705 = vcvt.s32.f32 %v1193
    %v1706 = vcvt.s32.f32 %v1194
    %v1707 = vcvt.s32.f32 %v1195
    %v1708 = vcvt.s32.f32 %v1196
    %v1709 = vcvt.s32.f32 %v1197
    %v1710 = vcvt.s32.f32 %v1198
    %v1711 = vcvt.s32.f32 %v1199
    %v1712 = vcvt.s32.f32 %v1200
    %v1713 = vcvt.s32.f32 %v1201
    %v1714 = vcvt.s32.f32 %v1202
    %v1715 = vcvt.s32.f32 %v1203
    %v1716 = vcvt.s32.f32 %v1204
    %v1717 = vcvt.s32.f32 %v1205
    %v1718 = vcvt.s32.f32 %v1206
    %v1719 = vcvt.s32.f32 %v1207
    %v1720 = vcvt.s32.f32 %v1208
    %v1721 = vcvt.s32.f32 %v1209
    %v1722 = vcvt.s32.f32 %v1210
    %v1723 = vcvt.s32.f32 %v1211
    %v1724 = vcvt.s32.f32 %v1212
    %v1725 = vcvt.s32.f32 %v1213
    %v1726 = vcvt.s32.f32 %v1214
    %v1727 = vcvt.s32.f32 %v1215
    %v1728 = vcvt.s32.f32 %v1216
    %v1729 = vcvt.s32.f32 %v1217
    %v1730 = vcvt.s32.f32 %v1218
    %v1731 = vcvt.s32.f32 %v1219
    %v1732 = vcvt.s32.f32 %v1220
    %v1733 = vcvt.s32.f32 %v1221
    %v1734 = vcvt.s32.f32 %v1222
    %v1735 = vcvt.s32.f32 %v1223
    %v1736 = vcvt.s32.f32 %v1224
    %v1737 = vcvt.s32.f32 %v1225
    %v1738 = vcvt.s32.f32 %v1226
    %v1739 = vcvt.s32.f32 %v1227
    %v1740 = vcvt.s32.f32 %v1228
    %v1741 = vcvt.s32.f32 %v1229
    %v1742 = vcvt.s32.f32 %v1230
    %v1743 = vcvt.s32.f32 %v1231
    %v1744 = vcvt.s32.f32 %v1232
    %v1745 = vcvt.s32.f32 %v1233
    %v1746 = vcvt.s32.f32 %v1234
    %v1747 = vcvt.s32.f32 %v1235
    %v1748 = vcvt.s32.f32 %v1236
    %v1749 = vcvt.s32.f32 %v1237
    %v1750 = vcvt.s32.f32 %v1238
    %v1751 = vcvt.s32.f32 %v1239
    %v1752 = vcvt.s32.f32 %v1240
    %v1753 = vcvt.s32.f32 %v1241
    %v1754 = vcvt.s32.f32 %v1242
    %v1755 = vcvt.s32.f32 %v1243
    %v1756 = vcvt.s32.f32 %v1244
    %v1757 = vcvt.s32.f32 %v1245
    %v1758 = vcvt.s32.f32 %v1246
    %v1759 = vcvt.s32.f32 %v1247
    %v1760 = vcvt.s32.f32 %v1248
    %v1761 = vcvt.s32.f32 %v1249
    %v1762 = vcvt.s32.f32 %v1250
    %v1763 = vcvt.s32.f32 %v1251
    %v1764 = vcvt.s32.f32 %v1252
    %v1765 = vcvt.s32.f32 %v1253
    %v1766 = vcvt.s32.f32 %v1254
    %v1767 = vcvt.s32.f32 %v1255
    %v1768 = vcvt.s32.f32 %v1256
    %v1769 = vcvt.s32.f32 %v1257
    %v1770 = vcvt.s32.f32 %v1258
    %v1771 = vcvt.s32.f32 %v1259
    %v1772 = vcvt.s32.f32 %v1260
    %v1773 = vcvt.s32.f32 %v1261
    %v1774 = vcvt.s32.f32 %v1262
    %v1775 = vcvt.s32.f32 %v1263
    %v1776 = vcvt.s32.f32 %v1264
    %v1777 = vcvt.s32.f32 %v1265
    %v1778 = vcvt.s32.f32 %v1266
    %v1779 = vcvt.s32.f32 %v1267
    %v1780 = vcvt.s32.f32 %v1268
    %v1781 = vcvt.s32.f32 %v1269
    %v1782 = vcvt.s32.f32 %v1270
    %v1783 = vcvt.s32.f32 %v1271
    %v1784 = vcvt.s32.f32 %v1272
    %v1785 = vcvt.s32.f32 %v1273
    %v1786 = vcvt.s32.f32 %v1274
    %v1787 = vcvt.s32.f32 %v1275
    %v1788 = vcvt.s32.f32 %v1276
    %v1789 = vcvt.s32.f32 %v1277
    %v1790 = vcvt.s32.f32 %v1278
    %v1791 = vpack.c.bf16 %v1280, %v1279
    %v1792 = vpack.c.bf16 %v1282, %v1281
    %v1793 = vpack.c.bf16 %v1284, %v1283
    %v1794 = vpack.c.bf16 %v1286, %v1285
    %v1795 = vpack.c.bf16 %v1288, %v1287
    %v1796 = vpack.c.bf16 %v1290, %v1289
    %v1797 = vpack.c.bf16 %v1292, %v1291
    %v1798 = vpack.c.bf16 %v1294, %v1293
    %v1799 = vpack.c.bf16 %v1296, %v1295
    %v1800 = vpack.c.bf16 %v1298, %v1297
    %v1801 = vpack.c.bf16 %v1300, %v1299
    %v1802 = vpack.c.bf16 %v1302, %v1301
    %v1803 = vpack.c.bf16 %v1304, %v1303
    %v1804 = vpack.c.bf16 %v1306, %v1305
    %v1805 = vpack.c.bf16 %v1308, %v1307
    %v1806 = vpack.c.bf16 %v1310, %v1309
    %v1807 = vpack.c.bf16 %v1312, %v1311
    %v1808 = vpack.c.bf16 %v1314, %v1313
    %v1809 = vpack.c.bf16 %v1316, %v1315
    %v1810 = vpack.c.bf16 %v1318, %v1317
    %v1811 = vpack.c.bf16 %v1320, %v1319
    %v1812 = vpack.c.bf16 %v1322, %v1321
    %v1813 = vpack.c.bf16 %v1324, %v1323
    %v1814 = vpack.c.bf16 %v1326, %v1325
    %v1815 = vpack.c.bf16 %v1328, %v1327
    %v1816 = vpack.c.bf16 %v1330, %v1329
    %v1817 = vpack.c.bf16 %v1332, %v1331
    %v1818 = vpack.c.bf16 %v1334, %v1333
    %v1819 = vpack.c.bf16 %v1336, %v1335
    %v1820 = vpack.c.bf16 %v1338, %v1337
    %v1821 = vpack.c.bf16 %v1340, %v1339
    %v1822 = vpack.c.bf16 %v1342, %v1341
    %v1823 = vpack.c.bf16 %v1344, %v1343
    %v1824 = vpack.c.bf16 %v1346, %v1345
    %v1825 = vpack.c.bf16 %v1348, %v1347
    %v1826 = vpack.c.bf16 %v1350, %v1349
    %v1827 = vpack.c.bf16 %v1352, %v1351
    %v1828 = vpack.c.bf16 %v1354, %v1353
    %v1829 = vpack.c.bf16 %v1356, %v1355
    %v1830 = vpack.c.bf16 %v1358, %v1357
    %v1831 = vpack.c.bf16 %v1360, %v1359
    %v1832 = vpack.c.bf16 %v1362, %v1361
    %v1833 = vpack.c.bf16 %v1364, %v1363
    %v1834 = vpack.c.bf16 %v1366, %v1365
    %v1835 = vpack.c.bf16 %v1368, %v1367
    %v1836 = vpack.c.bf16 %v1370, %v1369
    %v1837 = vpack.c.bf16 %v1372, %v1371
    %v1838 = vpack.c.bf16 %v1374, %v1373
    %v1839 = vpack.c.bf16 %v1376, %v1375
    %v1840 = vpack.c.bf16 %v1378, %v1377
    %v1841 = vpack.c.bf16 %v1380, %v1379
    %v1842 = vpack.c.bf16 %v1382, %v1381
    %v1843 = vpack.c.bf16 %v1384, %v1383
    %v1844 = vpack.c.bf16 %v1386, %v1385
    %v1845 = vpack.c.bf16 %v1388, %v1387
    %v1846 = vpack.c.bf16 %v1390, %v1389
    %v1847 = vpack.c.bf16 %v1392, %v1391
    %v1848 = vpack.c.bf16 %v1394, %v1393
    %v1849 = vpack.c.bf16 %v1396, %v1395
    %v1850 = vpack.c.bf16 %v1398, %v1397
    %v1851 = vpack.c.bf16 %v1400, %v1399
    %v1852 = vpack.c.bf16 %v1402, %v1401
    %v1853 = vpack.c.bf16 %v1404, %v1403
    %v1854 = vpack.c.bf16 %v1406, %v1405
    %v1855 = vpack.c.bf16 %v1408, %v1407
    %v1856 = vpack.c.bf16 %v1410, %v1409
    %v1857 = vpack.c.bf16 %v1412, %v1411
    %v1858 = vpack.c.bf16 %v1414, %v1413
    %v1859 = vpack.c.bf16 %v1416, %v1415
    %v1860 = vpack.c.bf16 %v1418, %v1417
    %v1861 = vpack.c.bf16 %v1420, %v1419
    %v1862 = vpack.c.bf16 %v1422, %v1421
    %v1863 = vpack.c.bf16 %v1424, %v1423
    %v1864 = vpack.c.bf16 %v1426, %v1425
    %v1865 = vpack.c.bf16 %v1428, %v1427
    %v1866 = vpack.c.bf16 %v1430, %v1429
    %v1867 = vpack.c.bf16 %v1432, %v1431
    %v1868 = vpack.c.bf16 %v1434, %v1433
    %v1869 = vpack.c.bf16 %v1436, %v1435
    %v1870 = vpack.c.bf16 %v1438, %v1437
    %v1871 = vpack.c.bf16 %v1440, %v1439
    %v1872 = vpack.c.bf16 %v1442, %v1441
    %v1873 = vpack.c.bf16 %v1444, %v1443
    %v1874 = vpack.c.bf16 %v1446, %v1445
    %v1875 = vpack.c.bf16 %v1448, %v1447
    %v1876 = vpack.c.bf16 %v1450, %v1449
    %v1877 = vpack.c.bf16 %v1452, %v1451
    %v1878 = vpack.c.bf16 %v1454, %v1453
    %v1879 = vpack.c.bf16 %v1456, %v1455
    %v1880 = vpack.c.bf16 %v1458, %v1457
    %v1881 = vpack.c.bf16 %v1460, %v1459
    %v1882 = vpack.c.bf16 %v1462, %v1461
    %v1883 = vpack.c.bf16 %v1464, %v1463
    %v1884 = vpack.c.bf16 %v1466, %v1465
    %v1885 = vpack.c.bf16 %v1468, %v1467
    %v1886 = vpack.c.bf16 %v1470, %v1469
    %v1887 = vpack.c.bf16 %v1472, %v1471
    %v1888 = vpack.c.bf16 %v1474, %v1473
    %v1889 = vpack.c.bf16 %v1476, %v1475
    %v1890 = vpack.c.bf16 %v1478, %v1477
    %v1891 = vpack.c.bf16 %v1480, %v1479
    %v1892 = vpack.c.bf16 %v1482, %v1481
    %v1893 = vpack.c.bf16 %v1484, %v1483
    %v1894 = vpack.c.bf16 %v1486, %v1485
    %v1895 = vpack.c.bf16 %v1488, %v1487
    %v1896 = vpack.c.bf16 %v1490, %v1489
    %v1897 = vpack.c.bf16 %v1492, %v1491
    %v1898 = vpack.c.bf16 %v1494, %v1493
    %v1899 = vpack.c.bf16 %v1496, %v1495
    %v1900 = vpack.c.bf16 %v1498, %v1497
    %v1901 = vpack.c.bf16 %v1500, %v1499
    %v1902 = vpack.c.bf16 %v1502, %v1501
    %v1903 = vpack.c.bf16 %v1504, %v1503
    %v1904 = vpack.c.bf16 %v1506, %v1505
    %v1905 = vpack.c.bf16 %v1508, %v1507
    %v1906 = vpack.c.bf16 %v1510, %v1509
    %v1907 = vpack.c.bf16 %v1512, %v1511
    %v1908 = vpack.c.bf16 %v1514, %v1513
    %v1909 = vpack.c.bf16 %v1516, %v1515
    %v1910 = vpack.c.bf16 %v1518, %v1517
    %v1911 = vpack.c.bf16 %v1520, %v1519
    %v1912 = vpack.c.bf16 %v1522, %v1521
    %v1913 = vpack.c.bf16 %v1524, %v1523
    %v1914 = vpack.c.bf16 %v1526, %v1525
    %v1915 = vpack.c.bf16 %v1528, %v1527
    %v1916 = vpack.c.bf16 %v1530, %v1529
    %v1917 = vpack.c.bf16 %v1532, %v1531
    %v1918 = vpack.c.bf16 %v1534, %v1533
    %v1919 = vpack.c.bf16 %v1536, %v1535
    %v1920 = vpack.c.bf16 %v1538, %v1537
    %v1921 = vpack.c.bf16 %v1540, %v1539
    %v1922 = vpack.c.bf16 %v1542, %v1541
    %v1923 = vpack.c.bf16 %v1544, %v1543
    %v1924 = vpack.c.bf16 %v1546, %v1545
    %v1925 = vpack.c.bf16 %v1548, %v1547
    %v1926 = vpack.c.bf16 %v1550, %v1549
    %v1927 = vpack.c.bf16 %v1552, %v1551
    %v1928 = vpack.c.bf16 %v1554, %v1553
    %v1929 = vpack.c.bf16 %v1556, %v1555
    %v1930 = vpack.c.bf16 %v1558, %v1557
    %v1931 = vpack.c.bf16 %v1560, %v1559
    %v1932 = vpack.c.bf16 %v1562, %v1561
    %v1933 = vpack.c.bf16 %v1564, %v1563
    %v1934 = vpack.c.bf16 %v1566, %v1565
    %v1935 = vpack.c.bf16 %v1568, %v1567
    %v1936 = vpack.c.bf16 %v1570, %v1569
    %v1937 = vpack.c.bf16 %v1572, %v1571
    %v1938 = vpack.c.bf16 %v1574, %v1573
    %v1939 = vpack.c.bf16 %v1576, %v1575
    %v1940 = vpack.c.bf16 %v1578, %v1577
    %v1941 = vpack.c.bf16 %v1580, %v1579
    %v1942 = vpack.c.bf16 %v1582, %v1581
    %v1943 = vpack.c.bf16 %v1584, %v1583
    %v1944 = vpack.c.bf16 %v1586, %v1585
    %v1945 = vpack.c.bf16 %v1588, %v1587
    %v1946 = vpack.c.bf16 %v1590, %v1589
    %v1947 = vpack.c.bf16 %v1592, %v1591
    %v1948 = vpack.c.bf16 %v1594, %v1593
    %v1949 = vpack.c.bf16 %v1596, %v1595
    %v1950 = vpack.c.bf16 %v1598, %v1597
    %v1951 = vpack.c.bf16 %v1600, %v1599
    %v1952 = vpack.c.bf16 %v1602, %v1601
    %v1953 = vpack.c.bf16 %v1604, %v1603
    %v1954 = vpack.c.bf16 %v1606, %v1605
    %v1955 = vpack.c.bf16 %v1608, %v1607
    %v1956 = vpack.c.bf16 %v1610, %v1609
    %v1957 = vpack.c.bf16 %v1612, %v1611
    %v1958 = vpack.c.bf16 %v1614, %v1613
    %v1959 = vpack.c.bf16 %v1616, %v1615
    %v1960 = vpack.c.bf16 %v1618, %v1617
    %v1961 = vpack.c.bf16 %v1620, %v1619
    %v1962 = vpack.c.bf16 %v1622, %v1621
    %v1963 = vpack.c.bf16 %v1624, %v1623
    %v1964 = vpack.c.bf16 %v1626, %v1625
    %v1965 = vpack.c.bf16 %v1628, %v1627
    %v1966 = vpack.c.bf16 %v1630, %v1629
    %v1967 = vpack.c.bf16 %v1632, %v1631
    %v1968 = vpack.c.bf16 %v1634, %v1633
    %v1969 = vpack.c.bf16 %v1636, %v1635
    %v1970 = vpack.c.bf16 %v1638, %v1637
    %v1971 = vpack.c.bf16 %v1640, %v1639
    %v1972 = vpack.c.bf16 %v1642, %v1641
    %v1973 = vpack.c.bf16 %v1644, %v1643
    %v1974 = vpack.c.bf16 %v1646, %v1645
    %v1975 = vpack.c.bf16 %v1648, %v1647
    %v1976 = vpack.c.bf16 %v1650, %v1649
    %v1977 = vpack.c.bf16 %v1652, %v1651
    %v1978 = vpack.c.bf16 %v1654, %v1653
    %v1979 = vpack.c.bf16 %v1656, %v1655
    %v1980 = vpack.c.bf16 %v1658, %v1657
    %v1981 = vpack.c.bf16 %v1660, %v1659
    %v1982 = vpack.c.bf16 %v1662, %v1661
    %v1983 = vpack.c.bf16 %v1664, %v1663
    %v1984 = vpack.c.bf16 %v1666, %v1665
    %v1985 = vpack.c.bf16 %v1668, %v1667
    %v1986 = vpack.c.bf16 %v1670, %v1669
    %v1987 = vpack.c.bf16 %v1672, %v1671
    %v1988 = vpack.c.bf16 %v1674, %v1673
    %v1989 = vpack.c.bf16 %v1676, %v1675
    %v1990 = vpack.c.bf16 %v1678, %v1677
    %v1991 = vpack.c.bf16 %v1680, %v1679
    %v1992 = vpack.c.bf16 %v1682, %v1681
    %v1993 = vpack.c.bf16 %v1684, %v1683
    %v1994 = vpack.c.bf16 %v1686, %v1685
    %v1995 = vpack.c.bf16 %v1688, %v1687
    %v1996 = vpack.c.bf16 %v1690, %v1689
    %v1997 = vpack.c.bf16 %v1692, %v1691
    %v1998 = vpack.c.bf16 %v1694, %v1693
    %v1999 = vpack.c.bf16 %v1696, %v1695
    %v2000 = vpack.c.bf16 %v1698, %v1697
    %v2001 = vpack.c.bf16 %v1700, %v1699
    %v2002 = vpack.c.bf16 %v1702, %v1701
    %v2003 = vpack.c.bf16 %v1704, %v1703
    %v2004 = vpack.c.bf16 %v1706, %v1705
    %v2005 = vpack.c.bf16 %v1708, %v1707
    %v2006 = vpack.c.bf16 %v1710, %v1709
    %v2007 = vpack.c.bf16 %v1712, %v1711
    %v2008 = vpack.c.bf16 %v1714, %v1713
    %v2009 = vpack.c.bf16 %v1716, %v1715
    %v2010 = vpack.c.bf16 %v1718, %v1717
    %v2011 = vpack.c.bf16 %v1720, %v1719
    %v2012 = vpack.c.bf16 %v1722, %v1721
    %v2013 = vpack.c.bf16 %v1724, %v1723
    %v2014 = vpack.c.bf16 %v1726, %v1725
    %v2015 = vpack.c.bf16 %v1728, %v1727
    %v2016 = vpack.c.bf16 %v1730, %v1729
    %v2017 = vpack.c.bf16 %v1732, %v1731
    %v2018 = vpack.c.bf16 %v1734, %v1733
    %v2019 = vpack.c.bf16 %v1736, %v1735
    %v2020 = vpack.c.bf16 %v1738, %v1737
    %v2021 = vpack.c.bf16 %v1740, %v1739
    %v2022 = vpack.c.bf16 %v1742, %v1741
    %v2023 = vpack.c.bf16 %v1744, %v1743
    %v2024 = vpack.c.bf16 %v1746, %v1745
    %v2025 = vpack.c.bf16 %v1748, %v1747
    %v2026 = vpack.c.bf16 %v1750, %v1749
    %v2027 = vpack.c.bf16 %v1752, %v1751
    %v2028 = vpack.c.bf16 %v1754, %v1753
    %v2029 = vpack.c.bf16 %v1756, %v1755
    %v2030 = vpack.c.bf16 %v1758, %v1757
    %v2031 = vpack.c.bf16 %v1760, %v1759
    %v2032 = vpack.c.bf16 %v1762, %v1761
    %v2033 = vpack.c.bf16 %v1764, %v1763
    %v2034 = vpack.c.bf16 %v1766, %v1765
    %v2035 = vpack.c.bf16 %v1768, %v1767
    %v2036 = vpack.c.bf16 %v1770, %v1769
    %v2037 = vpack.c.bf16 %v1772, %v1771
    %v2038 = vpack.c.bf16 %v1774, %v1773
    %v2039 = vpack.c.bf16 %v1776, %v1775
    %v2040 = vpack.c.bf16 %v1778, %v1777
    %v2041 = vpack.c.bf16 %v1780, %v1779
    %v2042 = vpack.c.bf16 %v1782, %v1781
    %v2043 = vpack.c.bf16 %v1784, %v1783
    %v2044 = vpack.c.bf16 %v1786, %v1785
    %v2045 = vpack.c.bf16 %v1788, %v1787
    %v2046 = vpack.c.bf16 %v1790, %v1789
    %v2047 = vld [vmem:[%s4] sm:$0xf]
    %2049 = vst [vmem:[#allocation1] ss:$9 sm:$0xff] %v2047
    %v2050 = vld [vmem:[#allocation1] sm:$0xff]
    %v2051 = vld [vmem:[#allocation1 + $0x9] sm:$0xff]
    %v2052 = vld [vmem:[#allocation1 + $0x12] sm:$0xff]
    %v2053 = vld [vmem:[#allocation1 + $0x1b] sm:$0xff]
    %v2054 = vpack.i.b16 %v2050, %v2050
    %v2056 = vperm.slane %v2054, 0
    %v2057 = vpack.i.b16 %v2051, %v2051
    %v2059 = vperm.slane %v2057, 0
    %v2060 = vpack.i.b16 %v2052, %v2052
    %v2062 = vperm.slane %v2060, 0
    %v2063 = vpack.i.b16 %v2053, %v2053
    %v2065 = vperm.slane %v2063, 0
    %v2066 = vunpack.c.l.bf16 %v1791
    %v2067 = vunpack.c.h.bf16 %v1791
    %v2068 = vunpack.c.l.bf16 %v1792
    %v2069 = vunpack.c.h.bf16 %v1792
    %v2070 = vunpack.c.l.bf16 %v1793
    %v2071 = vunpack.c.h.bf16 %v1793
    %v2072 = vunpack.c.l.bf16 %v1794
    %v2073 = vunpack.c.h.bf16 %v1794
    %v2074 = vunpack.c.l.bf16 %v1795
    %v2075 = vunpack.c.h.bf16 %v1795
    %v2076 = vunpack.c.l.bf16 %v1796
    %v2077 = vunpack.c.h.bf16 %v1796
    %v2078 = vunpack.c.l.bf16 %v1797
    %v2079 = vunpack.c.h.bf16 %v1797
    %v2080 = vunpack.c.l.bf16 %v1798
    %v2081 = vunpack.c.h.bf16 %v1798
    %v2082 = vunpack.c.l.bf16 %v1799
    %v2083 = vunpack.c.h.bf16 %v1799
    %v2084 = vunpack.c.l.bf16 %v1800
    %v2085 = vunpack.c.h.bf16 %v1800
    %v2086 = vunpack.c.l.bf16 %v1801
    %v2087 = vunpack.c.h.bf16 %v1801
    %v2088 = vunpack.c.l.bf16 %v1802
    %v2089 = vunpack.c.h.bf16 %v1802
    %v2090 = vunpack.c.l.bf16 %v1803
    %v2091 = vunpack.c.h.bf16 %v1803
    %v2092 = vunpack.c.l.bf16 %v1804
    %v2093 = vunpack.c.h.bf16 %v1804
    %v2094 = vunpack.c.l.bf16 %v1805
    %v2095 = vunpack.c.h.bf16 %v1805
    %v2096 = vunpack.c.l.bf16 %v1806
    %v2097 = vunpack.c.h.bf16 %v1806
    %v2098 = vunpack.c.l.bf16 %v1807
    %v2099 = vunpack.c.h.bf16 %v1807
    %v2100 = vunpack.c.l.bf16 %v1808
    %v2101 = vunpack.c.h.bf16 %v1808
    %v2102 = vunpack.c.l.bf16 %v1809
    %v2103 = vunpack.c.h.bf16 %v1809
    %v2104 = vunpack.c.l.bf16 %v1810
    %v2105 = vunpack.c.h.bf16 %v1810
    %v2106 = vunpack.c.l.bf16 %v1811
    %v2107 = vunpack.c.h.bf16 %v1811
    %v2108 = vunpack.c.l.bf16 %v1812
    %v2109 = vunpack.c.h.bf16 %v1812
    %v2110 = vunpack.c.l.bf16 %v1813
    %v2111 = vunpack.c.h.bf16 %v1813
    %v2112 = vunpack.c.l.bf16 %v1814
    %v2113 = vunpack.c.h.bf16 %v1814
    %v2114 = vunpack.c.l.bf16 %v1815
    %v2115 = vunpack.c.h.bf16 %v1815
    %v2116 = vunpack.c.l.bf16 %v1816
    %v2117 = vunpack.c.h.bf16 %v1816
    %v2118 = vunpack.c.l.bf16 %v1817
    %v2119 = vunpack.c.h.bf16 %v1817
    %v2120 = vunpack.c.l.bf16 %v1818
    %v2121 = vunpack.c.h.bf16 %v1818
    %v2122 = vunpack.c.l.bf16 %v1819
    %v2123 = vunpack.c.h.bf16 %v1819
    %v2124 = vunpack.c.l.bf16 %v1820
    %v2125 = vunpack.c.h.bf16 %v1820
    %v2126 = vunpack.c.l.bf16 %v1821
    %v2127 = vunpack.c.h.bf16 %v1821
    %v2128 = vunpack.c.l.bf16 %v1822
    %v2129 = vunpack.c.h.bf16 %v1822
    %v2130 = vunpack.c.l.bf16 %v1823
    %v2131 = vunpack.c.h.bf16 %v1823
    %v2132 = vunpack.c.l.bf16 %v1824
    %v2133 = vunpack.c.h.bf16 %v1824
    %v2134 = vunpack.c.l.bf16 %v1825
    %v2135 = vunpack.c.h.bf16 %v1825
    %v2136 = vunpack.c.l.bf16 %v1826
    %v2137 = vunpack.c.h.bf16 %v1826
    %v2138 = vunpack.c.l.bf16 %v1827
    %v2139 = vunpack.c.h.bf16 %v1827
    %v2140 = vunpack.c.l.bf16 %v1828
    %v2141 = vunpack.c.h.bf16 %v1828
    %v2142 = vunpack.c.l.bf16 %v1829
    %v2143 = vunpack.c.h.bf16 %v1829
    %v2144 = vunpack.c.l.bf16 %v1830
    %v2145 = vunpack.c.h.bf16 %v1830
    %v2146 = vunpack.c.l.bf16 %v1831
    %v2147 = vunpack.c.h.bf16 %v1831
    %v2148 = vunpack.c.l.bf16 %v1832
    %v2149 = vunpack.c.h.bf16 %v1832
    %v2150 = vunpack.c.l.bf16 %v1833
    %v2151 = vunpack.c.h.bf16 %v1833
    %v2152 = vunpack.c.l.bf16 %v1834
    %v2153 = vunpack.c.h.bf16 %v1834
    %v2154 = vunpack.c.l.bf16 %v1835
    %v2155 = vunpack.c.h.bf16 %v1835
    %v2156 = vunpack.c.l.bf16 %v1836
    %v2157 = vunpack.c.h.bf16 %v1836
    %v2158 = vunpack.c.l.bf16 %v1837
    %v2159 = vunpack.c.h.bf16 %v1837
    %v2160 = vunpack.c.l.bf16 %v1838
    %v2161 = vunpack.c.h.bf16 %v1838
    %v2162 = vunpack.c.l.bf16 %v1839
    %v2163 = vunpack.c.h.bf16 %v1839
    %v2164 = vunpack.c.l.bf16 %v1840
    %v2165 = vunpack.c.h.bf16 %v1840
    %v2166 = vunpack.c.l.bf16 %v1841
    %v2167 = vunpack.c.h.bf16 %v1841
    %v2168 = vunpack.c.l.bf16 %v1842
    %v2169 = vunpack.c.h.bf16 %v1842
    %v2170 = vunpack.c.l.bf16 %v1843
    %v2171 = vunpack.c.h.bf16 %v1843
    %v2172 = vunpack.c.l.bf16 %v1844
    %v2173 = vunpack.c.h.bf16 %v1844
    %v2174 = vunpack.c.l.bf16 %v1845
    %v2175 = vunpack.c.h.bf16 %v1845
    %v2176 = vunpack.c.l.bf16 %v1846
    %v2177 = vunpack.c.h.bf16 %v1846
    %v2178 = vunpack.c.l.bf16 %v1847
    %v2179 = vunpack.c.h.bf16 %v1847
    %v2180 = vunpack.c.l.bf16 %v1848
    %v2181 = vunpack.c.h.bf16 %v1848
    %v2182 = vunpack.c.l.bf16 %v1849
    %v2183 = vunpack.c.h.bf16 %v1849
    %v2184 = vunpack.c.l.bf16 %v1850
    %v2185 = vunpack.c.h.bf16 %v1850
    %v2186 = vunpack.c.l.bf16 %v1851
    %v2187 = vunpack.c.h.bf16 %v1851
    %v2188 = vunpack.c.l.bf16 %v1852
    %v2189 = vunpack.c.h.bf16 %v1852
    %v2190 = vunpack.c.l.bf16 %v1853
    %v2191 = vunpack.c.h.bf16 %v1853
    %v2192 = vunpack.c.l.bf16 %v1854
    %v2193 = vunpack.c.h.bf16 %v1854
    %v2194 = vunpack.c.l.bf16 %v1855
    %v2195 = vunpack.c.h.bf16 %v1855
    %v2196 = vunpack.c.l.bf16 %v1856
    %v2197 = vunpack.c.h.bf16 %v1856
    %v2198 = vunpack.c.l.bf16 %v1857
    %v2199 = vunpack.c.h.bf16 %v1857
    %v2200 = vunpack.c.l.bf16 %v1858
    %v2201 = vunpack.c.h.bf16 %v1858
    %v2202 = vunpack.c.l.bf16 %v1859
    %v2203 = vunpack.c.h.bf16 %v1859
    %v2204 = vunpack.c.l.bf16 %v1860
    %v2205 = vunpack.c.h.bf16 %v1860
    %v2206 = vunpack.c.l.bf16 %v1861
    %v2207 = vunpack.c.h.bf16 %v1861
    %v2208 = vunpack.c.l.bf16 %v1862
    %v2209 = vunpack.c.h.bf16 %v1862
    %v2210 = vunpack.c.l.bf16 %v1863
    %v2211 = vunpack.c.h.bf16 %v1863
    %v2212 = vunpack.c.l.bf16 %v1864
    %v2213 = vunpack.c.h.bf16 %v1864
    %v2214 = vunpack.c.l.bf16 %v1865
    %v2215 = vunpack.c.h.bf16 %v1865
    %v2216 = vunpack.c.l.bf16 %v1866
    %v2217 = vunpack.c.h.bf16 %v1866
    %v2218 = vunpack.c.l.bf16 %v1867
    %v2219 = vunpack.c.h.bf16 %v1867
    %v2220 = vunpack.c.l.bf16 %v1868
    %v2221 = vunpack.c.h.bf16 %v1868
    %v2222 = vunpack.c.l.bf16 %v1869
    %v2223 = vunpack.c.h.bf16 %v1869
    %v2224 = vunpack.c.l.bf16 %v1870
    %v2225 = vunpack.c.h.bf16 %v1870
    %v2226 = vunpack.c.l.bf16 %v1871
    %v2227 = vunpack.c.h.bf16 %v1871
    %v2228 = vunpack.c.l.bf16 %v1872
    %v2229 = vunpack.c.h.bf16 %v1872
    %v2230 = vunpack.c.l.bf16 %v1873
    %v2231 = vunpack.c.h.bf16 %v1873
    %v2232 = vunpack.c.l.bf16 %v1874
    %v2233 = vunpack.c.h.bf16 %v1874
    %v2234 = vunpack.c.l.bf16 %v1875
    %v2235 = vunpack.c.h.bf16 %v1875
    %v2236 = vunpack.c.l.bf16 %v1876
    %v2237 = vunpack.c.h.bf16 %v1876
    %v2238 = vunpack.c.l.bf16 %v1877
    %v2239 = vunpack.c.h.bf16 %v1877
    %v2240 = vunpack.c.l.bf16 %v1878
    %v2241 = vunpack.c.h.bf16 %v1878
    %v2242 = vunpack.c.l.bf16 %v1879
    %v2243 = vunpack.c.h.bf16 %v1879
    %v2244 = vunpack.c.l.bf16 %v1880
    %v2245 = vunpack.c.h.bf16 %v1880
    %v2246 = vunpack.c.l.bf16 %v1881
    %v2247 = vunpack.c.h.bf16 %v1881
    %v2248 = vunpack.c.l.bf16 %v1882
    %v2249 = vunpack.c.h.bf16 %v1882
    %v2250 = vunpack.c.l.bf16 %v1883
    %v2251 = vunpack.c.h.bf16 %v1883
    %v2252 = vunpack.c.l.bf16 %v1884
    %v2253 = vunpack.c.h.bf16 %v1884
    %v2254 = vunpack.c.l.bf16 %v1885
    %v2255 = vunpack.c.h.bf16 %v1885
    %v2256 = vunpack.c.l.bf16 %v1886
    %v2257 = vunpack.c.h.bf16 %v1886
    %v2258 = vunpack.c.l.bf16 %v1887
    %v2259 = vunpack.c.h.bf16 %v1887
    %v2260 = vunpack.c.l.bf16 %v1888
    %v2261 = vunpack.c.h.bf16 %v1888
    %v2262 = vunpack.c.l.bf16 %v1889
    %v2263 = vunpack.c.h.bf16 %v1889
    %v2264 = vunpack.c.l.bf16 %v1890
    %v2265 = vunpack.c.h.bf16 %v1890
    %v2266 = vunpack.c.l.bf16 %v1891
    %v2267 = vunpack.c.h.bf16 %v1891
    %v2268 = vunpack.c.l.bf16 %v1892
    %v2269 = vunpack.c.h.bf16 %v1892
    %v2270 = vunpack.c.l.bf16 %v1893
    %v2271 = vunpack.c.h.bf16 %v1893
    %v2272 = vunpack.c.l.bf16 %v1894
    %v2273 = vunpack.c.h.bf16 %v1894
    %v2274 = vunpack.c.l.bf16 %v1895
    %v2275 = vunpack.c.h.bf16 %v1895
    %v2276 = vunpack.c.l.bf16 %v1896
    %v2277 = vunpack.c.h.bf16 %v1896
    %v2278 = vunpack.c.l.bf16 %v1897
    %v2279 = vunpack.c.h.bf16 %v1897
    %v2280 = vunpack.c.l.bf16 %v1898
    %v2281 = vunpack.c.h.bf16 %v1898
    %v2282 = vunpack.c.l.bf16 %v1899
    %v2283 = vunpack.c.h.bf16 %v1899
    %v2284 = vunpack.c.l.bf16 %v1900
    %v2285 = vunpack.c.h.bf16 %v1900
    %v2286 = vunpack.c.l.bf16 %v1901
    %v2287 = vunpack.c.h.bf16 %v1901
    %v2288 = vunpack.c.l.bf16 %v1902
    %v2289 = vunpack.c.h.bf16 %v1902
    %v2290 = vunpack.c.l.bf16 %v1903
    %v2291 = vunpack.c.h.bf16 %v1903
    %v2292 = vunpack.c.l.bf16 %v1904
    %v2293 = vunpack.c.h.bf16 %v1904
    %v2294 = vunpack.c.l.bf16 %v1905
    %v2295 = vunpack.c.h.bf16 %v1905
    %v2296 = vunpack.c.l.bf16 %v1906
    %v2297 = vunpack.c.h.bf16 %v1906
    %v2298 = vunpack.c.l.bf16 %v1907
    %v2299 = vunpack.c.h.bf16 %v1907
    %v2300 = vunpack.c.l.bf16 %v1908
    %v2301 = vunpack.c.h.bf16 %v1908
    %v2302 = vunpack.c.l.bf16 %v1909
    %v2303 = vunpack.c.h.bf16 %v1909
    %v2304 = vunpack.c.l.bf16 %v1910
    %v2305 = vunpack.c.h.bf16 %v1910
    %v2306 = vunpack.c.l.bf16 %v1911
    %v2307 = vunpack.c.h.bf16 %v1911
    %v2308 = vunpack.c.l.bf16 %v1912
    %v2309 = vunpack.c.h.bf16 %v1912
    %v2310 = vunpack.c.l.bf16 %v1913
    %v2311 = vunpack.c.h.bf16 %v1913
    %v2312 = vunpack.c.l.bf16 %v1914
    %v2313 = vunpack.c.h.bf16 %v1914
    %v2314 = vunpack.c.l.bf16 %v1915
    %v2315 = vunpack.c.h.bf16 %v1915
    %v2316 = vunpack.c.l.bf16 %v1916
    %v2317 = vunpack.c.h.bf16 %v1916
    %v2318 = vunpack.c.l.bf16 %v1917
    %v2319 = vunpack.c.h.bf16 %v1917
    %v2320 = vunpack.c.l.bf16 %v1918
    %v2321 = vunpack.c.h.bf16 %v1918
    %v2322 = vunpack.c.l.bf16 %v1919
    %v2323 = vunpack.c.h.bf16 %v1919
    %v2324 = vunpack.c.l.bf16 %v1920
    %v2325 = vunpack.c.h.bf16 %v1920
    %v2326 = vunpack.c.l.bf16 %v1921
    %v2327 = vunpack.c.h.bf16 %v1921
    %v2328 = vunpack.c.l.bf16 %v1922
    %v2329 = vunpack.c.h.bf16 %v1922
    %v2330 = vunpack.c.l.bf16 %v1923
    %v2331 = vunpack.c.h.bf16 %v1923
    %v2332 = vunpack.c.l.bf16 %v1924
    %v2333 = vunpack.c.h.bf16 %v1924
    %v2334 = vunpack.c.l.bf16 %v1925
    %v2335 = vunpack.c.h.bf16 %v1925
    %v2336 = vunpack.c.l.bf16 %v1926
    %v2337 = vunpack.c.h.bf16 %v1926
    %v2338 = vunpack.c.l.bf16 %v1927
    %v2339 = vunpack.c.h.bf16 %v1927
    %v2340 = vunpack.c.l.bf16 %v1928
    %v2341 = vunpack.c.h.bf16 %v1928
    %v2342 = vunpack.c.l.bf16 %v1929
    %v2343 = vunpack.c.h.bf16 %v1929
    %v2344 = vunpack.c.l.bf16 %v1930
    %v2345 = vunpack.c.h.bf16 %v1930
    %v2346 = vunpack.c.l.bf16 %v1931
    %v2347 = vunpack.c.h.bf16 %v1931
    %v2348 = vunpack.c.l.bf16 %v1932
    %v2349 = vunpack.c.h.bf16 %v1932
    %v2350 = vunpack.c.l.bf16 %v1933
    %v2351 = vunpack.c.h.bf16 %v1933
    %v2352 = vunpack.c.l.bf16 %v1934
    %v2353 = vunpack.c.h.bf16 %v1934
    %v2354 = vunpack.c.l.bf16 %v1935
    %v2355 = vunpack.c.h.bf16 %v1935
    %v2356 = vunpack.c.l.bf16 %v1936
    %v2357 = vunpack.c.h.bf16 %v1936
    %v2358 = vunpack.c.l.bf16 %v1937
    %v2359 = vunpack.c.h.bf16 %v1937
    %v2360 = vunpack.c.l.bf16 %v1938
    %v2361 = vunpack.c.h.bf16 %v1938
    %v2362 = vunpack.c.l.bf16 %v1939
    %v2363 = vunpack.c.h.bf16 %v1939
    %v2364 = vunpack.c.l.bf16 %v1940
    %v2365 = vunpack.c.h.bf16 %v1940
    %v2366 = vunpack.c.l.bf16 %v1941
    %v2367 = vunpack.c.h.bf16 %v1941
    %v2368 = vunpack.c.l.bf16 %v1942
    %v2369 = vunpack.c.h.bf16 %v1942
    %v2370 = vunpack.c.l.bf16 %v1943
    %v2371 = vunpack.c.h.bf16 %v1943
    %v2372 = vunpack.c.l.bf16 %v1944
    %v2373 = vunpack.c.h.bf16 %v1944
    %v2374 = vunpack.c.l.bf16 %v1945
    %v2375 = vunpack.c.h.bf16 %v1945
    %v2376 = vunpack.c.l.bf16 %v1946
    %v2377 = vunpack.c.h.bf16 %v1946
    %v2378 = vunpack.c.l.bf16 %v1947
    %v2379 = vunpack.c.h.bf16 %v1947
    %v2380 = vunpack.c.l.bf16 %v1948
    %v2381 = vunpack.c.h.bf16 %v1948
    %v2382 = vunpack.c.l.bf16 %v1949
    %v2383 = vunpack.c.h.bf16 %v1949
    %v2384 = vunpack.c.l.bf16 %v1950
    %v2385 = vunpack.c.h.bf16 %v1950
    %v2386 = vunpack.c.l.bf16 %v1951
    %v2387 = vunpack.c.h.bf16 %v1951
    %v2388 = vunpack.c.l.bf16 %v1952
    %v2389 = vunpack.c.h.bf16 %v1952
    %v2390 = vunpack.c.l.bf16 %v1953
    %v2391 = vunpack.c.h.bf16 %v1953
    %v2392 = vunpack.c.l.bf16 %v1954
    %v2393 = vunpack.c.h.bf16 %v1954
    %v2394 = vunpack.c.l.bf16 %v1955
    %v2395 = vunpack.c.h.bf16 %v1955
    %v2396 = vunpack.c.l.bf16 %v1956
    %v2397 = vunpack.c.h.bf16 %v1956
    %v2398 = vunpack.c.l.bf16 %v1957
    %v2399 = vunpack.c.h.bf16 %v1957
    %v2400 = vunpack.c.l.bf16 %v1958
    %v2401 = vunpack.c.h.bf16 %v1958
    %v2402 = vunpack.c.l.bf16 %v1959
    %v2403 = vunpack.c.h.bf16 %v1959
    %v2404 = vunpack.c.l.bf16 %v1960
    %v2405 = vunpack.c.h.bf16 %v1960
    %v2406 = vunpack.c.l.bf16 %v1961
    %v2407 = vunpack.c.h.bf16 %v1961
    %v2408 = vunpack.c.l.bf16 %v1962
    %v2409 = vunpack.c.h.bf16 %v1962
    %v2410 = vunpack.c.l.bf16 %v1963
    %v2411 = vunpack.c.h.bf16 %v1963
    %v2412 = vunpack.c.l.bf16 %v1964
    %v2413 = vunpack.c.h.bf16 %v1964
    %v2414 = vunpack.c.l.bf16 %v1965
    %v2415 = vunpack.c.h.bf16 %v1965
    %v2416 = vunpack.c.l.bf16 %v1966
    %v2417 = vunpack.c.h.bf16 %v1966
    %v2418 = vunpack.c.l.bf16 %v1967
    %v2419 = vunpack.c.h.bf16 %v1967
    %v2420 = vunpack.c.l.bf16 %v1968
    %v2421 = vunpack.c.h.bf16 %v1968
    %v2422 = vunpack.c.l.bf16 %v1969
    %v2423 = vunpack.c.h.bf16 %v1969
    %v2424 = vunpack.c.l.bf16 %v1970
    %v2425 = vunpack.c.h.bf16 %v1970
    %v2426 = vunpack.c.l.bf16 %v1971
    %v2427 = vunpack.c.h.bf16 %v1971
    %v2428 = vunpack.c.l.bf16 %v1972
    %v2429 = vunpack.c.h.bf16 %v1972
    %v2430 = vunpack.c.l.bf16 %v1973
    %v2431 = vunpack.c.h.bf16 %v1973
    %v2432 = vunpack.c.l.bf16 %v1974
    %v2433 = vunpack.c.h.bf16 %v1974
    %v2434 = vunpack.c.l.bf16 %v1975
    %v2435 = vunpack.c.h.bf16 %v1975
    %v2436 = vunpack.c.l.bf16 %v1976
    %v2437 = vunpack.c.h.bf16 %v1976
    %v2438 = vunpack.c.l.bf16 %v1977
    %v2439 = vunpack.c.h.bf16 %v1977
    %v2440 = vunpack.c.l.bf16 %v1978
    %v2441 = vunpack.c.h.bf16 %v1978
    %v2442 = vunpack.c.l.bf16 %v1979
    %v2443 = vunpack.c.h.bf16 %v1979
    %v2444 = vunpack.c.l.bf16 %v1980
    %v2445 = vunpack.c.h.bf16 %v1980
    %v2446 = vunpack.c.l.bf16 %v1981
    %v2447 = vunpack.c.h.bf16 %v1981
    %v2448 = vunpack.c.l.bf16 %v1982
    %v2449 = vunpack.c.h.bf16 %v1982
    %v2450 = vunpack.c.l.bf16 %v1983
    %v2451 = vunpack.c.h.bf16 %v1983
    %v2452 = vunpack.c.l.bf16 %v1984
    %v2453 = vunpack.c.h.bf16 %v1984
    %v2454 = vunpack.c.l.bf16 %v1985
    %v2455 = vunpack.c.h.bf16 %v1985
    %v2456 = vunpack.c.l.bf16 %v1986
    %v2457 = vunpack.c.h.bf16 %v1986
    %v2458 = vunpack.c.l.bf16 %v1987
    %v2459 = vunpack.c.h.bf16 %v1987
    %v2460 = vunpack.c.l.bf16 %v1988
    %v2461 = vunpack.c.h.bf16 %v1988
    %v2462 = vunpack.c.l.bf16 %v1989
    %v2463 = vunpack.c.h.bf16 %v1989
    %v2464 = vunpack.c.l.bf16 %v1990
    %v2465 = vunpack.c.h.bf16 %v1990
    %v2466 = vunpack.c.l.bf16 %v1991
    %v2467 = vunpack.c.h.bf16 %v1991
    %v2468 = vunpack.c.l.bf16 %v1992
    %v2469 = vunpack.c.h.bf16 %v1992
    %v2470 = vunpack.c.l.bf16 %v1993
    %v2471 = vunpack.c.h.bf16 %v1993
    %v2472 = vunpack.c.l.bf16 %v1994
    %v2473 = vunpack.c.h.bf16 %v1994
    %v2474 = vunpack.c.l.bf16 %v1995
    %v2475 = vunpack.c.h.bf16 %v1995
    %v2476 = vunpack.c.l.bf16 %v1996
    %v2477 = vunpack.c.h.bf16 %v1996
    %v2478 = vunpack.c.l.bf16 %v1997
    %v2479 = vunpack.c.h.bf16 %v1997
    %v2480 = vunpack.c.l.bf16 %v1998
    %v2481 = vunpack.c.h.bf16 %v1998
    %v2482 = vunpack.c.l.bf16 %v1999
    %v2483 = vunpack.c.h.bf16 %v1999
    %v2484 = vunpack.c.l.bf16 %v2000
    %v2485 = vunpack.c.h.bf16 %v2000
    %v2486 = vunpack.c.l.bf16 %v2001
    %v2487 = vunpack.c.h.bf16 %v2001
    %v2488 = vunpack.c.l.bf16 %v2002
    %v2489 = vunpack.c.h.bf16 %v2002
    %v2490 = vunpack.c.l.bf16 %v2003
    %v2491 = vunpack.c.h.bf16 %v2003
    %v2492 = vunpack.c.l.bf16 %v2004
    %v2493 = vunpack.c.h.bf16 %v2004
    %v2494 = vunpack.c.l.bf16 %v2005
    %v2495 = vunpack.c.h.bf16 %v2005
    %v2496 = vunpack.c.l.bf16 %v2006
    %v2497 = vunpack.c.h.bf16 %v2006
    %v2498 = vunpack.c.l.bf16 %v2007
    %v2499 = vunpack.c.h.bf16 %v2007
    %v2500 = vunpack.c.l.bf16 %v2008
    %v2501 = vunpack.c.h.bf16 %v2008
    %v2502 = vunpack.c.l.bf16 %v2009
    %v2503 = vunpack.c.h.bf16 %v2009
    %v2504 = vunpack.c.l.bf16 %v2010
    %v2505 = vunpack.c.h.bf16 %v2010
    %v2506 = vunpack.c.l.bf16 %v2011
    %v2507 = vunpack.c.h.bf16 %v2011
    %v2508 = vunpack.c.l.bf16 %v2012
    %v2509 = vunpack.c.h.bf16 %v2012
    %v2510 = vunpack.c.l.bf16 %v2013
    %v2511 = vunpack.c.h.bf16 %v2013
    %v2512 = vunpack.c.l.bf16 %v2014
    %v2513 = vunpack.c.h.bf16 %v2014
    %v2514 = vunpack.c.l.bf16 %v2015
    %v2515 = vunpack.c.h.bf16 %v2015
    %v2516 = vunpack.c.l.bf16 %v2016
    %v2517 = vunpack.c.h.bf16 %v2016
    %v2518 = vunpack.c.l.bf16 %v2017
    %v2519 = vunpack.c.h.bf16 %v2017
    %v2520 = vunpack.c.l.bf16 %v2018
    %v2521 = vunpack.c.h.bf16 %v2018
    %v2522 = vunpack.c.l.bf16 %v2019
    %v2523 = vunpack.c.h.bf16 %v2019
    %v2524 = vunpack.c.l.bf16 %v2020
    %v2525 = vunpack.c.h.bf16 %v2020
    %v2526 = vunpack.c.l.bf16 %v2021
    %v2527 = vunpack.c.h.bf16 %v2021
    %v2528 = vunpack.c.l.bf16 %v2022
    %v2529 = vunpack.c.h.bf16 %v2022
    %v2530 = vunpack.c.l.bf16 %v2023
    %v2531 = vunpack.c.h.bf16 %v2023
    %v2532 = vunpack.c.l.bf16 %v2024
    %v2533 = vunpack.c.h.bf16 %v2024
    %v2534 = vunpack.c.l.bf16 %v2025
    %v2535 = vunpack.c.h.bf16 %v2025
    %v2536 = vunpack.c.l.bf16 %v2026
    %v2537 = vunpack.c.h.bf16 %v2026
    %v2538 = vunpack.c.l.bf16 %v2027
    %v2539 = vunpack.c.h.bf16 %v2027
    %v2540 = vunpack.c.l.bf16 %v2028
    %v2541 = vunpack.c.h.bf16 %v2028
    %v2542 = vunpack.c.l.bf16 %v2029
    %v2543 = vunpack.c.h.bf16 %v2029
    %v2544 = vunpack.c.l.bf16 %v2030
    %v2545 = vunpack.c.h.bf16 %v2030
    %v2546 = vunpack.c.l.bf16 %v2031
    %v2547 = vunpack.c.h.bf16 %v2031
    %v2548 = vunpack.c.l.bf16 %v2032
    %v2549 = vunpack.c.h.bf16 %v2032
    %v2550 = vunpack.c.l.bf16 %v2033
    %v2551 = vunpack.c.h.bf16 %v2033
    %v2552 = vunpack.c.l.bf16 %v2034
    %v2553 = vunpack.c.h.bf16 %v2034
    %v2554 = vunpack.c.l.bf16 %v2035
    %v2555 = vunpack.c.h.bf16 %v2035
    %v2556 = vunpack.c.l.bf16 %v2036
    %v2557 = vunpack.c.h.bf16 %v2036
    %v2558 = vunpack.c.l.bf16 %v2037
    %v2559 = vunpack.c.h.bf16 %v2037
    %v2560 = vunpack.c.l.bf16 %v2038
    %v2561 = vunpack.c.h.bf16 %v2038
    %v2562 = vunpack.c.l.bf16 %v2039
    %v2563 = vunpack.c.h.bf16 %v2039
    %v2564 = vunpack.c.l.bf16 %v2040
    %v2565 = vunpack.c.h.bf16 %v2040
    %v2566 = vunpack.c.l.bf16 %v2041
    %v2567 = vunpack.c.h.bf16 %v2041
    %v2568 = vunpack.c.l.bf16 %v2042
    %v2569 = vunpack.c.h.bf16 %v2042
    %v2570 = vunpack.c.l.bf16 %v2043
    %v2571 = vunpack.c.h.bf16 %v2043
    %v2572 = vunpack.c.l.bf16 %v2044
    %v2573 = vunpack.c.h.bf16 %v2044
    %v2574 = vunpack.c.l.bf16 %v2045
    %v2575 = vunpack.c.h.bf16 %v2045
    %v2576 = vunpack.c.l.bf16 %v2046
    %v2577 = vunpack.c.h.bf16 %v2046
    %v2578 = vunpack.c.l.bf16 %v2056
    %v2579 = vunpack.c.l.bf16 %v2059
    %v2580 = vunpack.c.l.bf16 %v2062
    %v2581 = vunpack.c.l.bf16 %v2065
    %v2582 = vmul.f32 %v2066, %v2578
    %v2583 = vmul.f32 %v2067, %v2579
    %v2584 = vmul.f32 %v2068, %v2580
    %v2585 = vmul.f32 %v2069, %v2581
    %v2586 = vmul.f32 %v2070, %v2578
    %v2587 = vmul.f32 %v2071, %v2579
    %v2588 = vmul.f32 %v2072, %v2580
    %v2589 = vmul.f32 %v2073, %v2581
    %v2590 = vmul.f32 %v2074, %v2578
    %v2591 = vmul.f32 %v2075, %v2579
    %v2592 = vmul.f32 %v2076, %v2580
    %v2593 = vmul.f32 %v2077, %v2581
    %v2594 = vmul.f32 %v2078, %v2578
    %v2595 = vmul.f32 %v2079, %v2579
    %v2596 = vmul.f32 %v2080, %v2580
    %v2597 = vmul.f32 %v2081, %v2581
    %v2598 = vmul.f32 %v2082, %v2578
    %v2599 = vmul.f32 %v2083, %v2579
    %v2600 = vmul.f32 %v2084, %v2580
    %v2601 = vmul.f32 %v2085, %v2581
    %v2602 = vmul.f32 %v2086, %v2578
    %v2603 = vmul.f32 %v2087, %v2579
    %v2604 = vmul.f32 %v2088, %v2580
    %v2605 = vmul.f32 %v2089, %v2581
    %v2606 = vmul.f32 %v2090, %v2578
    %v2607 = vmul.f32 %v2091, %v2579
    %v2608 = vmul.f32 %v2092, %v2580
    %v2609 = vmul.f32 %v2093, %v2581
    %v2610 = vmul.f32 %v2094, %v2578
    %v2611 = vmul.f32 %v2095, %v2579
    %v2612 = vmul.f32 %v2096, %v2580
    %v2613 = vmul.f32 %v2097, %v2581
    %v2614 = vmul.f32 %v2098, %v2578
    %v2615 = vmul.f32 %v2099, %v2579
    %v2616 = vmul.f32 %v2100, %v2580
    %v2617 = vmul.f32 %v2101, %v2581
    %v2618 = vmul.f32 %v2102, %v2578
    %v2619 = vmul.f32 %v2103, %v2579
    %v2620 = vmul.f32 %v2104, %v2580
    %v2621 = vmul.f32 %v2105, %v2581
    %v2622 = vmul.f32 %v2106, %v2578
    %v2623 = vmul.f32 %v2107, %v2579
    %v2624 = vmul.f32 %v2108, %v2580
    %v2625 = vmul.f32 %v2109, %v2581
    %v2626 = vmul.f32 %v2110, %v2578
    %v2627 = vmul.f32 %v2111, %v2579
    %v2628 = vmul.f32 %v2112, %v2580
    %v2629 = vmul.f32 %v2113, %v2581
    %v2630 = vmul.f32 %v2114, %v2578
    %v2631 = vmul.f32 %v2115, %v2579
    %v2632 = vmul.f32 %v2116, %v2580
    %v2633 = vmul.f32 %v2117, %v2581
    %v2634 = vmul.f32 %v2118, %v2578
    %v2635 = vmul.f32 %v2119, %v2579
    %v2636 = vmul.f32 %v2120, %v2580
    %v2637 = vmul.f32 %v2121, %v2581
    %v2638 = vmul.f32 %v2122, %v2578
    %v2639 = vmul.f32 %v2123, %v2579
    %v2640 = vmul.f32 %v2124, %v2580
    %v2641 = vmul.f32 %v2125, %v2581
    %v2642 = vmul.f32 %v2126, %v2578
    %v2643 = vmul.f32 %v2127, %v2579
    %v2644 = vmul.f32 %v2128, %v2580
    %v2645 = vmul.f32 %v2129, %v2581
    %v2646 = vmul.f32 %v2130, %v2578
    %v2647 = vmul.f32 %v2131, %v2579
    %v2648 = vmul.f32 %v2132, %v2580
    %v2649 = vmul.f32 %v2133, %v2581
    %v2650 = vmul.f32 %v2134, %v2578
    %v2651 = vmul.f32 %v2135, %v2579
    %v2652 = vmul.f32 %v2136, %v2580
    %v2653 = vmul.f32 %v2137, %v2581
    %v2654 = vmul.f32 %v2138, %v2578
    %v2655 = vmul.f32 %v2139, %v2579
    %v2656 = vmul.f32 %v2140, %v2580
    %v2657 = vmul.f32 %v2141, %v2581
    %v2658 = vmul.f32 %v2142, %v2578
    %v2659 = vmul.f32 %v2143, %v2579
    %v2660 = vmul.f32 %v2144, %v2580
    %v2661 = vmul.f32 %v2145, %v2581
    %v2662 = vmul.f32 %v2146, %v2578
    %v2663 = vmul.f32 %v2147, %v2579
    %v2664 = vmul.f32 %v2148, %v2580
    %v2665 = vmul.f32 %v2149, %v2581
    %v2666 = vmul.f32 %v2150, %v2578
    %v2667 = vmul.f32 %v2151, %v2579
    %v2668 = vmul.f32 %v2152, %v2580
    %v2669 = vmul.f32 %v2153, %v2581
    %v2670 = vmul.f32 %v2154, %v2578
    %v2671 = vmul.f32 %v2155, %v2579
    %v2672 = vmul.f32 %v2156, %v2580
    %v2673 = vmul.f32 %v2157, %v2581
    %v2674 = vmul.f32 %v2158, %v2578
    %v2675 = vmul.f32 %v2159, %v2579
    %v2676 = vmul.f32 %v2160, %v2580
    %v2677 = vmul.f32 %v2161, %v2581
    %v2678 = vmul.f32 %v2162, %v2578
    %v2679 = vmul.f32 %v2163, %v2579
    %v2680 = vmul.f32 %v2164, %v2580
    %v2681 = vmul.f32 %v2165, %v2581
    %v2682 = vmul.f32 %v2166, %v2578
    %v2683 = vmul.f32 %v2167, %v2579
    %v2684 = vmul.f32 %v2168, %v2580
    %v2685 = vmul.f32 %v2169, %v2581
    %v2686 = vmul.f32 %v2170, %v2578
    %v2687 = vmul.f32 %v2171, %v2579
    %v2688 = vmul.f32 %v2172, %v2580
    %v2689 = vmul.f32 %v2173, %v2581
    %v2690 = vmul.f32 %v2174, %v2578
    %v2691 = vmul.f32 %v2175, %v2579
    %v2692 = vmul.f32 %v2176, %v2580
    %v2693 = vmul.f32 %v2177, %v2581
    %v2694 = vmul.f32 %v2178, %v2578
    %v2695 = vmul.f32 %v2179, %v2579
    %v2696 = vmul.f32 %v2180, %v2580
    %v2697 = vmul.f32 %v2181, %v2581
    %v2698 = vmul.f32 %v2182, %v2578
    %v2699 = vmul.f32 %v2183, %v2579
    %v2700 = vmul.f32 %v2184, %v2580
    %v2701 = vmul.f32 %v2185, %v2581
    %v2702 = vmul.f32 %v2186, %v2578
    %v2703 = vmul.f32 %v2187, %v2579
    %v2704 = vmul.f32 %v2188, %v2580
    %v2705 = vmul.f32 %v2189, %v2581
    %v2706 = vmul.f32 %v2190, %v2578
    %v2707 = vmul.f32 %v2191, %v2579
    %v2708 = vmul.f32 %v2192, %v2580
    %v2709 = vmul.f32 %v2193, %v2581
    %v2710 = vmul.f32 %v2194, %v2578
    %v2711 = vmul.f32 %v2195, %v2579
    %v2712 = vmul.f32 %v2196, %v2580
    %v2713 = vmul.f32 %v2197, %v2581
    %v2714 = vmul.f32 %v2198, %v2578
    %v2715 = vmul.f32 %v2199, %v2579
    %v2716 = vmul.f32 %v2200, %v2580
    %v2717 = vmul.f32 %v2201, %v2581
    %v2718 = vmul.f32 %v2202, %v2578
    %v2719 = vmul.f32 %v2203, %v2579
    %v2720 = vmul.f32 %v2204, %v2580
    %v2721 = vmul.f32 %v2205, %v2581
    %v2722 = vmul.f32 %v2206, %v2578
    %v2723 = vmul.f32 %v2207, %v2579
    %v2724 = vmul.f32 %v2208, %v2580
    %v2725 = vmul.f32 %v2209, %v2581
    %v2726 = vmul.f32 %v2210, %v2578
    %v2727 = vmul.f32 %v2211, %v2579
    %v2728 = vmul.f32 %v2212, %v2580
    %v2729 = vmul.f32 %v2213, %v2581
    %v2730 = vmul.f32 %v2214, %v2578
    %v2731 = vmul.f32 %v2215, %v2579
    %v2732 = vmul.f32 %v2216, %v2580
    %v2733 = vmul.f32 %v2217, %v2581
    %v2734 = vmul.f32 %v2218, %v2578
    %v2735 = vmul.f32 %v2219, %v2579
    %v2736 = vmul.f32 %v2220, %v2580
    %v2737 = vmul.f32 %v2221, %v2581
    %v2738 = vmul.f32 %v2222, %v2578
    %v2739 = vmul.f32 %v2223, %v2579
    %v2740 = vmul.f32 %v2224, %v2580
    %v2741 = vmul.f32 %v2225, %v2581
    %v2742 = vmul.f32 %v2226, %v2578
    %v2743 = vmul.f32 %v2227, %v2579
    %v2744 = vmul.f32 %v2228, %v2580
    %v2745 = vmul.f32 %v2229, %v2581
    %v2746 = vmul.f32 %v2230, %v2578
    %v2747 = vmul.f32 %v2231, %v2579
    %v2748 = vmul.f32 %v2232, %v2580
    %v2749 = vmul.f32 %v2233, %v2581
    %v2750 = vmul.f32 %v2234, %v2578
    %v2751 = vmul.f32 %v2235, %v2579
    %v2752 = vmul.f32 %v2236, %v2580
    %v2753 = vmul.f32 %v2237, %v2581
    %v2754 = vmul.f32 %v2238, %v2578
    %v2755 = vmul.f32 %v2239, %v2579
    %v2756 = vmul.f32 %v2240, %v2580
    %v2757 = vmul.f32 %v2241, %v2581
    %v2758 = vmul.f32 %v2242, %v2578
    %v2759 = vmul.f32 %v2243, %v2579
    %v2760 = vmul.f32 %v2244, %v2580
    %v2761 = vmul.f32 %v2245, %v2581
    %v2762 = vmul.f32 %v2246, %v2578
    %v2763 = vmul.f32 %v2247, %v2579
    %v2764 = vmul.f32 %v2248, %v2580
    %v2765 = vmul.f32 %v2249, %v2581
    %v2766 = vmul.f32 %v2250, %v2578
    %v2767 = vmul.f32 %v2251, %v2579
    %v2768 = vmul.f32 %v2252, %v2580
    %v2769 = vmul.f32 %v2253, %v2581
    %v2770 = vmul.f32 %v2254, %v2578
    %v2771 = vmul.f32 %v2255, %v2579
    %v2772 = vmul.f32 %v2256, %v2580
    %v2773 = vmul.f32 %v2257, %v2581
    %v2774 = vmul.f32 %v2258, %v2578
    %v2775 = vmul.f32 %v2259, %v2579
    %v2776 = vmul.f32 %v2260, %v2580
    %v2777 = vmul.f32 %v2261, %v2581
    %v2778 = vmul.f32 %v2262, %v2578
    %v2779 = vmul.f32 %v2263, %v2579
    %v2780 = vmul.f32 %v2264, %v2580
    %v2781 = vmul.f32 %v2265, %v2581
    %v2782 = vmul.f32 %v2266, %v2578
    %v2783 = vmul.f32 %v2267, %v2579
    %v2784 = vmul.f32 %v2268, %v2580
    %v2785 = vmul.f32 %v2269, %v2581
    %v2786 = vmul.f32 %v2270, %v2578
    %v2787 = vmul.f32 %v2271, %v2579
    %v2788 = vmul.f32 %v2272, %v2580
    %v2789 = vmul.f32 %v2273, %v2581
    %v2790 = vmul.f32 %v2274, %v2578
    %v2791 = vmul.f32 %v2275, %v2579
    %v2792 = vmul.f32 %v2276, %v2580
    %v2793 = vmul.f32 %v2277, %v2581
    %v2794 = vmul.f32 %v2278, %v2578
    %v2795 = vmul.f32 %v2279, %v2579
    %v2796 = vmul.f32 %v2280, %v2580
    %v2797 = vmul.f32 %v2281, %v2581
    %v2798 = vmul.f32 %v2282, %v2578
    %v2799 = vmul.f32 %v2283, %v2579
    %v2800 = vmul.f32 %v2284, %v2580
    %v2801 = vmul.f32 %v2285, %v2581
    %v2802 = vmul.f32 %v2286, %v2578
    %v2803 = vmul.f32 %v2287, %v2579
    %v2804 = vmul.f32 %v2288, %v2580
    %v2805 = vmul.f32 %v2289, %v2581
    %v2806 = vmul.f32 %v2290, %v2578
    %v2807 = vmul.f32 %v2291, %v2579
    %v2808 = vmul.f32 %v2292, %v2580
    %v2809 = vmul.f32 %v2293, %v2581
    %v2810 = vmul.f32 %v2294, %v2578
    %v2811 = vmul.f32 %v2295, %v2579
    %v2812 = vmul.f32 %v2296, %v2580
    %v2813 = vmul.f32 %v2297, %v2581
    %v2814 = vmul.f32 %v2298, %v2578
    %v2815 = vmul.f32 %v2299, %v2579
    %v2816 = vmul.f32 %v2300, %v2580
    %v2817 = vmul.f32 %v2301, %v2581
    %v2818 = vmul.f32 %v2302, %v2578
    %v2819 = vmul.f32 %v2303, %v2579
    %v2820 = vmul.f32 %v2304, %v2580
    %v2821 = vmul.f32 %v2305, %v2581
    %v2822 = vmul.f32 %v2306, %v2578
    %v2823 = vmul.f32 %v2307, %v2579
    %v2824 = vmul.f32 %v2308, %v2580
    %v2825 = vmul.f32 %v2309, %v2581
    %v2826 = vmul.f32 %v2310, %v2578
    %v2827 = vmul.f32 %v2311, %v2579
    %v2828 = vmul.f32 %v2312, %v2580
    %v2829 = vmul.f32 %v2313, %v2581
    %v2830 = vmul.f32 %v2314, %v2578
    %v2831 = vmul.f32 %v2315, %v2579
    %v2832 = vmul.f32 %v2316, %v2580
    %v2833 = vmul.f32 %v2317, %v2581
    %v2834 = vmul.f32 %v2318, %v2578
    %v2835 = vmul.f32 %v2319, %v2579
    %v2836 = vmul.f32 %v2320, %v2580
    %v2837 = vmul.f32 %v2321, %v2581
    %v2838 = vmul.f32 %v2322, %v2578
    %v2839 = vmul.f32 %v2323, %v2579
    %v2840 = vmul.f32 %v2324, %v2580
    %v2841 = vmul.f32 %v2325, %v2581
    %v2842 = vmul.f32 %v2326, %v2578
    %v2843 = vmul.f32 %v2327, %v2579
    %v2844 = vmul.f32 %v2328, %v2580
    %v2845 = vmul.f32 %v2329, %v2581
    %v2846 = vmul.f32 %v2330, %v2578
    %v2847 = vmul.f32 %v2331, %v2579
    %v2848 = vmul.f32 %v2332, %v2580
    %v2849 = vmul.f32 %v2333, %v2581
    %v2850 = vmul.f32 %v2334, %v2578
    %v2851 = vmul.f32 %v2335, %v2579
    %v2852 = vmul.f32 %v2336, %v2580
    %v2853 = vmul.f32 %v2337, %v2581
    %v2854 = vmul.f32 %v2338, %v2578
    %v2855 = vmul.f32 %v2339, %v2579
    %v2856 = vmul.f32 %v2340, %v2580
    %v2857 = vmul.f32 %v2341, %v2581
    %v2858 = vmul.f32 %v2342, %v2578
    %v2859 = vmul.f32 %v2343, %v2579
    %v2860 = vmul.f32 %v2344, %v2580
    %v2861 = vmul.f32 %v2345, %v2581
    %v2862 = vmul.f32 %v2346, %v2578
    %v2863 = vmul.f32 %v2347, %v2579
    %v2864 = vmul.f32 %v2348, %v2580
    %v2865 = vmul.f32 %v2349, %v2581
    %v2866 = vmul.f32 %v2350, %v2578
    %v2867 = vmul.f32 %v2351, %v2579
    %v2868 = vmul.f32 %v2352, %v2580
    %v2869 = vmul.f32 %v2353, %v2581
    %v2870 = vmul.f32 %v2354, %v2578
    %v2871 = vmul.f32 %v2355, %v2579
    %v2872 = vmul.f32 %v2356, %v2580
    %v2873 = vmul.f32 %v2357, %v2581
    %v2874 = vmul.f32 %v2358, %v2578
    %v2875 = vmul.f32 %v2359, %v2579
    %v2876 = vmul.f32 %v2360, %v2580
    %v2877 = vmul.f32 %v2361, %v2581
    %v2878 = vmul.f32 %v2362, %v2578
    %v2879 = vmul.f32 %v2363, %v2579
    %v2880 = vmul.f32 %v2364, %v2580
    %v2881 = vmul.f32 %v2365, %v2581
    %v2882 = vmul.f32 %v2366, %v2578
    %v2883 = vmul.f32 %v2367, %v2579
    %v2884 = vmul.f32 %v2368, %v2580
    %v2885 = vmul.f32 %v2369, %v2581
    %v2886 = vmul.f32 %v2370, %v2578
    %v2887 = vmul.f32 %v2371, %v2579
    %v2888 = vmul.f32 %v2372, %v2580
    %v2889 = vmul.f32 %v2373, %v2581
    %v2890 = vmul.f32 %v2374, %v2578
    %v2891 = vmul.f32 %v2375, %v2579
    %v2892 = vmul.f32 %v2376, %v2580
    %v2893 = vmul.f32 %v2377, %v2581
    %v2894 = vmul.f32 %v2378, %v2578
    %v2895 = vmul.f32 %v2379, %v2579
    %v2896 = vmul.f32 %v2380, %v2580
    %v2897 = vmul.f32 %v2381, %v2581
    %v2898 = vmul.f32 %v2382, %v2578
    %v2899 = vmul.f32 %v2383, %v2579
    %v2900 = vmul.f32 %v2384, %v2580
    %v2901 = vmul.f32 %v2385, %v2581
    %v2902 = vmul.f32 %v2386, %v2578
    %v2903 = vmul.f32 %v2387, %v2579
    %v2904 = vmul.f32 %v2388, %v2580
    %v2905 = vmul.f32 %v2389, %v2581
    %v2906 = vmul.f32 %v2390, %v2578
    %v2907 = vmul.f32 %v2391, %v2579
    %v2908 = vmul.f32 %v2392, %v2580
    %v2909 = vmul.f32 %v2393, %v2581
    %v2910 = vmul.f32 %v2394, %v2578
    %v2911 = vmul.f32 %v2395, %v2579
    %v2912 = vmul.f32 %v2396, %v2580
    %v2913 = vmul.f32 %v2397, %v2581
    %v2914 = vmul.f32 %v2398, %v2578
    %v2915 = vmul.f32 %v2399, %v2579
    %v2916 = vmul.f32 %v2400, %v2580
    %v2917 = vmul.f32 %v2401, %v2581
    %v2918 = vmul.f32 %v2402, %v2578
    %v2919 = vmul.f32 %v2403, %v2579
    %v2920 = vmul.f32 %v2404, %v2580
    %v2921 = vmul.f32 %v2405, %v2581
    %v2922 = vmul.f32 %v2406, %v2578
    %v2923 = vmul.f32 %v2407, %v2579
    %v2924 = vmul.f32 %v2408, %v2580
    %v2925 = vmul.f32 %v2409, %v2581
    %v2926 = vmul.f32 %v2410, %v2578
    %v2927 = vmul.f32 %v2411, %v2579
    %v2928 = vmul.f32 %v2412, %v2580
    %v2929 = vmul.f32 %v2413, %v2581
    %v2930 = vmul.f32 %v2414, %v2578
    %v2931 = vmul.f32 %v2415, %v2579
    %v2932 = vmul.f32 %v2416, %v2580
    %v2933 = vmul.f32 %v2417, %v2581
    %v2934 = vmul.f32 %v2418, %v2578
    %v2935 = vmul.f32 %v2419, %v2579
    %v2936 = vmul.f32 %v2420, %v2580
    %v2937 = vmul.f32 %v2421, %v2581
    %v2938 = vmul.f32 %v2422, %v2578
    %v2939 = vmul.f32 %v2423, %v2579
    %v2940 = vmul.f32 %v2424, %v2580
    %v2941 = vmul.f32 %v2425, %v2581
    %v2942 = vmul.f32 %v2426, %v2578
    %v2943 = vmul.f32 %v2427, %v2579
    %v2944 = vmul.f32 %v2428, %v2580
    %v2945 = vmul.f32 %v2429, %v2581
    %v2946 = vmul.f32 %v2430, %v2578
    %v2947 = vmul.f32 %v2431, %v2579
    %v2948 = vmul.f32 %v2432, %v2580
    %v2949 = vmul.f32 %v2433, %v2581
    %v2950 = vmul.f32 %v2434, %v2578
    %v2951 = vmul.f32 %v2435, %v2579
    %v2952 = vmul.f32 %v2436, %v2580
    %v2953 = vmul.f32 %v2437, %v2581
    %v2954 = vmul.f32 %v2438, %v2578
    %v2955 = vmul.f32 %v2439, %v2579
    %v2956 = vmul.f32 %v2440, %v2580
    %v2957 = vmul.f32 %v2441, %v2581
    %v2958 = vmul.f32 %v2442, %v2578
    %v2959 = vmul.f32 %v2443, %v2579
    %v2960 = vmul.f32 %v2444, %v2580
    %v2961 = vmul.f32 %v2445, %v2581
    %v2962 = vmul.f32 %v2446, %v2578
    %v2963 = vmul.f32 %v2447, %v2579
    %v2964 = vmul.f32 %v2448, %v2580
    %v2965 = vmul.f32 %v2449, %v2581
    %v2966 = vmul.f32 %v2450, %v2578
    %v2967 = vmul.f32 %v2451, %v2579
    %v2968 = vmul.f32 %v2452, %v2580
    %v2969 = vmul.f32 %v2453, %v2581
    %v2970 = vmul.f32 %v2454, %v2578
    %v2971 = vmul.f32 %v2455, %v2579
    %v2972 = vmul.f32 %v2456, %v2580
    %v2973 = vmul.f32 %v2457, %v2581
    %v2974 = vmul.f32 %v2458, %v2578
    %v2975 = vmul.f32 %v2459, %v2579
    %v2976 = vmul.f32 %v2460, %v2580
    %v2977 = vmul.f32 %v2461, %v2581
    %v2978 = vmul.f32 %v2462, %v2578
    %v2979 = vmul.f32 %v2463, %v2579
    %v2980 = vmul.f32 %v2464, %v2580
    %v2981 = vmul.f32 %v2465, %v2581
    %v2982 = vmul.f32 %v2466, %v2578
    %v2983 = vmul.f32 %v2467, %v2579
    %v2984 = vmul.f32 %v2468, %v2580
    %v2985 = vmul.f32 %v2469, %v2581
    %v2986 = vmul.f32 %v2470, %v2578
    %v2987 = vmul.f32 %v2471, %v2579
    %v2988 = vmul.f32 %v2472, %v2580
    %v2989 = vmul.f32 %v2473, %v2581
    %v2990 = vmul.f32 %v2474, %v2578
    %v2991 = vmul.f32 %v2475, %v2579
    %v2992 = vmul.f32 %v2476, %v2580
    %v2993 = vmul.f32 %v2477, %v2581
    %v2994 = vmul.f32 %v2478, %v2578
    %v2995 = vmul.f32 %v2479, %v2579
    %v2996 = vmul.f32 %v2480, %v2580
    %v2997 = vmul.f32 %v2481, %v2581
    %v2998 = vmul.f32 %v2482, %v2578
    %v2999 = vmul.f32 %v2483, %v2579
    %v3000 = vmul.f32 %v2484, %v2580
    %v3001 = vmul.f32 %v2485, %v2581
    %v3002 = vmul.f32 %v2486, %v2578
    %v3003 = vmul.f32 %v2487, %v2579
    %v3004 = vmul.f32 %v2488, %v2580
    %v3005 = vmul.f32 %v2489, %v2581
    %v3006 = vmul.f32 %v2490, %v2578
    %v3007 = vmul.f32 %v2491, %v2579
    %v3008 = vmul.f32 %v2492, %v2580
    %v3009 = vmul.f32 %v2493, %v2581
    %v3010 = vmul.f32 %v2494, %v2578
    %v3011 = vmul.f32 %v2495, %v2579
    %v3012 = vmul.f32 %v2496, %v2580
    %v3013 = vmul.f32 %v2497, %v2581
    %v3014 = vmul.f32 %v2498, %v2578
    %v3015 = vmul.f32 %v2499, %v2579
    %v3016 = vmul.f32 %v2500, %v2580
    %v3017 = vmul.f32 %v2501, %v2581
    %v3018 = vmul.f32 %v2502, %v2578
    %v3019 = vmul.f32 %v2503, %v2579
    %v3020 = vmul.f32 %v2504, %v2580
    %v3021 = vmul.f32 %v2505, %v2581
    %v3022 = vmul.f32 %v2506, %v2578
    %v3023 = vmul.f32 %v2507, %v2579
    %v3024 = vmul.f32 %v2508, %v2580
    %v3025 = vmul.f32 %v2509, %v2581
    %v3026 = vmul.f32 %v2510, %v2578
    %v3027 = vmul.f32 %v2511, %v2579
    %v3028 = vmul.f32 %v2512, %v2580
    %v3029 = vmul.f32 %v2513, %v2581
    %v3030 = vmul.f32 %v2514, %v2578
    %v3031 = vmul.f32 %v2515, %v2579
    %v3032 = vmul.f32 %v2516, %v2580
    %v3033 = vmul.f32 %v2517, %v2581
    %v3034 = vmul.f32 %v2518, %v2578
    %v3035 = vmul.f32 %v2519, %v2579
    %v3036 = vmul.f32 %v2520, %v2580
    %v3037 = vmul.f32 %v2521, %v2581
    %v3038 = vmul.f32 %v2522, %v2578
    %v3039 = vmul.f32 %v2523, %v2579
    %v3040 = vmul.f32 %v2524, %v2580
    %v3041 = vmul.f32 %v2525, %v2581
    %v3042 = vmul.f32 %v2526, %v2578
    %v3043 = vmul.f32 %v2527, %v2579
    %v3044 = vmul.f32 %v2528, %v2580
    %v3045 = vmul.f32 %v2529, %v2581
    %v3046 = vmul.f32 %v2530, %v2578
    %v3047 = vmul.f32 %v2531, %v2579
    %v3048 = vmul.f32 %v2532, %v2580
    %v3049 = vmul.f32 %v2533, %v2581
    %v3050 = vmul.f32 %v2534, %v2578
    %v3051 = vmul.f32 %v2535, %v2579
    %v3052 = vmul.f32 %v2536, %v2580
    %v3053 = vmul.f32 %v2537, %v2581
    %v3054 = vmul.f32 %v2538, %v2578
    %v3055 = vmul.f32 %v2539, %v2579
    %v3056 = vmul.f32 %v2540, %v2580
    %v3057 = vmul.f32 %v2541, %v2581
    %v3058 = vmul.f32 %v2542, %v2578
    %v3059 = vmul.f32 %v2543, %v2579
    %v3060 = vmul.f32 %v2544, %v2580
    %v3061 = vmul.f32 %v2545, %v2581
    %v3062 = vmul.f32 %v2546, %v2578
    %v3063 = vmul.f32 %v2547, %v2579
    %v3064 = vmul.f32 %v2548, %v2580
    %v3065 = vmul.f32 %v2549, %v2581
    %v3066 = vmul.f32 %v2550, %v2578
    %v3067 = vmul.f32 %v2551, %v2579
    %v3068 = vmul.f32 %v2552, %v2580
    %v3069 = vmul.f32 %v2553, %v2581
    %v3070 = vmul.f32 %v2554, %v2578
    %v3071 = vmul.f32 %v2555, %v2579
    %v3072 = vmul.f32 %v2556, %v2580
    %v3073 = vmul.f32 %v2557, %v2581
    %v3074 = vmul.f32 %v2558, %v2578
    %v3075 = vmul.f32 %v2559, %v2579
    %v3076 = vmul.f32 %v2560, %v2580
    %v3077 = vmul.f32 %v2561, %v2581
    %v3078 = vmul.f32 %v2562, %v2578
    %v3079 = vmul.f32 %v2563, %v2579
    %v3080 = vmul.f32 %v2564, %v2580
    %v3081 = vmul.f32 %v2565, %v2581
    %v3082 = vmul.f32 %v2566, %v2578
    %v3083 = vmul.f32 %v2567, %v2579
    %v3084 = vmul.f32 %v2568, %v2580
    %v3085 = vmul.f32 %v2569, %v2581
    %v3086 = vmul.f32 %v2570, %v2578
    %v3087 = vmul.f32 %v2571, %v2579
    %v3088 = vmul.f32 %v2572, %v2580
    %v3089 = vmul.f32 %v2573, %v2581
    %v3090 = vmul.f32 %v2574, %v2578
    %v3091 = vmul.f32 %v2575, %v2579
    %v3092 = vmul.f32 %v2576, %v2580
    %v3093 = vmul.f32 %v2577, %v2581
    %v3094 = vpack.c.bf16 %v2586, %v2582
    %v3095 = vpack.c.bf16 %v2587, %v2583
    %v3096 = vpack.c.bf16 %v2588, %v2584
    %v3097 = vpack.c.bf16 %v2589, %v2585
    %v3098 = vpack.c.bf16 %v2594, %v2590
    %v3099 = vpack.c.bf16 %v2595, %v2591
    %v3100 = vpack.c.bf16 %v2596, %v2592
    %v3101 = vpack.c.bf16 %v2597, %v2593
    %v3102 = vpack.c.bf16 %v2602, %v2598
    %v3103 = vpack.c.bf16 %v2603, %v2599
    %v3104 = vpack.c.bf16 %v2604, %v2600
    %v3105 = vpack.c.bf16 %v2605, %v2601
    %v3106 = vpack.c.bf16 %v2610, %v2606
    %v3107 = vpack.c.bf16 %v2611, %v2607
    %v3108 = vpack.c.bf16 %v2612, %v2608
    %v3109 = vpack.c.bf16 %v2613, %v2609
    %v3110 = vpack.c.bf16 %v2618, %v2614
    %v3111 = vpack.c.bf16 %v2619, %v2615
    %v3112 = vpack.c.bf16 %v2620, %v2616
    %v3113 = vpack.c.bf16 %v2621, %v2617
    %v3114 = vpack.c.bf16 %v2626, %v2622
    %v3115 = vpack.c.bf16 %v2627, %v2623
    %v3116 = vpack.c.bf16 %v2628, %v2624
    %v3117 = vpack.c.bf16 %v2629, %v2625
    %v3118 = vpack.c.bf16 %v2634, %v2630
    %v3119 = vpack.c.bf16 %v2635, %v2631
    %v3120 = vpack.c.bf16 %v2636, %v2632
    %v3121 = vpack.c.bf16 %v2637, %v2633
    %v3122 = vpack.c.bf16 %v2642, %v2638
    %v3123 = vpack.c.bf16 %v2643, %v2639
    %v3124 = vpack.c.bf16 %v2644, %v2640
    %v3125 = vpack.c.bf16 %v2645, %v2641
    %v3126 = vpack.c.bf16 %v2650, %v2646
    %v3127 = vpack.c.bf16 %v2651, %v2647
    %v3128 = vpack.c.bf16 %v2652, %v2648
    %v3129 = vpack.c.bf16 %v2653, %v2649
    %v3130 = vpack.c.bf16 %v2658, %v2654
    %v3131 = vpack.c.bf16 %v2659, %v2655
    %v3132 = vpack.c.bf16 %v2660, %v2656
    %v3133 = vpack.c.bf16 %v2661, %v2657
    %v3134 = vpack.c.bf16 %v2666, %v2662
    %v3135 = vpack.c.bf16 %v2667, %v2663
    %v3136 = vpack.c.bf16 %v2668, %v2664
    %v3137 = vpack.c.bf16 %v2669, %v2665
    %v3138 = vpack.c.bf16 %v2674, %v2670
    %v3139 = vpack.c.bf16 %v2675, %v2671
    %v3140 = vpack.c.bf16 %v2676, %v2672
    %v3141 = vpack.c.bf16 %v2677, %v2673
    %v3142 = vpack.c.bf16 %v2682, %v2678
    %v3143 = vpack.c.bf16 %v2683, %v2679
    %v3144 = vpack.c.bf16 %v2684, %v2680
    %v3145 = vpack.c.bf16 %v2685, %v2681
    %v3146 = vpack.c.bf16 %v2690, %v2686
    %v3147 = vpack.c.bf16 %v2691, %v2687
    %v3148 = vpack.c.bf16 %v2692, %v2688
    %v3149 = vpack.c.bf16 %v2693, %v2689
    %v3150 = vpack.c.bf16 %v2698, %v2694
    %v3151 = vpack.c.bf16 %v2699, %v2695
    %v3152 = vpack.c.bf16 %v2700, %v2696
    %v3153 = vpack.c.bf16 %v2701, %v2697
    %v3154 = vpack.c.bf16 %v2706, %v2702
    %v3155 = vpack.c.bf16 %v2707, %v2703
    %v3156 = vpack.c.bf16 %v2708, %v2704
    %v3157 = vpack.c.bf16 %v2709, %v2705
    %v3158 = vpack.c.bf16 %v2714, %v2710
    %v3159 = vpack.c.bf16 %v2715, %v2711
    %v3160 = vpack.c.bf16 %v2716, %v2712
    %v3161 = vpack.c.bf16 %v2717, %v2713
    %v3162 = vpack.c.bf16 %v2722, %v2718
    %v3163 = vpack.c.bf16 %v2723, %v2719
    %v3164 = vpack.c.bf16 %v2724, %v2720
    %v3165 = vpack.c.bf16 %v2725, %v2721
    %v3166 = vpack.c.bf16 %v2730, %v2726
    %v3167 = vpack.c.bf16 %v2731, %v2727
    %v3168 = vpack.c.bf16 %v2732, %v2728
    %v3169 = vpack.c.bf16 %v2733, %v2729
    %v3170 = vpack.c.bf16 %v2738, %v2734
    %v3171 = vpack.c.bf16 %v2739, %v2735
    %v3172 = vpack.c.bf16 %v2740, %v2736
    %v3173 = vpack.c.bf16 %v2741, %v2737
    %v3174 = vpack.c.bf16 %v2746, %v2742
    %v3175 = vpack.c.bf16 %v2747, %v2743
    %v3176 = vpack.c.bf16 %v2748, %v2744
    %v3177 = vpack.c.bf16 %v2749, %v2745
    %v3178 = vpack.c.bf16 %v2754, %v2750
    %v3179 = vpack.c.bf16 %v2755, %v2751
    %v3180 = vpack.c.bf16 %v2756, %v2752
    %v3181 = vpack.c.bf16 %v2757, %v2753
    %v3182 = vpack.c.bf16 %v2762, %v2758
    %v3183 = vpack.c.bf16 %v2763, %v2759
    %v3184 = vpack.c.bf16 %v2764, %v2760
    %v3185 = vpack.c.bf16 %v2765, %v2761
    %v3186 = vpack.c.bf16 %v2770, %v2766
    %v3187 = vpack.c.bf16 %v2771, %v2767
    %v3188 = vpack.c.bf16 %v2772, %v2768
    %v3189 = vpack.c.bf16 %v2773, %v2769
    %v3190 = vpack.c.bf16 %v2778, %v2774
    %v3191 = vpack.c.bf16 %v2779, %v2775
    %v3192 = vpack.c.bf16 %v2780, %v2776
    %v3193 = vpack.c.bf16 %v2781, %v2777
    %v3194 = vpack.c.bf16 %v2786, %v2782
    %v3195 = vpack.c.bf16 %v2787, %v2783
    %v3196 = vpack.c.bf16 %v2788, %v2784
    %v3197 = vpack.c.bf16 %v2789, %v2785
    %v3198 = vpack.c.bf16 %v2794, %v2790
    %v3199 = vpack.c.bf16 %v2795, %v2791
    %v3200 = vpack.c.bf16 %v2796, %v2792
    %v3201 = vpack.c.bf16 %v2797, %v2793
    %v3202 = vpack.c.bf16 %v2802, %v2798
    %v3203 = vpack.c.bf16 %v2803, %v2799
    %v3204 = vpack.c.bf16 %v2804, %v2800
    %v3205 = vpack.c.bf16 %v2805, %v2801
    %v3206 = vpack.c.bf16 %v2810, %v2806
    %v3207 = vpack.c.bf16 %v2811, %v2807
    %v3208 = vpack.c.bf16 %v2812, %v2808
    %v3209 = vpack.c.bf16 %v2813, %v2809
    %v3210 = vpack.c.bf16 %v2818, %v2814
    %v3211 = vpack.c.bf16 %v2819, %v2815
    %v3212 = vpack.c.bf16 %v2820, %v2816
    %v3213 = vpack.c.bf16 %v2821, %v2817
    %v3214 = vpack.c.bf16 %v2826, %v2822
    %v3215 = vpack.c.bf16 %v2827, %v2823
    %v3216 = vpack.c.bf16 %v2828, %v2824
    %v3217 = vpack.c.bf16 %v2829, %v2825
    %v3218 = vpack.c.bf16 %v2834, %v2830
    %v3219 = vpack.c.bf16 %v2835, %v2831
    %v3220 = vpack.c.bf16 %v2836, %v2832
    %v3221 = vpack.c.bf16 %v2837, %v2833
    %v3222 = vpack.c.bf16 %v2842, %v2838
    %v3223 = vpack.c.bf16 %v2843, %v2839
    %v3224 = vpack.c.bf16 %v2844, %v2840
    %v3225 = vpack.c.bf16 %v2845, %v2841
    %v3226 = vpack.c.bf16 %v2850, %v2846
    %v3227 = vpack.c.bf16 %v2851, %v2847
    %v3228 = vpack.c.bf16 %v2852, %v2848
    %v3229 = vpack.c.bf16 %v2853, %v2849
    %v3230 = vpack.c.bf16 %v2858, %v2854
    %v3231 = vpack.c.bf16 %v2859, %v2855
    %v3232 = vpack.c.bf16 %v2860, %v2856
    %v3233 = vpack.c.bf16 %v2861, %v2857
    %v3234 = vpack.c.bf16 %v2866, %v2862
    %v3235 = vpack.c.bf16 %v2867, %v2863
    %v3236 = vpack.c.bf16 %v2868, %v2864
    %v3237 = vpack.c.bf16 %v2869, %v2865
    %v3238 = vpack.c.bf16 %v2874, %v2870
    %v3239 = vpack.c.bf16 %v2875, %v2871
    %v3240 = vpack.c.bf16 %v2876, %v2872
    %v3241 = vpack.c.bf16 %v2877, %v2873
    %v3242 = vpack.c.bf16 %v2882, %v2878
    %v3243 = vpack.c.bf16 %v2883, %v2879
    %v3244 = vpack.c.bf16 %v2884, %v2880
    %v3245 = vpack.c.bf16 %v2885, %v2881
    %v3246 = vpack.c.bf16 %v2890, %v2886
    %v3247 = vpack.c.bf16 %v2891, %v2887
    %v3248 = vpack.c.bf16 %v2892, %v2888
    %v3249 = vpack.c.bf16 %v2893, %v2889
    %v3250 = vpack.c.bf16 %v2898, %v2894
    %v3251 = vpack.c.bf16 %v2899, %v2895
    %v3252 = vpack.c.bf16 %v2900, %v2896
    %v3253 = vpack.c.bf16 %v2901, %v2897
    %v3254 = vpack.c.bf16 %v2906, %v2902
    %v3255 = vpack.c.bf16 %v2907, %v2903
    %v3256 = vpack.c.bf16 %v2908, %v2904
    %v3257 = vpack.c.bf16 %v2909, %v2905
    %v3258 = vpack.c.bf16 %v2914, %v2910
    %v3259 = vpack.c.bf16 %v2915, %v2911
    %v3260 = vpack.c.bf16 %v2916, %v2912
    %v3261 = vpack.c.bf16 %v2917, %v2913
    %v3262 = vpack.c.bf16 %v2922, %v2918
    %v3263 = vpack.c.bf16 %v2923, %v2919
    %v3264 = vpack.c.bf16 %v2924, %v2920
    %v3265 = vpack.c.bf16 %v2925, %v2921
    %v3266 = vpack.c.bf16 %v2930, %v2926
    %v3267 = vpack.c.bf16 %v2931, %v2927
    %v3268 = vpack.c.bf16 %v2932, %v2928
    %v3269 = vpack.c.bf16 %v2933, %v2929
    %v3270 = vpack.c.bf16 %v2938, %v2934
    %v3271 = vpack.c.bf16 %v2939, %v2935
    %v3272 = vpack.c.bf16 %v2940, %v2936
    %v3273 = vpack.c.bf16 %v2941, %v2937
    %v3274 = vpack.c.bf16 %v2946, %v2942
    %v3275 = vpack.c.bf16 %v2947, %v2943
    %v3276 = vpack.c.bf16 %v2948, %v2944
    %v3277 = vpack.c.bf16 %v2949, %v2945
    %v3278 = vpack.c.bf16 %v2954, %v2950
    %v3279 = vpack.c.bf16 %v2955, %v2951
    %v3280 = vpack.c.bf16 %v2956, %v2952
    %v3281 = vpack.c.bf16 %v2957, %v2953
    %v3282 = vpack.c.bf16 %v2962, %v2958
    %v3283 = vpack.c.bf16 %v2963, %v2959
    %v3284 = vpack.c.bf16 %v2964, %v2960
    %v3285 = vpack.c.bf16 %v2965, %v2961
    %v3286 = vpack.c.bf16 %v2970, %v2966
    %v3287 = vpack.c.bf16 %v2971, %v2967
    %v3288 = vpack.c.bf16 %v2972, %v2968
    %v3289 = vpack.c.bf16 %v2973, %v2969
    %v3290 = vpack.c.bf16 %v2978, %v2974
    %v3291 = vpack.c.bf16 %v2979, %v2975
    %v3292 = vpack.c.bf16 %v2980, %v2976
    %v3293 = vpack.c.bf16 %v2981, %v2977
    %v3294 = vpack.c.bf16 %v2986, %v2982
    %v3295 = vpack.c.bf16 %v2987, %v2983
    %v3296 = vpack.c.bf16 %v2988, %v2984
    %v3297 = vpack.c.bf16 %v2989, %v2985
    %v3298 = vpack.c.bf16 %v2994, %v2990
    %v3299 = vpack.c.bf16 %v2995, %v2991
    %v3300 = vpack.c.bf16 %v2996, %v2992
    %v3301 = vpack.c.bf16 %v2997, %v2993
    %v3302 = vpack.c.bf16 %v3002, %v2998
    %v3303 = vpack.c.bf16 %v3003, %v2999
    %v3304 = vpack.c.bf16 %v3004, %v3000
    %v3305 = vpack.c.bf16 %v3005, %v3001
    %v3306 = vpack.c.bf16 %v3010, %v3006
    %v3307 = vpack.c.bf16 %v3011, %v3007
    %v3308 = vpack.c.bf16 %v3012, %v3008
    %v3309 = vpack.c.bf16 %v3013, %v3009
    %v3310 = vpack.c.bf16 %v3018, %v3014
    %v3311 = vpack.c.bf16 %v3019, %v3015
    %v3312 = vpack.c.bf16 %v3020, %v3016
    %v3313 = vpack.c.bf16 %v3021, %v3017
    %v3314 = vpack.c.bf16 %v3026, %v3022
    %v3315 = vpack.c.bf16 %v3027, %v3023
    %v3316 = vpack.c.bf16 %v3028, %v3024
    %v3317 = vpack.c.bf16 %v3029, %v3025
    %v3318 = vpack.c.bf16 %v3034, %v3030
    %v3319 = vpack.c.bf16 %v3035, %v3031
    %v3320 = vpack.c.bf16 %v3036, %v3032
    %v3321 = vpack.c.bf16 %v3037, %v3033
    %v3322 = vpack.c.bf16 %v3042, %v3038
    %v3323 = vpack.c.bf16 %v3043, %v3039
    %v3324 = vpack.c.bf16 %v3044, %v3040
    %v3325 = vpack.c.bf16 %v3045, %v3041
    %v3326 = vpack.c.bf16 %v3050, %v3046
    %v3327 = vpack.c.bf16 %v3051, %v3047
    %v3328 = vpack.c.bf16 %v3052, %v3048
    %v3329 = vpack.c.bf16 %v3053, %v3049
    %v3330 = vpack.c.bf16 %v3058, %v3054
    %v3331 = vpack.c.bf16 %v3059, %v3055
    %v3332 = vpack.c.bf16 %v3060, %v3056
    %v3333 = vpack.c.bf16 %v3061, %v3057
    %v3334 = vpack.c.bf16 %v3066, %v3062
    %v3335 = vpack.c.bf16 %v3067, %v3063
    %v3336 = vpack.c.bf16 %v3068, %v3064
    %v3337 = vpack.c.bf16 %v3069, %v3065
    %v3338 = vpack.c.bf16 %v3074, %v3070
    %v3339 = vpack.c.bf16 %v3075, %v3071
    %v3340 = vpack.c.bf16 %v3076, %v3072
    %v3341 = vpack.c.bf16 %v3077, %v3073
    %v3342 = vpack.c.bf16 %v3082, %v3078
    %v3343 = vpack.c.bf16 %v3083, %v3079
    %v3344 = vpack.c.bf16 %v3084, %v3080
    %v3345 = vpack.c.bf16 %v3085, %v3081
    %v3346 = vpack.c.bf16 %v3090, %v3086
    %v3347 = vpack.c.bf16 %v3091, %v3087
    %v3348 = vpack.c.bf16 %v3092, %v3088
    %v3349 = vpack.c.bf16 %v3093, %v3089
    %v3350 = vld [vmem:[%s5] sm:$0xf]
    %v3352 = vperm.slane %v3350, 0
    %v3353 = vperm.slane %v3350, 1
    %v3354 = vperm.slane %v3350, 2
    %v3355 = vperm.slane %v3350, 3
    %3360 = vmatpush.bf16.msra.mxu0 %v3122
    %3361 = vmatpush.bf16.msra.mxu0 %v3118
    %3362 = vmatpush.bf16.msra.mxu0 %v3114
    %3363 = vmatpush.bf16.msra.mxu0 %v3110
    %3364 = vmatpush.bf16.msra.mxu0 %v3106
    %3365 = vmatpush.bf16.msra.mxu0 %v3102
    %3366 = vmatpush.bf16.msra.mxu0 %v3098
    %3367 = vmatpush.bf16.msra.mxu0 %v3094
    %3368 = vmatmul.bf16.gmra.mxu0 %v631
    %v3369 = vpop.f32.mrf.mxu0
    %v3370 = vadd.f32 %v3352, %v3369
    %v3371 = vpop.f32.mrf.mxu0
    %v3372 = vadd.f32 %v3352, %v3371
    %3373 = vdwg.mxu0
    %3374 = vmatpush.bf16.msra.mxu0 %v3154
    %3375 = vmatpush.bf16.msra.mxu0 %v3150
    %3376 = vmatpush.bf16.msra.mxu0 %v3146
    %3377 = vmatpush.bf16.msra.mxu0 %v3142
    %3378 = vmatpush.bf16.msra.mxu0 %v3138
    %3379 = vmatpush.bf16.msra.mxu0 %v3134
    %3380 = vmatpush.bf16.msra.mxu0 %v3130
    %3381 = vmatpush.bf16.msra.mxu0 %v3126
    %3382 = vmatmul.bf16.gmra.mxu0 %v632
    %v3383 = vpop.f32.mrf.mxu0
    %v3384 = vadd.f32 %v3370, %v3383
    %v3385 = vpop.f32.mrf.mxu0
    %v3386 = vadd.f32 %v3372, %v3385
    %3387 = vdwg.mxu0
    %3388 = vmatpush.bf16.msra.mxu0 %v3186
    %3389 = vmatpush.bf16.msra.mxu0 %v3182
    %3390 = vmatpush.bf16.msra.mxu0 %v3178
    %3391 = vmatpush.bf16.msra.mxu0 %v3174
    %3392 = vmatpush.bf16.msra.mxu0 %v3170
    %3393 = vmatpush.bf16.msra.mxu0 %v3166
    %3394 = vmatpush.bf16.msra.mxu0 %v3162
    %3395 = vmatpush.bf16.msra.mxu0 %v3158
    %3396 = vmatmul.bf16.gmra.mxu0 %v633
    %v3397 = vpop.f32.mrf.mxu0
    %v3398 = vadd.f32 %v3384, %v3397
    %v3399 = vpop.f32.mrf.mxu0
    %v3400 = vadd.f32 %v3386, %v3399
    %3401 = vdwg.mxu0
    %3402 = vmatpush.bf16.msra.mxu0 %v3218
    %3403 = vmatpush.bf16.msra.mxu0 %v3214
    %3404 = vmatpush.bf16.msra.mxu0 %v3210
    %3405 = vmatpush.bf16.msra.mxu0 %v3206
    %3406 = vmatpush.bf16.msra.mxu0 %v3202
    %3407 = vmatpush.bf16.msra.mxu0 %v3198
    %3408 = vmatpush.bf16.msra.mxu0 %v3194
    %3409 = vmatpush.bf16.msra.mxu0 %v3190
    %3410 = vmatmul.bf16.gmra.mxu0 %v634
    %v3411 = vpop.f32.mrf.mxu0
    %v3412 = vadd.f32 %v3398, %v3411
    %v3413 = vpop.f32.mrf.mxu0
    %v3414 = vadd.f32 %v3400, %v3413
    %3415 = vdwg.mxu0
    %3416 = vmatpush.bf16.msra.mxu0 %v3250
    %3417 = vmatpush.bf16.msra.mxu0 %v3246
    %3418 = vmatpush.bf16.msra.mxu0 %v3242
    %3419 = vmatpush.bf16.msra.mxu0 %v3238
    %3420 = vmatpush.bf16.msra.mxu0 %v3234
    %3421 = vmatpush.bf16.msra.mxu0 %v3230
    %3422 = vmatpush.bf16.msra.mxu0 %v3226
    %3423 = vmatpush.bf16.msra.mxu0 %v3222
    %3424 = vmatmul.bf16.gmra.mxu0 %v635
    %v3425 = vpop.f32.mrf.mxu0
    %v3426 = vadd.f32 %v3412, %v3425
    %v3427 = vpop.f32.mrf.mxu0
    %v3428 = vadd.f32 %v3414, %v3427
    %3429 = vdwg.mxu0
    %3430 = vmatpush.bf16.msra.mxu0 %v3282
    %3431 = vmatpush.bf16.msra.mxu0 %v3278
    %3432 = vmatpush.bf16.msra.mxu0 %v3274
    %3433 = vmatpush.bf16.msra.mxu0 %v3270
    %3434 = vmatpush.bf16.msra.mxu0 %v3266
    %3435 = vmatpush.bf16.msra.mxu0 %v3262
    %3436 = vmatpush.bf16.msra.mxu0 %v3258
    %3437 = vmatpush.bf16.msra.mxu0 %v3254
    %3438 = vmatmul.bf16.gmra.mxu0 %v636
    %v3439 = vpop.f32.mrf.mxu0
    %v3440 = vadd.f32 %v3426, %v3439
    %v3441 = vpop.f32.mrf.mxu0
    %v3442 = vadd.f32 %v3428, %v3441
    %3443 = vdwg.mxu0
    %3444 = vmatpush.bf16.msra.mxu0 %v3314
    %3445 = vmatpush.bf16.msra.mxu0 %v3310
    %3446 = vmatpush.bf16.msra.mxu0 %v3306
    %3447 = vmatpush.bf16.msra.mxu0 %v3302
    %3448 = vmatpush.bf16.msra.mxu0 %v3298
    %3449 = vmatpush.bf16.msra.mxu0 %v3294
    %3450 = vmatpush.bf16.msra.mxu0 %v3290
    %3451 = vmatpush.bf16.msra.mxu0 %v3286
    %3452 = vmatmul.bf16.gmra.mxu0 %v637
    %v3453 = vpop.f32.mrf.mxu0
    %v3454 = vadd.f32 %v3440, %v3453
    %v3455 = vpop.f32.mrf.mxu0
    %v3456 = vadd.f32 %v3442, %v3455
    %3457 = vdwg.mxu0
    %3458 = vmatpush.bf16.msra.mxu0 %v3346
    %3459 = vmatpush.bf16.msra.mxu0 %v3342
    %3460 = vmatpush.bf16.msra.mxu0 %v3338
    %3461 = vmatpush.bf16.msra.mxu0 %v3334
    %3462 = vmatpush.bf16.msra.mxu0 %v3330
    %3463 = vmatpush.bf16.msra.mxu0 %v3326
    %3464 = vmatpush.bf16.msra.mxu0 %v3322
    %3465 = vmatpush.bf16.msra.mxu0 %v3318
    %3466 = vmatmul.bf16.gmra.mxu0 %v638
    %v3467 = vpop.f32.mrf.mxu0
    %v3468 = vadd.f32 %v3454, %v3467
    %v3469 = vpop.f32.mrf.mxu0
    %v3470 = vadd.f32 %v3456, %v3469
    %3471 = vdwg.mxu0
    %3472 = vmatpush.bf16.msra.mxu0 %v3123
    %3473 = vmatpush.bf16.msra.mxu0 %v3119
    %3474 = vmatpush.bf16.msra.mxu0 %v3115
    %3475 = vmatpush.bf16.msra.mxu0 %v3111
    %3476 = vmatpush.bf16.msra.mxu0 %v3107
    %3477 = vmatpush.bf16.msra.mxu0 %v3103
    %3478 = vmatpush.bf16.msra.mxu0 %v3099
    %3479 = vmatpush.bf16.msra.mxu0 %v3095
    %3480 = vmatmul.bf16.gmra.mxu0 %v631
    %v3481 = vpop.f32.mrf.mxu0
    %v3482 = vadd.f32 %v3353, %v3481
    %v3483 = vpop.f32.mrf.mxu0
    %v3484 = vadd.f32 %v3353, %v3483
    %3485 = vdwg.mxu0
    %3486 = vmatpush.bf16.msra.mxu0 %v3155
    %3487 = vmatpush.bf16.msra.mxu0 %v3151
    %3488 = vmatpush.bf16.msra.mxu0 %v3147
    %3489 = vmatpush.bf16.msra.mxu0 %v3143
    %3490 = vmatpush.bf16.msra.mxu0 %v3139
    %3491 = vmatpush.bf16.msra.mxu0 %v3135
    %3492 = vmatpush.bf16.msra.mxu0 %v3131
    %3493 = vmatpush.bf16.msra.mxu0 %v3127
    %3494 = vmatmul.bf16.gmra.mxu0 %v632
    %v3495 = vpop.f32.mrf.mxu0
    %v3496 = vadd.f32 %v3482, %v3495
    %v3497 = vpop.f32.mrf.mxu0
    %v3498 = vadd.f32 %v3484, %v3497
    %3499 = vdwg.mxu0
    %3500 = vmatpush.bf16.msra.mxu0 %v3187
    %3501 = vmatpush.bf16.msra.mxu0 %v3183
    %3502 = vmatpush.bf16.msra.mxu0 %v3179
    %3503 = vmatpush.bf16.msra.mxu0 %v3175
    %3504 = vmatpush.bf16.msra.mxu0 %v3171
    %3505 = vmatpush.bf16.msra.mxu0 %v3167
    %3506 = vmatpush.bf16.msra.mxu0 %v3163
    %3507 = vmatpush.bf16.msra.mxu0 %v3159
    %3508 = vmatmul.bf16.gmra.mxu0 %v633
    %v3509 = vpop.f32.mrf.mxu0
    %v3510 = vadd.f32 %v3496, %v3509
    %v3511 = vpop.f32.mrf.mxu0
    %v3512 = vadd.f32 %v3498, %v3511
    %3513 = vdwg.mxu0
    %3514 = vmatpush.bf16.msra.mxu0 %v3219
    %3515 = vmatpush.bf16.msra.mxu0 %v3215
    %3516 = vmatpush.bf16.msra.mxu0 %v3211
    %3517 = vmatpush.bf16.msra.mxu0 %v3207
    %3518 = vmatpush.bf16.msra.mxu0 %v3203
    %3519 = vmatpush.bf16.msra.mxu0 %v3199
    %3520 = vmatpush.bf16.msra.mxu0 %v3195
    %3521 = vmatpush.bf16.msra.mxu0 %v3191
    %3522 = vmatmul.bf16.gmra.mxu0 %v634
    %v3523 = vpop.f32.mrf.mxu0
    %v3524 = vadd.f32 %v3510, %v3523
    %v3525 = vpop.f32.mrf.mxu0
    %v3526 = vadd.f32 %v3512, %v3525
    %3527 = vdwg.mxu0
    %3528 = vmatpush.bf16.msra.mxu0 %v3251
    %3529 = vmatpush.bf16.msra.mxu0 %v3247
    %3530 = vmatpush.bf16.msra.mxu0 %v3243
    %3531 = vmatpush.bf16.msra.mxu0 %v3239
    %3532 = vmatpush.bf16.msra.mxu0 %v3235
    %3533 = vmatpush.bf16.msra.mxu0 %v3231
    %3534 = vmatpush.bf16.msra.mxu0 %v3227
    %3535 = vmatpush.bf16.msra.mxu0 %v3223
    %3536 = vmatmul.bf16.gmra.mxu0 %v635
    %v3537 = vpop.f32.mrf.mxu0
    %v3538 = vadd.f32 %v3524, %v3537
    %v3539 = vpop.f32.mrf.mxu0
    %v3540 = vadd.f32 %v3526, %v3539
    %3541 = vdwg.mxu0
    %3542 = vmatpush.bf16.msra.mxu0 %v3283
    %3543 = vmatpush.bf16.msra.mxu0 %v3279
    %3544 = vmatpush.bf16.msra.mxu0 %v3275
    %3545 = vmatpush.bf16.msra.mxu0 %v3271
    %3546 = vmatpush.bf16.msra.mxu0 %v3267
    %3547 = vmatpush.bf16.msra.mxu0 %v3263
    %3548 = vmatpush.bf16.msra.mxu0 %v3259
    %3549 = vmatpush.bf16.msra.mxu0 %v3255
    %3550 = vmatmul.bf16.gmra.mxu0 %v636
    %v3551 = vpop.f32.mrf.mxu0
    %v3552 = vadd.f32 %v3538, %v3551
    %v3553 = vpop.f32.mrf.mxu0
    %v3554 = vadd.f32 %v3540, %v3553
    %3555 = vdwg.mxu0
    %3556 = vmatpush.bf16.msra.mxu0 %v3315
    %3557 = vmatpush.bf16.msra.mxu0 %v3311
    %3558 = vmatpush.bf16.msra.mxu0 %v3307
    %3559 = vmatpush.bf16.msra.mxu0 %v3303
    %3560 = vmatpush.bf16.msra.mxu0 %v3299
    %3561 = vmatpush.bf16.msra.mxu0 %v3295
    %3562 = vmatpush.bf16.msra.mxu0 %v3291
    %3563 = vmatpush.bf16.msra.mxu0 %v3287
    %3564 = vmatmul.bf16.gmra.mxu0 %v637
    %v3565 = vpop.f32.mrf.mxu0
    %v3566 = vadd.f32 %v3552, %v3565
    %v3567 = vpop.f32.mrf.mxu0
    %v3568 = vadd.f32 %v3554, %v3567
    %3569 = vdwg.mxu0
    %3570 = vmatpush.bf16.msra.mxu0 %v3347
    %3571 = vmatpush.bf16.msra.mxu0 %v3343
    %3572 = vmatpush.bf16.msra.mxu0 %v3339
    %3573 = vmatpush.bf16.msra.mxu0 %v3335
    %3574 = vmatpush.bf16.msra.mxu0 %v3331
    %3575 = vmatpush.bf16.msra.mxu0 %v3327
    %3576 = vmatpush.bf16.msra.mxu0 %v3323
    %3577 = vmatpush.bf16.msra.mxu0 %v3319
    %3578 = vmatmul.bf16.gmra.mxu0 %v638
    %v3579 = vpop.f32.mrf.mxu0
    %v3580 = vadd.f32 %v3566, %v3579
    %v3581 = vpop.f32.mrf.mxu0
    %v3582 = vadd.f32 %v3568, %v3581
    %3583 = vdwg.mxu0
    %3584 = vmatpush.bf16.msra.mxu0 %v3124
    %3585 = vmatpush.bf16.msra.mxu0 %v3120
    %3586 = vmatpush.bf16.msra.mxu0 %v3116
    %3587 = vmatpush.bf16.msra.mxu0 %v3112
    %3588 = vmatpush.bf16.msra.mxu0 %v3108
    %3589 = vmatpush.bf16.msra.mxu0 %v3104
    %3590 = vmatpush.bf16.msra.mxu0 %v3100
    %3591 = vmatpush.bf16.msra.mxu0 %v3096
    %3592 = vmatmul.bf16.gmra.mxu0 %v631
    %v3593 = vpop.f32.mrf.mxu0
    %v3594 = vadd.f32 %v3354, %v3593
    %v3595 = vpop.f32.mrf.mxu0
    %v3596 = vadd.f32 %v3354, %v3595
    %3597 = vdwg.mxu0
    %3598 = vmatpush.bf16.msra.mxu0 %v3156
    %3599 = vmatpush.bf16.msra.mxu0 %v3152
    %3600 = vmatpush.bf16.msra.mxu0 %v3148
    %3601 = vmatpush.bf16.msra.mxu0 %v3144
    %3602 = vmatpush.bf16.msra.mxu0 %v3140
    %3603 = vmatpush.bf16.msra.mxu0 %v3136
    %3604 = vmatpush.bf16.msra.mxu0 %v3132
    %3605 = vmatpush.bf16.msra.mxu0 %v3128
    %3606 = vmatmul.bf16.gmra.mxu0 %v632
    %v3607 = vpop.f32.mrf.mxu0
    %v3608 = vadd.f32 %v3594, %v3607
    %v3609 = vpop.f32.mrf.mxu0
    %v3610 = vadd.f32 %v3596, %v3609
    %3611 = vdwg.mxu0
    %3612 = vmatpush.bf16.msra.mxu0 %v3188
    %3613 = vmatpush.bf16.msra.mxu0 %v3184
    %3614 = vmatpush.bf16.msra.mxu0 %v3180
    %3615 = vmatpush.bf16.msra.mxu0 %v3176
    %3616 = vmatpush.bf16.msra.mxu0 %v3172
    %3617 = vmatpush.bf16.msra.mxu0 %v3168
    %3618 = vmatpush.bf16.msra.mxu0 %v3164
    %3619 = vmatpush.bf16.msra.mxu0 %v3160
    %3620 = vmatmul.bf16.gmra.mxu0 %v633
    %v3621 = vpop.f32.mrf.mxu0
    %v3622 = vadd.f32 %v3608, %v3621
    %v3623 = vpop.f32.mrf.mxu0
    %v3624 = vadd.f32 %v3610, %v3623
    %3625 = vdwg.mxu0
    %3626 = vmatpush.bf16.msra.mxu0 %v3220
    %3627 = vmatpush.bf16.msra.mxu0 %v3216
    %3628 = vmatpush.bf16.msra.mxu0 %v3212
    %3629 = vmatpush.bf16.msra.mxu0 %v3208
    %3630 = vmatpush.bf16.msra.mxu0 %v3204
    %3631 = vmatpush.bf16.msra.mxu0 %v3200
    %3632 = vmatpush.bf16.msra.mxu0 %v3196
    %3633 = vmatpush.bf16.msra.mxu0 %v3192
    %3634 = vmatmul.bf16.gmra.mxu0 %v634
    %v3635 = vpop.f32.mrf.mxu0
    %v3636 = vadd.f32 %v3622, %v3635
    %v3637 = vpop.f32.mrf.mxu0
    %v3638 = vadd.f32 %v3624, %v3637
    %3639 = vdwg.mxu0
    %3640 = vmatpush.bf16.msra.mxu0 %v3252
    %3641 = vmatpush.bf16.msra.mxu0 %v3248
    %3642 = vmatpush.bf16.msra.mxu0 %v3244
    %3643 = vmatpush.bf16.msra.mxu0 %v3240
    %3644 = vmatpush.bf16.msra.mxu0 %v3236
    %3645 = vmatpush.bf16.msra.mxu0 %v3232
    %3646 = vmatpush.bf16.msra.mxu0 %v3228
    %3647 = vmatpush.bf16.msra.mxu0 %v3224
    %3648 = vmatmul.bf16.gmra.mxu0 %v635
    %v3649 = vpop.f32.mrf.mxu0
    %v3650 = vadd.f32 %v3636, %v3649
    %v3651 = vpop.f32.mrf.mxu0
    %v3652 = vadd.f32 %v3638, %v3651
    %3653 = vdwg.mxu0
    %3654 = vmatpush.bf16.msra.mxu0 %v3284
    %3655 = vmatpush.bf16.msra.mxu0 %v3280
    %3656 = vmatpush.bf16.msra.mxu0 %v3276
    %3657 = vmatpush.bf16.msra.mxu0 %v3272
    %3658 = vmatpush.bf16.msra.mxu0 %v3268
    %3659 = vmatpush.bf16.msra.mxu0 %v3264
    %3660 = vmatpush.bf16.msra.mxu0 %v3260
    %3661 = vmatpush.bf16.msra.mxu0 %v3256
    %3662 = vmatmul.bf16.gmra.mxu0 %v636
    %v3663 = vpop.f32.mrf.mxu0
    %v3664 = vadd.f32 %v3650, %v3663
    %v3665 = vpop.f32.mrf.mxu0
    %v3666 = vadd.f32 %v3652, %v3665
    %3667 = vdwg.mxu0
    %3668 = vmatpush.bf16.msra.mxu0 %v3316
    %3669 = vmatpush.bf16.msra.mxu0 %v3312
    %3670 = vmatpush.bf16.msra.mxu0 %v3308
    %3671 = vmatpush.bf16.msra.mxu0 %v3304
    %3672 = vmatpush.bf16.msra.mxu0 %v3300
    %3673 = vmatpush.bf16.msra.mxu0 %v3296
    %3674 = vmatpush.bf16.msra.mxu0 %v3292
    %3675 = vmatpush.bf16.msra.mxu0 %v3288
    %3676 = vmatmul.bf16.gmra.mxu0 %v637
    %v3677 = vpop.f32.mrf.mxu0
    %v3678 = vadd.f32 %v3664, %v3677
    %v3679 = vpop.f32.mrf.mxu0
    %v3680 = vadd.f32 %v3666, %v3679
    %3681 = vdwg.mxu0
    %3682 = vmatpush.bf16.msra.mxu0 %v3348
    %3683 = vmatpush.bf16.msra.mxu0 %v3344
    %3684 = vmatpush.bf16.msra.mxu0 %v3340
    %3685 = vmatpush.bf16.msra.mxu0 %v3336
    %3686 = vmatpush.bf16.msra.mxu0 %v3332
    %3687 = vmatpush.bf16.msra.mxu0 %v3328
    %3688 = vmatpush.bf16.msra.mxu0 %v3324
    %3689 = vmatpush.bf16.msra.mxu0 %v3320
    %3690 = vmatmul.bf16.gmra.mxu0 %v638
    %v3691 = vpop.f32.mrf.mxu0
    %v3692 = vadd.f32 %v3678, %v3691
    %v3693 = vpop.f32.mrf.mxu0
    %v3694 = vadd.f32 %v3680, %v3693
    %3695 = vdwg.mxu0
    %3696 = vmatpush.bf16.msra.mxu0 %v3125
    %3697 = vmatpush.bf16.msra.mxu0 %v3121
    %3698 = vmatpush.bf16.msra.mxu0 %v3117
    %3699 = vmatpush.bf16.msra.mxu0 %v3113
    %3700 = vmatpush.bf16.msra.mxu0 %v3109
    %3701 = vmatpush.bf16.msra.mxu0 %v3105
    %3702 = vmatpush.bf16.msra.mxu0 %v3101
    %3703 = vmatpush.bf16.msra.mxu0 %v3097
    %3704 = vmatmul.bf16.gmra.mxu0 %v631
    %v3705 = vpop.f32.mrf.mxu0
    %v3706 = vadd.f32 %v3355, %v3705
    %v3707 = vpop.f32.mrf.mxu0
    %v3708 = vadd.f32 %v3355, %v3707
    %3709 = vdwg.mxu0
    %3710 = vmatpush.bf16.msra.mxu0 %v3157
    %3711 = vmatpush.bf16.msra.mxu0 %v3153
    %3712 = vmatpush.bf16.msra.mxu0 %v3149
    %3713 = vmatpush.bf16.msra.mxu0 %v3145
    %3714 = vmatpush.bf16.msra.mxu0 %v3141
    %3715 = vmatpush.bf16.msra.mxu0 %v3137
    %3716 = vmatpush.bf16.msra.mxu0 %v3133
    %3717 = vmatpush.bf16.msra.mxu0 %v3129
    %3718 = vmatmul.bf16.gmra.mxu0 %v632
    %v3719 = vpop.f32.mrf.mxu0
    %v3720 = vadd.f32 %v3706, %v3719
    %v3721 = vpop.f32.mrf.mxu0
    %v3722 = vadd.f32 %v3708, %v3721
    %3723 = vdwg.mxu0
    %3724 = vmatpush.bf16.msra.mxu0 %v3189
    %3725 = vmatpush.bf16.msra.mxu0 %v3185
    %3726 = vmatpush.bf16.msra.mxu0 %v3181
    %3727 = vmatpush.bf16.msra.mxu0 %v3177
    %3728 = vmatpush.bf16.msra.mxu0 %v3173
    %3729 = vmatpush.bf16.msra.mxu0 %v3169
    %3730 = vmatpush.bf16.msra.mxu0 %v3165
    %3731 = vmatpush.bf16.msra.mxu0 %v3161
    %3732 = vmatmul.bf16.gmra.mxu0 %v633
    %v3733 = vpop.f32.mrf.mxu0
    %v3734 = vadd.f32 %v3720, %v3733
    %v3735 = vpop.f32.mrf.mxu0
    %v3736 = vadd.f32 %v3722, %v3735
    %3737 = vdwg.mxu0
    %3738 = vmatpush.bf16.msra.mxu0 %v3221
    %3739 = vmatpush.bf16.msra.mxu0 %v3217
    %3740 = vmatpush.bf16.msra.mxu0 %v3213
    %3741 = vmatpush.bf16.msra.mxu0 %v3209
    %3742 = vmatpush.bf16.msra.mxu0 %v3205
    %3743 = vmatpush.bf16.msra.mxu0 %v3201
    %3744 = vmatpush.bf16.msra.mxu0 %v3197
    %3745 = vmatpush.bf16.msra.mxu0 %v3193
    %3746 = vmatmul.bf16.gmra.mxu0 %v634
    %v3747 = vpop.f32.mrf.mxu0
    %v3748 = vadd.f32 %v3734, %v3747
    %v3749 = vpop.f32.mrf.mxu0
    %v3750 = vadd.f32 %v3736, %v3749
    %3751 = vdwg.mxu0
    %3752 = vmatpush.bf16.msra.mxu0 %v3253
    %3753 = vmatpush.bf16.msra.mxu0 %v3249
    %3754 = vmatpush.bf16.msra.mxu0 %v3245
    %3755 = vmatpush.bf16.msra.mxu0 %v3241
    %3756 = vmatpush.bf16.msra.mxu0 %v3237
    %3757 = vmatpush.bf16.msra.mxu0 %v3233
    %3758 = vmatpush.bf16.msra.mxu0 %v3229
    %3759 = vmatpush.bf16.msra.mxu0 %v3225
    %3760 = vmatmul.bf16.gmra.mxu0 %v635
    %v3761 = vpop.f32.mrf.mxu0
    %v3762 = vadd.f32 %v3748, %v3761
    %v3763 = vpop.f32.mrf.mxu0
    %v3764 = vadd.f32 %v3750, %v3763
    %3765 = vdwg.mxu0
    %3766 = vmatpush.bf16.msra.mxu0 %v3285
    %3767 = vmatpush.bf16.msra.mxu0 %v3281
    %3768 = vmatpush.bf16.msra.mxu0 %v3277
    %3769 = vmatpush.bf16.msra.mxu0 %v3273
    %3770 = vmatpush.bf16.msra.mxu0 %v3269
    %3771 = vmatpush.bf16.msra.mxu0 %v3265
    %3772 = vmatpush.bf16.msra.mxu0 %v3261
    %3773 = vmatpush.bf16.msra.mxu0 %v3257
    %3774 = vmatmul.bf16.gmra.mxu0 %v636
    %v3775 = vpop.f32.mrf.mxu0
    %v3776 = vadd.f32 %v3762, %v3775
    %v3777 = vpop.f32.mrf.mxu0
    %v3778 = vadd.f32 %v3764, %v3777
    %3779 = vdwg.mxu0
    %3780 = vmatpush.bf16.msra.mxu0 %v3317
    %3781 = vmatpush.bf16.msra.mxu0 %v3313
    %3782 = vmatpush.bf16.msra.mxu0 %v3309
    %3783 = vmatpush.bf16.msra.mxu0 %v3305
    %3784 = vmatpush.bf16.msra.mxu0 %v3301
    %3785 = vmatpush.bf16.msra.mxu0 %v3297
    %3786 = vmatpush.bf16.msra.mxu0 %v3293
    %3787 = vmatpush.bf16.msra.mxu0 %v3289
    %3788 = vmatmul.bf16.gmra.mxu0 %v637
    %v3789 = vpop.f32.mrf.mxu0
    %v3790 = vadd.f32 %v3776, %v3789
    %v3791 = vpop.f32.mrf.mxu0
    %v3792 = vadd.f32 %v3778, %v3791
    %3793 = vdwg.mxu0
    %3794 = vmatpush.bf16.msra.mxu0 %v3349
    %3795 = vmatpush.bf16.msra.mxu0 %v3345
    %3796 = vmatpush.bf16.msra.mxu0 %v3341
    %3797 = vmatpush.bf16.msra.mxu0 %v3337
    %3798 = vmatpush.bf16.msra.mxu0 %v3333
    %3799 = vmatpush.bf16.msra.mxu0 %v3329
    %3800 = vmatpush.bf16.msra.mxu0 %v3325
    %3801 = vmatpush.bf16.msra.mxu0 %v3321
    %3802 = vmatmul.bf16.gmra.mxu0 %v638
    %v3803 = vpop.f32.mrf.mxu0
    %v3804 = vadd.f32 %v3790, %v3803
    %v3805 = vpop.f32.mrf.mxu0
    %v3806 = vadd.f32 %v3792, %v3805
    %3807 = vdwg.mxu0
    %v3808 = vmax.f32 %v3468, 0.0
    %v3809 = vmax.f32 %v3580, 0.0
    %v3810 = vmax.f32 %v3692, 0.0
    %v3811 = vmax.f32 %v3804, 0.0
    %v3812 = vmax.f32 %v3470, 0.0
    %v3813 = vmax.f32 %v3582, 0.0
    %v3814 = vmax.f32 %v3694, 0.0
    %v3815 = vmax.f32 %v3806, 0.0
    %v3816 = vpack.c.bf16 %v3812, %v3808
    %v3817 = vpack.c.bf16 %v3813, %v3809
    %v3818 = vpack.c.bf16 %v3814, %v3810
    %v3819 = vpack.c.bf16 %v3815, %v3811
    %v3820 = vld [vmem:[#allocation6] sm:$0xf]
    %v3821 = vld [vmem:[#allocation6 + $0x4] sm:$0xf]
    %v3822 = vld [vmem:[#allocation6 + $0x8] sm:$0xf]
    %v3823 = vld [vmem:[#allocation6 + $0xc] sm:$0xf]
    %v3824 = vld [vmem:[#allocation6 + $0x10] sm:$0xf]
    %v3825 = vld [vmem:[#allocation6 + $0x14] sm:$0xf]
    %v3826 = vld [vmem:[#allocation6 + $0x18] sm:$0xf]
    %v3827 = vld [vmem:[#allocation6 + $0x1c] sm:$0xf]
    %v3828 = vld [vmem:[#allocation6 + $0x20] sm:$0xf]
    %v3829 = vld [vmem:[#allocation6 + $0x24] sm:$0xf]
    %v3830 = vld [vmem:[#allocation6 + $0x28] sm:$0xf]
    %v3831 = vld [vmem:[#allocation6 + $0x2c] sm:$0xf]
    %v3832 = vld [vmem:[#allocation6 + $0x30] sm:$0xf]
    %v3833 = vld [vmem:[#allocation6 + $0x34] sm:$0xf]
    %v3834 = vld [vmem:[#allocation6 + $0x38] sm:$0xf]
    %v3835 = vld [vmem:[#allocation6 + $0x3c] sm:$0xf]
    %v3836 = vld [vmem:[#allocation6 + $0x40] sm:$0xf]
    %v3837 = vld [vmem:[#allocation6 + $0x44] sm:$0xf]
    %v3838 = vld [vmem:[#allocation6 + $0x48] sm:$0xf]
    %v3839 = vld [vmem:[#allocation6 + $0x4c] sm:$0xf]
    %v3840 = vld [vmem:[#allocation6 + $0x50] sm:$0xf]
    %v3841 = vld [vmem:[#allocation6 + $0x54] sm:$0xf]
    %v3842 = vld [vmem:[#allocation6 + $0x58] sm:$0xf]
    %v3843 = vld [vmem:[#allocation6 + $0x5c] sm:$0xf]
    %v3844 = vld [vmem:[#allocation6 + $0x60] sm:$0xf]
    %v3845 = vld [vmem:[#allocation6 + $0x64] sm:$0xf]
    %v3846 = vld [vmem:[#allocation6 + $0x68] sm:$0xf]
    %v3847 = vld [vmem:[#allocation6 + $0x6c] sm:$0xf]
    %v3848 = vld [vmem:[#allocation6 + $0x70] sm:$0xf]
    %v3849 = vld [vmem:[#allocation6 + $0x74] sm:$0xf]
    %v3850 = vld [vmem:[#allocation6 + $0x78] sm:$0xf]
    %v3851 = vld [vmem:[#allocation6 + $0x7c] sm:$0xf]
    %v3852 = vld [vmem:[#allocation6 + $0x80] sm:$0xf]
    %v3853 = vld [vmem:[#allocation6 + $0x84] sm:$0xf]
    %v3854 = vld [vmem:[#allocation6 + $0x88] sm:$0xf]
    %v3855 = vld [vmem:[#allocation6 + $0x8c] sm:$0xf]
    %v3856 = vld [vmem:[#allocation6 + $0x90] sm:$0xf]
    %v3857 = vld [vmem:[#allocation6 + $0x94] sm:$0xf]
    %v3858 = vld [vmem:[#allocation6 + $0x98] sm:$0xf]
    %v3859 = vld [vmem:[#allocation6 + $0x9c] sm:$0xf]
    %v3860 = vld [vmem:[#allocation6 + $0xa0] sm:$0xf]
    %v3861 = vld [vmem:[#allocation6 + $0xa4] sm:$0xf]
    %v3862 = vld [vmem:[#allocation6 + $0xa8] sm:$0xf]
    %v3863 = vld [vmem:[#allocation6 + $0xac] sm:$0xf]
    %v3864 = vld [vmem:[#allocation6 + $0xb0] sm:$0xf]
    %v3865 = vld [vmem:[#allocation6 + $0xb4] sm:$0xf]
    %v3866 = vld [vmem:[#allocation6 + $0xb8] sm:$0xf]
    %v3867 = vld [vmem:[#allocation6 + $0xbc] sm:$0xf]
    %v3868 = vld [vmem:[#allocation6 + $0xc0] sm:$0xf]
    %v3869 = vld [vmem:[#allocation6 + $0xc4] sm:$0xf]
    %v3870 = vld [vmem:[#allocation6 + $0xc8] sm:$0xf]
    %v3871 = vld [vmem:[#allocation6 + $0xcc] sm:$0xf]
    %v3872 = vld [vmem:[#allocation6 + $0xd0] sm:$0xf]
    %v3873 = vld [vmem:[#allocation6 + $0xd4] sm:$0xf]
    %v3874 = vld [vmem:[#allocation6 + $0xd8] sm:$0xf]
    %v3875 = vld [vmem:[#allocation6 + $0xdc] sm:$0xf]
    %v3876 = vld [vmem:[#allocation6 + $0xe0] sm:$0xf]
    %v3877 = vld [vmem:[#allocation6 + $0xe4] sm:$0xf]
    %v3878 = vld [vmem:[#allocation6 + $0xe8] sm:$0xf]
    %v3879 = vld [vmem:[#allocation6 + $0xec] sm:$0xf]
    %v3880 = vld [vmem:[#allocation6 + $0xf0] sm:$0xf]
    %v3881 = vld [vmem:[#allocation6 + $0xf4] sm:$0xf]
    %v3882 = vld [vmem:[#allocation6 + $0xf8] sm:$0xf]
    %v3883 = vld [vmem:[#allocation6 + $0xfc] sm:$0xf]
    %v3884 = vld [vmem:[%s7] sm:$0x1]
    %v3886 = vperm.slane %v3884, 0
    %v3952 = vunpack.c.l.b16 %v3820
    %v3953 = vunpack.c.l.b16 %v3821
    %v3954 = vunpack.c.l.b16 %v3822
    %v3955 = vunpack.c.l.b16 %v3823
    %v3956 = vunpack.c.l.b16 %v3824
    %v3957 = vunpack.c.l.b16 %v3825
    %v3958 = vunpack.c.l.b16 %v3826
    %v3959 = vunpack.c.l.b16 %v3827
    %v3960 = vunpack.c.l.b16 %v3828
    %v3961 = vunpack.c.l.b16 %v3829
    %v3962 = vunpack.c.l.b16 %v3830
    %v3963 = vunpack.c.l.b16 %v3831
    %v3964 = vunpack.c.l.b16 %v3832
    %v3965 = vunpack.c.l.b16 %v3833
    %v3966 = vunpack.c.l.b16 %v3834
    %v3967 = vunpack.c.l.b16 %v3835
    %v3968 = vunpack.c.l.b16 %v3836
    %v3969 = vunpack.c.l.b16 %v3837
    %v3970 = vunpack.c.l.b16 %v3838
    %v3971 = vunpack.c.l.b16 %v3839
    %v3972 = vunpack.c.l.b16 %v3840
    %v3973 = vunpack.c.l.b16 %v3841
    %v3974 = vunpack.c.l.b16 %v3842
    %v3975 = vunpack.c.l.b16 %v3843
    %v3976 = vunpack.c.l.b16 %v3844
    %v3977 = vunpack.c.l.b16 %v3845
    %v3978 = vunpack.c.l.b16 %v3846
    %v3979 = vunpack.c.l.b16 %v3847
    %v3980 = vunpack.c.l.b16 %v3848
    %v3981 = vunpack.c.l.b16 %v3849
    %v3982 = vunpack.c.l.b16 %v3850
    %v3983 = vunpack.c.l.b16 %v3851
    %v3984 = vunpack.c.l.b16 %v3852
    %v3985 = vunpack.c.l.b16 %v3853
    %v3986 = vunpack.c.l.b16 %v3854
    %v3987 = vunpack.c.l.b16 %v3855
    %v3988 = vunpack.c.l.b16 %v3856
    %v3989 = vunpack.c.l.b16 %v3857
    %v3990 = vunpack.c.l.b16 %v3858
    %v3991 = vunpack.c.l.b16 %v3859
    %v3992 = vunpack.c.l.b16 %v3860
    %v3993 = vunpack.c.l.b16 %v3861
    %v3994 = vunpack.c.l.b16 %v3862
    %v3995 = vunpack.c.l.b16 %v3863
    %v3996 = vunpack.c.l.b16 %v3864
    %v3997 = vunpack.c.l.b16 %v3865
    %v3998 = vunpack.c.l.b16 %v3866
    %v3999 = vunpack.c.l.b16 %v3867
    %v4000 = vunpack.c.l.b16 %v3868
    %v4001 = vunpack.c.l.b16 %v3869
    %v4002 = vunpack.c.l.b16 %v3870
    %v4003 = vunpack.c.l.b16 %v3871
    %v4004 = vunpack.c.l.b16 %v3872
    %v4005 = vunpack.c.l.b16 %v3873
    %v4006 = vunpack.c.l.b16 %v3874
    %v4007 = vunpack.c.l.b16 %v3875
    %v4008 = vunpack.c.l.b16 %v3876
    %v4009 = vunpack.c.l.b16 %v3877
    %v4010 = vunpack.c.l.b16 %v3878
    %v4011 = vunpack.c.l.b16 %v3879
    %v4012 = vunpack.c.l.b16 %v3880
    %v4013 = vunpack.c.l.b16 %v3881
    %v4014 = vunpack.c.l.b16 %v3882
    %v4015 = vunpack.c.l.b16 %v3883
    %v4016 = vpack.c.b16 %v3953, %v3952
    %v4017 = vpack.c.b16 %v3955, %v3954
    %v4018 = vpack.c.b16 %v3957, %v3956
    %v4019 = vpack.c.b16 %v3959, %v3958
    %v4020 = vpack.c.b16 %v3961, %v3960
    %v4021 = vpack.c.b16 %v3963, %v3962
    %v4022 = vpack.c.b16 %v3965, %v3964
    %v4023 = vpack.c.b16 %v3967, %v3966
    %v4024 = vpack.c.b16 %v3969, %v3968
    %v4025 = vpack.c.b16 %v3971, %v3970
    %v4026 = vpack.c.b16 %v3973, %v3972
    %v4027 = vpack.c.b16 %v3975, %v3974
    %v4028 = vpack.c.b16 %v3977, %v3976
    %v4029 = vpack.c.b16 %v3979, %v3978
    %v4030 = vpack.c.b16 %v3981, %v3980
    %v4031 = vpack.c.b16 %v3983, %v3982
    %v4032 = vpack.c.b16 %v3985, %v3984
    %v4033 = vpack.c.b16 %v3987, %v3986
    %v4034 = vpack.c.b16 %v3989, %v3988
    %v4035 = vpack.c.b16 %v3991, %v3990
    %v4036 = vpack.c.b16 %v3993, %v3992
    %v4037 = vpack.c.b16 %v3995, %v3994
    %v4038 = vpack.c.b16 %v3997, %v3996
    %v4039 = vpack.c.b16 %v3999, %v3998
    %v4040 = vpack.c.b16 %v4001, %v4000
    %v4041 = vpack.c.b16 %v4003, %v4002
    %v4042 = vpack.c.b16 %v4005, %v4004
    %v4043 = vpack.c.b16 %v4007, %v4006
    %v4044 = vpack.c.b16 %v4009, %v4008
    %v4045 = vpack.c.b16 %v4011, %v4010
    %v4046 = vpack.c.b16 %v4013, %v4012
    %v4047 = vpack.c.b16 %v4015, %v4014
    %4080 = vmatpush.bf16.msra.mxu0 %v4023
    %4081 = vmatpush.bf16.msra.mxu0 %v4022
    %4082 = vmatpush.bf16.msra.mxu0 %v4021
    %4083 = vmatpush.bf16.msra.mxu0 %v4020
    %4084 = vmatpush.bf16.msra.mxu0 %v4019
    %4085 = vmatpush.bf16.msra.mxu0 %v4018
    %4086 = vmatpush.bf16.msra.mxu0 %v4017
    %4087 = vmatpush.bf16.msra.mxu0 %v4016
    %4088 = vmatmul.bf16.gmra.mxu0 %v3816
    %v4089 = vpop.f32.mrf.mxu0
    %v4090 = vadd.f32 %v3886, %v4089
    %v4091 = vpop.f32.mrf.mxu0
    %v4092 = vadd.f32 %v3886, %v4091
    %4093 = vdwg.mxu0
    %4094 = vmatpush.bf16.msra.mxu0 %v4031
    %4095 = vmatpush.bf16.msra.mxu0 %v4030
    %4096 = vmatpush.bf16.msra.mxu0 %v4029
    %4097 = vmatpush.bf16.msra.mxu0 %v4028
    %4098 = vmatpush.bf16.msra.mxu0 %v4027
    %4099 = vmatpush.bf16.msra.mxu0 %v4026
    %4100 = vmatpush.bf16.msra.mxu0 %v4025
    %4101 = vmatpush.bf16.msra.mxu0 %v4024
    %4102 = vmatmul.bf16.gmra.mxu0 %v3817
    %v4103 = vpop.f32.mrf.mxu0
    %v4104 = vadd.f32 %v4090, %v4103
    %v4105 = vpop.f32.mrf.mxu0
    %v4106 = vadd.f32 %v4092, %v4105
    %4107 = vdwg.mxu0
    %4108 = vmatpush.bf16.msra.mxu0 %v4039
    %4109 = vmatpush.bf16.msra.mxu0 %v4038
    %4110 = vmatpush.bf16.msra.mxu0 %v4037
    %4111 = vmatpush.bf16.msra.mxu0 %v4036
    %4112 = vmatpush.bf16.msra.mxu0 %v4035
    %4113 = vmatpush.bf16.msra.mxu0 %v4034
    %4114 = vmatpush.bf16.msra.mxu0 %v4033
    %4115 = vmatpush.bf16.msra.mxu0 %v4032
    %4116 = vmatmul.bf16.gmra.mxu0 %v3818
    %v4117 = vpop.f32.mrf.mxu0
    %v4118 = vadd.f32 %v4104, %v4117
    %v4119 = vpop.f32.mrf.mxu0
    %v4120 = vadd.f32 %v4106, %v4119
    %4121 = vdwg.mxu0
    %4122 = vmatpush.bf16.msra.mxu0 %v4047
    %4123 = vmatpush.bf16.msra.mxu0 %v4046
    %4124 = vmatpush.bf16.msra.mxu0 %v4045
    %4125 = vmatpush.bf16.msra.mxu0 %v4044
    %4126 = vmatpush.bf16.msra.mxu0 %v4043
    %4127 = vmatpush.bf16.msra.mxu0 %v4042
    %4128 = vmatpush.bf16.msra.mxu0 %v4041
    %4129 = vmatpush.bf16.msra.mxu0 %v4040
    %4130 = vmatmul.bf16.gmra.mxu0 %v3819
    %v4131 = vpop.f32.mrf.mxu0
    %v4132 = vadd.f32 %v4118, %v4131
    %v4133 = vpop.f32.mrf.mxu0
    %v4134 = vadd.f32 %v4120, %v4133
    %4135 = vdwg.mxu0
    %v4136 = vmax.f32 %v4132, 0.0
    %v4137 = vmax.f32 %v4134, 0.0
    %v4138 = vpack.c.bf16 %v4137, %v4136
    %v4139 = vld [vmem:[#allocation7] sm:$0xf]
    %v4140 = vld [vmem:[#allocation7 + $0x4] sm:$0xf]
    %v4141 = vld [vmem:[#allocation7 + $0x8] sm:$0xf]
    %v4142 = vld [vmem:[#allocation7 + $0xc] sm:$0xf]
    %v4143 = vld [vmem:[#allocation7 + $0x10] sm:$0xf]
    %v4144 = vld [vmem:[#allocation7 + $0x14] sm:$0xf]
    %v4145 = vld [vmem:[#allocation7 + $0x18] sm:$0xf]
    %v4146 = vld [vmem:[#allocation7 + $0x1c] sm:$0xf]
    %v4147 = vld [vmem:[#allocation7 + $0x20] sm:$0xf]
    %v4148 = vld [vmem:[#allocation7 + $0x24] sm:$0xf]
    %v4149 = vld [vmem:[#allocation7 + $0x28] sm:$0xf]
    %v4150 = vld [vmem:[#allocation7 + $0x2c] sm:$0xf]
    %v4151 = vld [vmem:[#allocation7 + $0x30] sm:$0xf]
    %v4152 = vld [vmem:[#allocation7 + $0x34] sm:$0xf]
    %v4153 = vld [vmem:[#allocation7 + $0x38] sm:$0xf]
    %v4154 = vld [vmem:[#allocation7 + $0x3c] sm:$0xf]
    %v4155 = vld [vmem:[%s9] sm:$0x1]
    %v4157 = vperm.slane %v4155, 0
    %v4175 = vunpack.c.l.b16 %v4139
    %v4176 = vunpack.c.l.b16 %v4140
    %v4177 = vunpack.c.l.b16 %v4141
    %v4178 = vunpack.c.l.b16 %v4142
    %v4179 = vunpack.c.l.b16 %v4143
    %v4180 = vunpack.c.l.b16 %v4144
    %v4181 = vunpack.c.l.b16 %v4145
    %v4182 = vunpack.c.l.b16 %v4146
    %v4183 = vunpack.c.l.b16 %v4147
    %v4184 = vunpack.c.l.b16 %v4148
    %v4185 = vunpack.c.l.b16 %v4149
    %v4186 = vunpack.c.l.b16 %v4150
    %v4187 = vunpack.c.l.b16 %v4151
    %v4188 = vunpack.c.l.b16 %v4152
    %v4189 = vunpack.c.l.b16 %v4153
    %v4190 = vunpack.c.l.b16 %v4154
    %v4191 = vpack.c.b16 %v4176, %v4175
    %v4192 = vpack.c.b16 %v4178, %v4177
    %v4193 = vpack.c.b16 %v4180, %v4179
    %v4194 = vpack.c.b16 %v4182, %v4181
    %v4195 = vpack.c.b16 %v4184, %v4183
    %v4196 = vpack.c.b16 %v4186, %v4185
    %v4197 = vpack.c.b16 %v4188, %v4187
    %v4198 = vpack.c.b16 %v4190, %v4189
    %4207 = vmatpush.bf16.msra.mxu0 %v4198
    %4208 = vmatpush.bf16.msra.mxu0 %v4197
    %4209 = vmatpush.bf16.msra.mxu0 %v4196
    %4210 = vmatpush.bf16.msra.mxu0 %v4195
    %4211 = vmatpush.bf16.msra.mxu0 %v4194
    %4212 = vmatpush.bf16.msra.mxu0 %v4193
    %4213 = vmatpush.bf16.msra.mxu0 %v4192
    %4214 = vmatpush.bf16.msra.mxu0 %v4191
    %4215 = vmatmul.bf16.gmra.mxu0 %v4138
    %v4216 = vpop.f32.mrf.mxu0
    %v4217 = vadd.f32 %v4157, %v4216
    %v4218 = vpop.f32.mrf.mxu0
    %v4219 = vadd.f32 %v4157, %v4218
    %4220 = vdwg.mxu0
    %4221 = vst [vmem:[%s10] sm:$0xff] %v4217
    %4222 = vst [vmem:[%s10 + $0x8] sm:$0xff] %v4219
    // Predicated region
    $region58: #{dqn_forward.1} parent=1 // pred_check
      _
    $region59: #{dqn_forward.1} parent=1 // pred_check_branch
      %4224 = sbr.rel (0) target = $region61
    $region60: #{dqn_forward.1} parent=1 // pred_region
      _
    $region61: #{dqn_forward.1} parent=1 // pred_fallthru
      _
    // Predicated region
    $region62: #{dqn_forward.1} parent=1 // pred_check
      _
    $region63: #{dqn_forward.1} parent=1 // pred_check_branch
      %4226 = sbr.rel (0) target = $region65
    $region64: #{dqn_forward.1} parent=1 // pred_region
      _
    $region65: #{dqn_forward.1} parent=1 // pred_fallthru
      _
    %4227 = vsyncpa [#allocation3], 1
    %4228 = vsyncpa [#allocation5], 1
    %4229 = vsyncpa [#allocation8], 1

</llo_original>
